<compile_context>
chip_gen: v5e
topology: v5e:2x2
jax: 0.10.0
libtpu: 0.0.40
codegen_flags: <defaults>
</compile_context>

<pallas_src>
import jax
import jax.numpy as jnp
from jax.experimental import pallas as pl
from jax.experimental.pallas import tpu as pltpu


_NUM_LAYERS = 7


def _round_up(x, m):
    return ((x + m - 1) // m) * m


def _mlp_kernel(x_ref, *refs):
    """refs = (w1, b1, w2, b2, ..., w7, b7, y_ref); weights are (in, out)."""
    y_ref = refs[-1]
    wb = refs[:-1]

    h = x_ref[...]                                               # (tm, D0_pad)
    for layer in range(_NUM_LAYERS):
        w_ref = wb[2 * layer]
        b_ref = wb[2 * layer + 1]
        h = jnp.dot(h, w_ref[...],
                    preferred_element_type=jnp.float32) + b_ref[...]
        if layer < _NUM_LAYERS - 1:                              # no ReLU on fcend
            h = jnp.maximum(h, 0.0)
    y_ref[...] = h


def point_cloud_decoder_mlp(x, weights, biases, num_point, point_dim, *, tm=512):
    """Forward pass of PointCloudDecoderMLP.

    x:       (..., latent_dim) float32
    weights: list of 7 arrays in torch nn.Linear layout (out_features, in_features)
    biases:  list of 7 arrays (out_features,)
    returns: (-1, num_point, point_dim) float32
    """
    assert len(weights) == _NUM_LAYERS and len(biases) == _NUM_LAYERS
    latent_dim = weights[0].shape[1]
    x_flat = x.reshape(-1, latent_dim).astype(jnp.float32)
    n = x_flat.shape[0]

    dims = [latent_dim] + [int(w.shape[0]) for w in weights]
    dims_pad = [_round_up(d, 128) for d in dims]                 # lane-dense dims

    # Hoisted, one-time weight preprocessing: torch (out, in) -> padded (in, out).
    w_pad, b_pad = [], []
    for layer in range(_NUM_LAYERS):
        din, dout = dims_pad[layer], dims_pad[layer + 1]
        wt = jnp.asarray(weights[layer], jnp.float32).T          # (in, out)
        wt = jnp.pad(wt, ((0, din - wt.shape[0]), (0, dout - wt.shape[1])))
        w_pad.append(wt)
        bb = jnp.asarray(biases[layer], jnp.float32).reshape(1, -1)
        bb = jnp.pad(bb, ((0, 0), (0, dout - bb.shape[1])))
        b_pad.append(bb)

    # Row tiling: big tiles amortize per-step overhead; clamp for tiny batches.
    tm = min(tm, _round_up(n, 8))
    n_pad = _round_up(n, tm)
    grid_n = n_pad // tm
    x_p = jnp.pad(x_flat, ((0, n_pad - n), (0, dims_pad[0] - latent_dim)))

    in_specs = [pl.BlockSpec((tm, dims_pad[0]), lambda i: (i, 0))]   # x tile
    for layer in range(_NUM_LAYERS):
        din, dout = dims_pad[layer], dims_pad[layer + 1]
        in_specs.append(pl.BlockSpec((din, dout), lambda i: (0, 0)))  # weight (resident)
        in_specs.append(pl.BlockSpec((1, dout), lambda i: (0, 0)))    # bias   (resident)

    flat_params = [a for pair in zip(w_pad, b_pad) for a in pair]

    out = pl.pallas_call(
        _mlp_kernel,
        out_shape=jax.ShapeDtypeStruct((n_pad, dims_pad[-1]), jnp.float32),
        grid_spec=pltpu.PrefetchScalarGridSpec(
            num_scalar_prefetch=0,
            grid=(grid_n,),
            in_specs=in_specs,
            out_specs=pl.BlockSpec((tm, dims_pad[-1]), lambda i: (i, 0)),
        ),
        compiler_params=pltpu.CompilerParams(
            dimension_semantics=("parallel",),         # independent row tiles -> megacore on v7x
            vmem_limit_bytes=48 * 1024 * 1024,         # headroom on v5e's 16 MiB default
        ),
    )(x_p, *flat_params)

    out = out[:n, :dims[-1]]
    return out.reshape(-1, num_point, point_dim)


def point_cloud_decoder_mlp_ref(x, weights, biases, num_point, point_dim):
    """Pure-JAX reference matching the torch forward."""
    h = x.reshape(-1, weights[0].shape[1]).astype(jnp.float32)
    for layer in range(_NUM_LAYERS):
        h = h @ weights[layer].T + biases[layer]
        if layer < _NUM_LAYERS - 1:
            h = jax.nn.relu(h)
    return h.reshape(-1, num_point, point_dim)


if __name__ == "__main__":
    # Small, deterministic test configuration.
    latent_dim = 32
    num_point = 64          # torch default is 2500; small here for the test
    point_dim = 3
    batch = 2

    dims = [latent_dim, 2 * latent_dim, 4 * latent_dim, 8 * latent_dim,
            16 * latent_dim, 32 * latent_dim, 32 * latent_dim,
            num_point * point_dim]

    key = jax.random.PRNGKey(0)
    weights, biases = [], []
    for layer in range(_NUM_LAYERS):
        key, kw, kb = jax.random.split(key, 3)
        fan_in = dims[layer]
        bound = 1.0 / (fan_in ** 0.5)          # nn.Linear default init range
        weights.append(jax.random.uniform(
            kw, (dims[layer + 1], dims[layer]),
            minval=-bound, maxval=bound, dtype=jnp.float32))
        biases.append(jax.random.uniform(
            kb, (dims[layer + 1],),
            minval=-bound, maxval=bound, dtype=jnp.float32))

    key, kx = jax.random.split(key)
    x = jax.random.normal(kx, (batch, latent_dim), dtype=jnp.float32)

    y = point_cloud_decoder_mlp(x, weights, biases, num_point, point_dim)
    y = jax.block_until_ready(y)

    y_ref = point_cloud_decoder_mlp_ref(x, weights, biases, num_point, point_dim)
    assert y.shape == (batch, num_point, point_dim)
    max_err = float(jnp.max(jnp.abs(y - y_ref)))
    assert jnp.allclose(y, y_ref, atol=2e-3, rtol=2e-3), max_err

    print("KERNEL_OK")
</pallas_src>

<mosaic_0001>
module attributes {stable_mosaic.version = 11 : i64} {
  func.func @_mlp_kernel(%arg0: i32, %arg1: memref<8x128xf32, #tpu.memory_space<vmem>>, %arg2: memref<128x128xf32, #tpu.memory_space<vmem>>, %arg3: memref<1x128xf32, #tpu.memory_space<vmem>>, %arg4: memref<128x128xf32, #tpu.memory_space<vmem>>, %arg5: memref<1x128xf32, #tpu.memory_space<vmem>>, %arg6: memref<128x256xf32, #tpu.memory_space<vmem>>, %arg7: memref<1x256xf32, #tpu.memory_space<vmem>>, %arg8: memref<256x512xf32, #tpu.memory_space<vmem>>, %arg9: memref<1x512xf32, #tpu.memory_space<vmem>>, %arg10: memref<512x1024xf32, #tpu.memory_space<vmem>>, %arg11: memref<1x1024xf32, #tpu.memory_space<vmem>>, %arg12: memref<1024x1024xf32, #tpu.memory_space<vmem>>, %arg13: memref<1x1024xf32, #tpu.memory_space<vmem>>, %arg14: memref<1024x256xf32, #tpu.memory_space<vmem>>, %arg15: memref<1x256xf32, #tpu.memory_space<vmem>>, %arg16: memref<8x256xf32, #tpu.memory_space<vmem>>) attributes {dimension_semantics = [#tpu.dimension_semantics<parallel>], iteration_bounds = array<i64: 1>, scalar_prefetch = 0 : i64, scratch_operands = 0 : i64, tpu.core_type = #tpu.core_type<tc>, window_params = [{transform_indices = @transform_0, window_bounds = array<i64: 8, 128>}, {pipeline_mode = #tpu.pipeline_mode<synchronous>, transform_indices = @transform_1, window_bounds = array<i64: 128, 128>}, {pipeline_mode = #tpu.pipeline_mode<synchronous>, transform_indices = @transform_2, window_bounds = array<i64: 1, 128>}, {pipeline_mode = #tpu.pipeline_mode<synchronous>, transform_indices = @transform_3, window_bounds = array<i64: 128, 128>}, {pipeline_mode = #tpu.pipeline_mode<synchronous>, transform_indices = @transform_4, window_bounds = array<i64: 1, 128>}, {pipeline_mode = #tpu.pipeline_mode<synchronous>, transform_indices = @transform_5, window_bounds = array<i64: 128, 256>}, {pipeline_mode = #tpu.pipeline_mode<synchronous>, transform_indices = @transform_6, window_bounds = array<i64: 1, 256>}, {pipeline_mode = #tpu.pipeline_mode<synchronous>, transform_indices = @transform_7, window_bounds = array<i64: 256, 512>}, {pipeline_mode = #tpu.pipeline_mode<synchronous>, transform_indices = @transform_8, window_bounds = array<i64: 1, 512>}, {pipeline_mode = #tpu.pipeline_mode<synchronous>, transform_indices = @transform_9, window_bounds = array<i64: 512, 1024>}, {pipeline_mode = #tpu.pipeline_mode<synchronous>, transform_indices = @transform_10, window_bounds = array<i64: 1, 1024>}, {pipeline_mode = #tpu.pipeline_mode<synchronous>, transform_indices = @transform_11, window_bounds = array<i64: 1024, 1024>}, {pipeline_mode = #tpu.pipeline_mode<synchronous>, transform_indices = @transform_12, window_bounds = array<i64: 1, 1024>}, {pipeline_mode = #tpu.pipeline_mode<synchronous>, transform_indices = @transform_13, window_bounds = array<i64: 1024, 256>}, {pipeline_mode = #tpu.pipeline_mode<synchronous>, transform_indices = @transform_14, window_bounds = array<i64: 1, 256>}, {transform_indices = @transform_15, window_bounds = array<i64: 8, 256>}]} {
    %c0 = arith.constant 0 : index
    %c0_0 = arith.constant 0 : index
    %0 = vector.load %arg1[%c0, %c0_0] : memref<8x128xf32, #tpu.memory_space<vmem>>, vector<8x128xf32>
    %c0_1 = arith.constant 0 : index
    %c0_2 = arith.constant 0 : index
    %1 = vector.load %arg2[%c0_1, %c0_2] : memref<128x128xf32, #tpu.memory_space<vmem>>, vector<128x128xf32>
    %cst = arith.constant dense<0.000000e+00> : vector<8x128xf32>
    %2 = tpu.matmul %0, %1, %cst {dimension_numbers = #tpu.dot_dimension_numbers<[1], [0], [0], [1], [0, 0, 1, 1], [], []>} : vector<8x128xf32>, vector<128x128xf32>, vector<8x128xf32> -> vector<8x128xf32>
    %c0_3 = arith.constant 0 : index
    %c0_4 = arith.constant 0 : index
    %3 = vector.load %arg3[%c0_3, %c0_4] : memref<1x128xf32, #tpu.memory_space<vmem>>, vector<1x128xf32>
    %4 = vector.broadcast %3 : vector<1x128xf32> to vector<8x128xf32>
    %5 = arith.addf %2, %4 : vector<8x128xf32>
    %cst_5 = arith.constant 0.000000e+00 : f32
    %6 = vector.broadcast %cst_5 : f32 to vector<8x128xf32>
    %7 = arith.maximumf %5, %6 : vector<8x128xf32>
    %c0_6 = arith.constant 0 : index
    %c0_7 = arith.constant 0 : index
    %8 = vector.load %arg4[%c0_6, %c0_7] : memref<128x128xf32, #tpu.memory_space<vmem>>, vector<128x128xf32>
    %cst_8 = arith.constant dense<0.000000e+00> : vector<8x128xf32>
    %9 = tpu.matmul %7, %8, %cst_8 {dimension_numbers = #tpu.dot_dimension_numbers<[1], [0], [0], [1], [0, 0, 1, 1], [], []>} : vector<8x128xf32>, vector<128x128xf32>, vector<8x128xf32> -> vector<8x128xf32>
    %c0_9 = arith.constant 0 : index
    %c0_10 = arith.constant 0 : index
    %10 = vector.load %arg5[%c0_9, %c0_10] : memref<1x128xf32, #tpu.memory_space<vmem>>, vector<1x128xf32>
    %11 = vector.broadcast %10 : vector<1x128xf32> to vector<8x128xf32>
    %12 = arith.addf %9, %11 : vector<8x128xf32>
    %cst_11 = arith.constant 0.000000e+00 : f32
    %13 = vector.broadcast %cst_11 : f32 to vector<8x128xf32>
    %14 = arith.maximumf %12, %13 : vector<8x128xf32>
    %c0_12 = arith.constant 0 : index
    %c0_13 = arith.constant 0 : index
    %15 = vector.load %arg6[%c0_12, %c0_13] : memref<128x256xf32, #tpu.memory_space<vmem>>, vector<128x256xf32>
    %cst_14 = arith.constant dense<0.000000e+00> : vector<8x256xf32>
    %16 = tpu.matmul %14, %15, %cst_14 {dimension_numbers = #tpu.dot_dimension_numbers<[1], [0], [0], [1], [0, 0, 1, 1], [], []>} : vector<8x128xf32>, vector<128x256xf32>, vector<8x256xf32> -> vector<8x256xf32>
    %c0_15 = arith.constant 0 : index
    %c0_16 = arith.constant 0 : index
    %17 = vector.load %arg7[%c0_15, %c0_16] : memref<1x256xf32, #tpu.memory_space<vmem>>, vector<1x256xf32>
    %18 = vector.broadcast %17 : vector<1x256xf32> to vector<8x256xf32>
    %19 = arith.addf %16, %18 : vector<8x256xf32>
    %cst_17 = arith.constant 0.000000e+00 : f32
    %20 = vector.broadcast %cst_17 : f32 to vector<8x256xf32>
    %21 = arith.maximumf %19, %20 : vector<8x256xf32>
    %c0_18 = arith.constant 0 : index
    %c0_19 = arith.constant 0 : index
    %22 = vector.load %arg8[%c0_18, %c0_19] : memref<256x512xf32, #tpu.memory_space<vmem>>, vector<256x512xf32>
    %cst_20 = arith.constant dense<0.000000e+00> : vector<8x512xf32>
    %23 = tpu.matmul %21, %22, %cst_20 {dimension_numbers = #tpu.dot_dimension_numbers<[1], [0], [0], [1], [0, 0, 1, 1], [], []>} : vector<8x256xf32>, vector<256x512xf32>, vector<8x512xf32> -> vector<8x512xf32>
    %c0_21 = arith.constant 0 : index
    %c0_22 = arith.constant 0 : index
    %24 = vector.load %arg9[%c0_21, %c0_22] : memref<1x512xf32, #tpu.memory_space<vmem>>, vector<1x512xf32>
    %25 = vector.broadcast %24 : vector<1x512xf32> to vector<8x512xf32>
    %26 = arith.addf %23, %25 : vector<8x512xf32>
    %cst_23 = arith.constant 0.000000e+00 : f32
    %27 = vector.broadcast %cst_23 : f32 to vector<8x512xf32>
    %28 = arith.maximumf %26, %27 : vector<8x512xf32>
    %c0_24 = arith.constant 0 : index
    %c0_25 = arith.constant 0 : index
    %29 = vector.load %arg10[%c0_24, %c0_25] : memref<512x1024xf32, #tpu.memory_space<vmem>>, vector<512x1024xf32>
    %cst_26 = arith.constant dense<0.000000e+00> : vector<8x1024xf32>
    %30 = tpu.matmul %28, %29, %cst_26 {dimension_numbers = #tpu.dot_dimension_numbers<[1], [0], [0], [1], [0, 0, 1, 1], [], []>} : vector<8x512xf32>, vector<512x1024xf32>, vector<8x1024xf32> -> vector<8x1024xf32>
    %c0_27 = arith.constant 0 : index
    %c0_28 = arith.constant 0 : index
    %31 = vector.load %arg11[%c0_27, %c0_28] : memref<1x1024xf32, #tpu.memory_space<vmem>>, vector<1x1024xf32>
    %32 = vector.broadcast %31 : vector<1x1024xf32> to vector<8x1024xf32>
    %33 = arith.addf %30, %32 : vector<8x1024xf32>
    %cst_29 = arith.constant 0.000000e+00 : f32
    %34 = vector.broadcast %cst_29 : f32 to vector<8x1024xf32>
    %35 = arith.maximumf %33, %34 : vector<8x1024xf32>
    %c0_30 = arith.constant 0 : index
    %c0_31 = arith.constant 0 : index
    %36 = vector.load %arg12[%c0_30, %c0_31] : memref<1024x1024xf32, #tpu.memory_space<vmem>>, vector<1024x1024xf32>
    %cst_32 = arith.constant dense<0.000000e+00> : vector<8x1024xf32>
    %37 = tpu.matmul %35, %36, %cst_32 {dimension_numbers = #tpu.dot_dimension_numbers<[1], [0], [0], [1], [0, 0, 1, 1], [], []>} : vector<8x1024xf32>, vector<1024x1024xf32>, vector<8x1024xf32> -> vector<8x1024xf32>
    %c0_33 = arith.constant 0 : index
    %c0_34 = arith.constant 0 : index
    %38 = vector.load %arg13[%c0_33, %c0_34] : memref<1x1024xf32, #tpu.memory_space<vmem>>, vector<1x1024xf32>
    %39 = vector.broadcast %38 : vector<1x1024xf32> to vector<8x1024xf32>
    %40 = arith.addf %37, %39 : vector<8x1024xf32>
    %cst_35 = arith.constant 0.000000e+00 : f32
    %41 = vector.broadcast %cst_35 : f32 to vector<8x1024xf32>
    %42 = arith.maximumf %40, %41 : vector<8x1024xf32>
    %c0_36 = arith.constant 0 : index
    %c0_37 = arith.constant 0 : index
    %43 = vector.load %arg14[%c0_36, %c0_37] : memref<1024x256xf32, #tpu.memory_space<vmem>>, vector<1024x256xf32>
    %cst_38 = arith.constant dense<0.000000e+00> : vector<8x256xf32>
    %44 = tpu.matmul %42, %43, %cst_38 {dimension_numbers = #tpu.dot_dimension_numbers<[1], [0], [0], [1], [0, 0, 1, 1], [], []>} : vector<8x1024xf32>, vector<1024x256xf32>, vector<8x256xf32> -> vector<8x256xf32>
    %c0_39 = arith.constant 0 : index
    %c0_40 = arith.constant 0 : index
    %45 = vector.load %arg15[%c0_39, %c0_40] : memref<1x256xf32, #tpu.memory_space<vmem>>, vector<1x256xf32>
    %46 = vector.broadcast %45 : vector<1x256xf32> to vector<8x256xf32>
    %47 = arith.addf %44, %46 : vector<8x256xf32>
    %c0_41 = arith.constant 0 : index
    %c0_42 = arith.constant 0 : index
    %48 = vector.load %arg16[%c0_41, %c0_42] : memref<8x256xf32, #tpu.memory_space<vmem>>, vector<8x256xf32>
    tpu.vector_store %arg16[%c0_41, %c0_42], %47 {strides = array<i32>} : memref<8x256xf32, #tpu.memory_space<vmem>>, vector<8x256xf32>,
    return
  }
  func.func @transform_0(%arg0: i32) -> (i32, i32) {
    %c0_i32 = arith.constant 0 : i32
    %c0_i32_0 = arith.constant 0 : i32
    return %arg0, %c0_i32 : i32, i32
  }
  func.func @transform_1(%arg0: i32) -> (i32, i32) {
    %c0_i32 = arith.constant 0 : i32
    %c0_i32_0 = arith.constant 0 : i32
    %c0_i32_1 = arith.constant 0 : i32
    return %c0_i32, %c0_i32_0 : i32, i32
  }
  func.func @transform_2(%arg0: i32) -> (i32, i32) {
    %c0_i32 = arith.constant 0 : i32
    %c0_i32_0 = arith.constant 0 : i32
    %c0_i32_1 = arith.constant 0 : i32
    return %c0_i32, %c0_i32_0 : i32, i32
  }
  func.func @transform_3(%arg0: i32) -> (i32, i32) {
    %c0_i32 = arith.constant 0 : i32
    %c0_i32_0 = arith.constant 0 : i32
    %c0_i32_1 = arith.constant 0 : i32
    return %c0_i32, %c0_i32_0 : i32, i32
  }
  func.func @transform_4(%arg0: i32) -> (i32, i32) {
    %c0_i32 = arith.constant 0 : i32
    %c0_i32_0 = arith.constant 0 : i32
    %c0_i32_1 = arith.constant 0 : i32
    return %c0_i32, %c0_i32_0 : i32, i32
  }
  func.func @transform_5(%arg0: i32) -> (i32, i32) {
    %c0_i32 = arith.constant 0 : i32
    %c0_i32_0 = arith.constant 0 : i32
    %c0_i32_1 = arith.constant 0 : i32
    return %c0_i32, %c0_i32_0 : i32, i32
  }
  func.func @transform_6(%arg0: i32) -> (i32, i32) {
    %c0_i32 = arith.constant 0 : i32
    %c0_i32_0 = arith.constant 0 : i32
    %c0_i32_1 = arith.constant 0 : i32
    return %c0_i32, %c0_i32_0 : i32, i32
  }
  func.func @transform_7(%arg0: i32) -> (i32, i32) {
    %c0_i32 = arith.constant 0 : i32
    %c0_i32_0 = arith.constant 0 : i32
    %c0_i32_1 = arith.constant 0 : i32
    return %c0_i32, %c0_i32_0 : i32, i32
  }
  func.func @transform_8(%arg0: i32) -> (i32, i32) {
    %c0_i32 = arith.constant 0 : i32
    %c0_i32_0 = arith.constant 0 : i32
    %c0_i32_1 = arith.constant 0 : i32
    return %c0_i32, %c0_i32_0 : i32, i32
  }
  func.func @transform_9(%arg0: i32) -> (i32, i32) {
    %c0_i32 = arith.constant 0 : i32
    %c0_i32_0 = arith.constant 0 : i32
    %c0_i32_1 = arith.constant 0 : i32
    return %c0_i32, %c0_i32_0 : i32, i32
  }
  func.func @transform_10(%arg0: i32) -> (i32, i32) {
    %c0_i32 = arith.constant 0 : i32
    %c0_i32_0 = arith.constant 0 : i32
    %c0_i32_1 = arith.constant 0 : i32
    return %c0_i32, %c0_i32_0 : i32, i32
  }
  func.func @transform_11(%arg0: i32) -> (i32, i32) {
    %c0_i32 = arith.constant 0 : i32
    %c0_i32_0 = arith.constant 0 : i32
    %c0_i32_1 = arith.constant 0 : i32
    return %c0_i32, %c0_i32_0 : i32, i32
  }
  func.func @transform_12(%arg0: i32) -> (i32, i32) {
    %c0_i32 = arith.constant 0 : i32
    %c0_i32_0 = arith.constant 0 : i32
    %c0_i32_1 = arith.constant 0 : i32
    return %c0_i32, %c0_i32_0 : i32, i32
  }
  func.func @transform_13(%arg0: i32) -> (i32, i32) {
    %c0_i32 = arith.constant 0 : i32
    %c0_i32_0 = arith.constant 0 : i32
    %c0_i32_1 = arith.constant 0 : i32
    return %c0_i32, %c0_i32_0 : i32, i32
  }
  func.func @transform_14(%arg0: i32) -> (i32, i32) {
    %c0_i32 = arith.constant 0 : i32
    %c0_i32_0 = arith.constant 0 : i32
    %c0_i32_1 = arith.constant 0 : i32
    return %c0_i32, %c0_i32_0 : i32, i32
  }
  func.func @transform_15(%arg0: i32) -> (i32, i32) {
    %c0_i32 = arith.constant 0 : i32
    %c0_i32_0 = arith.constant 0 : i32
    return %arg0, %c0_i32 : i32, i32
  }
}

</mosaic_0001>

<llo_original>
// kernel: tpu_custom_call.1
$region0: #{tpu_custom_call.1}
  #allocation0 [shape = 'u32[]', space=smem, size = 0x4, offset = 0x4, fixed_abs, tag = 'smem constant byte address 0x4 - core index']
  #allocation1 [shape = 'u32[72,128]{1,0:T(1,128)}', space=vmem, size = 0x9000, scoped, tag = 'internal scratch']
  %s0 = inlined_call_operand.hbm [shape: f32[8,128], index: 0, kind: input, shape index: {}]
  %s1 = inlined_call_operand.hbm [shape: f32[128,128], index: 1, kind: input, shape index: {}]
  %s2 = inlined_call_operand.hbm [shape: f32[1,128], index: 2, kind: input, shape index: {}]
  %s3 = inlined_call_operand.hbm [shape: f32[128,128], index: 3, kind: input, shape index: {}]
  %s4 = inlined_call_operand.hbm [shape: f32[1,128], index: 4, kind: input, shape index: {}]
  %s5 = inlined_call_operand.hbm [shape: f32[128,256], index: 5, kind: input, shape index: {}]
  %s6 = inlined_call_operand.hbm [shape: f32[1,256], index: 6, kind: input, shape index: {}]
  %s7 = inlined_call_operand.hbm [shape: f32[256,512], index: 7, kind: input, shape index: {}]
  %s8 = inlined_call_operand.hbm [shape: f32[1,512], index: 8, kind: input, shape index: {}]
  %s9 = inlined_call_operand.hbm [shape: f32[512,1024], index: 9, kind: input, shape index: {}]
  %s10 = inlined_call_operand.hbm [shape: f32[1,1024], index: 10, kind: input, shape index: {}]
  %s11 = inlined_call_operand.hbm [shape: f32[1024,1024], index: 11, kind: input, shape index: {}]
  %s12 = inlined_call_operand.hbm [shape: f32[1,1024], index: 12, kind: input, shape index: {}]
  %s13 = inlined_call_operand.hbm [shape: f32[1024,256], index: 13, kind: input, shape index: {}]
  %s14 = inlined_call_operand.hbm [shape: f32[1,256], index: 14, kind: input, shape index: {}]
  %s15 = inlined_call_operand.hbm [shape: f32[8,256], index: 15, kind: output, shape index: {}]
  %s16 = sld [smem:[#allocation0]]
  $region130: #{tpu_custom_call.1} parent=0
    _
  %s18 = ssub.s32 1, %s16
  %s19 = scalar_select 0, %s18, %s16
  $region1: #{tpu_custom_call.1} parent=0
    #allocation2 [shape = 'u8[4096]{0}', space=vmem, size = 0x1000, scoped, tag = 'input window, operand 0, single buffered']
    #allocation3 [shape = 's32[1]{0}', space=sflag, size = 0x4, scoped, tag = 'scoped memory for tpu_custom_call.1']
    #allocation4 [shape = 's32[1]{0}', space=sflag, size = 0x4, scoped, tag = 'scoped memory for tpu_custom_call.1']
    #allocation5 [shape = 'u8[65536]{0}', space=vmem, size = 0x10000, scoped, tag = 'input window, operand 1, single buffered']
    #allocation6 [shape = 's32[1]{0}', space=sflag, size = 0x4, scoped, tag = 'scoped memory for tpu_custom_call.1']
    #allocation7 [shape = 'u8[512]{0}', space=vmem, size = 0x400, scoped, tag = 'input window, operand 2, single buffered']
    #allocation8 [shape = 'u8[65536]{0}', space=vmem, size = 0x10000, scoped, tag = 'input window, operand 3, single buffered']
    #allocation9 [shape = 's32[1]{0}', space=sflag, size = 0x4, scoped, tag = 'scoped memory for tpu_custom_call.1']
    #allocation10 [shape = 'u8[512]{0}', space=vmem, size = 0x400, scoped, tag = 'input window, operand 4, single buffered']
    #allocation11 [shape = 'u8[131072]{0}', space=vmem, size = 0x20000, scoped, tag = 'input window, operand 5, single buffered']
    #allocation12 [shape = 's32[1]{0}', space=sflag, size = 0x4, scoped, tag = 'scoped memory for tpu_custom_call.1']
    #allocation13 [shape = 'u8[1024]{0}', space=vmem, size = 0x400, scoped, tag = 'input window, operand 6, single buffered']
    #allocation14 [shape = 'u8[524288]{0}', space=vmem, size = 0x80000, scoped, tag = 'input window, operand 7, single buffered']
    #allocation15 [shape = 's32[1]{0}', space=sflag, size = 0x4, scoped, tag = 'scoped memory for tpu_custom_call.1']
    #allocation16 [shape = 'u8[2048]{0}', space=vmem, size = 0x800, scoped, tag = 'input window, operand 8, single buffered']
    #allocation17 [shape = 'u8[2097152]{0}', space=vmem, size = 0x200000, scoped, tag = 'input window, operand 9, single buffered']
    #allocation18 [shape = 's32[1]{0}', space=sflag, size = 0x4, scoped, tag = 'scoped memory for tpu_custom_call.1']
    #allocation19 [shape = 'u8[4096]{0}', space=vmem, size = 0x1000, scoped, tag = 'input window, operand 10, single buffered']
    #allocation20 [shape = 'u8[4194304]{0}', space=vmem, size = 0x400000, scoped, tag = 'input window, operand 11, single buffered']
    #allocation21 [shape = 's32[1]{0}', space=sflag, size = 0x4, scoped, tag = 'scoped memory for tpu_custom_call.1']
    #allocation22 [shape = 'u8[4096]{0}', space=vmem, size = 0x1000, scoped, tag = 'input window, operand 12, single buffered']
    #allocation23 [shape = 'u8[1048576]{0}', space=vmem, size = 0x100000, scoped, tag = 'input window, operand 13, single buffered']
    #allocation24 [shape = 's32[1]{0}', space=sflag, size = 0x4, scoped, tag = 'scoped memory for tpu_custom_call.1']
    #allocation25 [shape = 'u8[1024]{0}', space=vmem, size = 0x400, scoped, tag = 'input window, operand 14, single buffered']
    #allocation26 [shape = 'u8[8192]{0}', space=vmem, size = 0x2000, scoped, tag = 'output window, operand 0, single buffered']
    %20 = vsyncpa [#allocation3], 0
    %21 = vsyncpa [#allocation6], 0
    %22 = vsyncpa [#allocation9], 0
    %23 = vsyncpa [#allocation12], 0
    %24 = vsyncpa [#allocation15], 0
    %25 = vsyncpa [#allocation18], 0
    %26 = vsyncpa [#allocation21], 0
    %27 = vsyncpa [#allocation24], 0
    %28 = vsyncpa [#allocation4], 0
    // Predicated region
    $region2: #{tpu_custom_call.1} parent=1 // pred_check
      _
    $region3: #{tpu_custom_call.1} parent=1 // pred_check_branch
      %30 = sbr.rel (0) target = $region5
    $region4: #{tpu_custom_call.1} parent=1 // pred_region
      %32 = vsyncadd [#allocation3], 0
      %s34 = sshll.u32 %s0, 4
      %s35 = int_to_ptr.hbm [resolvable:$true] %s34
      %s36 = sshll.u32 [#allocation2], 4
      %s37 = int_to_ptr.vmem [resolvable:$true] %s36
      %39 = dma.hbm_to_vmem [thread:$0]  %s35, 128, %s37, [#allocation3]
    $region5: #{tpu_custom_call.1} parent=1 // pred_fallthru
      _
    // Predicated region
    $region6: #{tpu_custom_call.1} parent=1 // pred_check
      _
    $region7: #{tpu_custom_call.1} parent=1 // pred_check_branch
      %41 = sbr.rel (0) target = $region9
    $region8: #{tpu_custom_call.1} parent=1 // pred_region
      %43 = vsyncadd [#allocation6], 0
      %s44 = sshll.u32 %s1, 4
      %s45 = int_to_ptr.hbm [resolvable:$true] %s44
      %s46 = sshll.u32 [#allocation5], 4
      %s47 = int_to_ptr.vmem [resolvable:$true] %s46
      %52 = dma.hbm_to_vmem [thread:$0]  %s45, 2048, %s47, [#allocation6], 128, 128, 8
    $region9: #{tpu_custom_call.1} parent=1 // pred_fallthru
      _
    // Predicated region
    $region10: #{tpu_custom_call.1} parent=1 // pred_check
      _
    $region11: #{tpu_custom_call.1} parent=1 // pred_check_branch
      %54 = sbr.rel (0) target = $region13
    $region12: #{tpu_custom_call.1} parent=1 // pred_region
      %56 = vsyncadd [#allocation6], 0
      %s58 = sshll.u32 %s2, 4
      %s59 = int_to_ptr.hbm [resolvable:$true] %s58
      %s60 = sshll.u32 [#allocation7], 4
      %s61 = int_to_ptr.vmem [resolvable:$true] %s60
      %63 = dma.hbm_to_vmem [thread:$0]  %s59, 16, %s61, [#allocation6]
    $region13: #{tpu_custom_call.1} parent=1 // pred_fallthru
      _
    // Predicated region
    $region14: #{tpu_custom_call.1} parent=1 // pred_check
      _
    $region15: #{tpu_custom_call.1} parent=1 // pred_check_branch
      %65 = sbr.rel (0) target = $region17
    $region16: #{tpu_custom_call.1} parent=1 // pred_region
      %67 = vsyncadd [#allocation9], 0
      %s68 = sshll.u32 %s3, 4
      %s69 = int_to_ptr.hbm [resolvable:$true] %s68
      %s70 = sshll.u32 [#allocation8], 4
      %s71 = int_to_ptr.vmem [resolvable:$true] %s70
      %76 = dma.hbm_to_vmem [thread:$0]  %s69, 2048, %s71, [#allocation9], 128, 128, 8
    $region17: #{tpu_custom_call.1} parent=1 // pred_fallthru
      _
    // Predicated region
    $region18: #{tpu_custom_call.1} parent=1 // pred_check
      _
    $region19: #{tpu_custom_call.1} parent=1 // pred_check_branch
      %78 = sbr.rel (0) target = $region21
    $region20: #{tpu_custom_call.1} parent=1 // pred_region
      %80 = vsyncadd [#allocation9], 0
      %s82 = sshll.u32 %s4, 4
      %s83 = int_to_ptr.hbm [resolvable:$true] %s82
      %s84 = sshll.u32 [#allocation10], 4
      %s85 = int_to_ptr.vmem [resolvable:$true] %s84
      %87 = dma.hbm_to_vmem [thread:$0]  %s83, 16, %s85, [#allocation9]
    $region21: #{tpu_custom_call.1} parent=1 // pred_fallthru
      _
    // Predicated region
    $region22: #{tpu_custom_call.1} parent=1 // pred_check
      _
    $region23: #{tpu_custom_call.1} parent=1 // pred_check_branch
      %89 = sbr.rel (0) target = $region25
    $region24: #{tpu_custom_call.1} parent=1 // pred_region
      %91 = vsyncadd [#allocation12], 0
      %s92 = sshll.u32 %s5, 4
      %s93 = int_to_ptr.hbm [resolvable:$true] %s92
      %s94 = sshll.u32 [#allocation11], 4
      %s95 = int_to_ptr.vmem [resolvable:$true] %s94
      %100 = dma.hbm_to_vmem [thread:$0]  %s93, 4096, %s95, [#allocation12], 256, 256, 16
    $region25: #{tpu_custom_call.1} parent=1 // pred_fallthru
      _
    // Predicated region
    $region26: #{tpu_custom_call.1} parent=1 // pred_check
      _
    $region27: #{tpu_custom_call.1} parent=1 // pred_check_branch
      %102 = sbr.rel (0) target = $region29
    $region28: #{tpu_custom_call.1} parent=1 // pred_region
      %104 = vsyncadd [#allocation12], 0
      %s106 = sshll.u32 %s6, 4
      %s107 = int_to_ptr.hbm [resolvable:$true] %s106
      %s108 = sshll.u32 [#allocation13], 4
      %s109 = int_to_ptr.vmem [resolvable:$true] %s108
      %111 = dma.hbm_to_vmem [thread:$0]  %s107, 32, %s109, [#allocation12]
    $region29: #{tpu_custom_call.1} parent=1 // pred_fallthru
      _
    // Predicated region
    $region30: #{tpu_custom_call.1} parent=1 // pred_check
      _
    $region31: #{tpu_custom_call.1} parent=1 // pred_check_branch
      %113 = sbr.rel (0) target = $region33
    $region32: #{tpu_custom_call.1} parent=1 // pred_region
      %115 = vsyncadd [#allocation15], 0
      %s116 = sshll.u32 %s7, 4
      %s117 = int_to_ptr.hbm [resolvable:$true] %s116
      %s118 = sshll.u32 [#allocation14], 4
      %s119 = int_to_ptr.vmem [resolvable:$true] %s118
      %124 = dma.hbm_to_vmem [thread:$0]  %s117, 16384, %s119, [#allocation15], 512, 512, 32
    $region33: #{tpu_custom_call.1} parent=1 // pred_fallthru
      _
    // Predicated region
    $region34: #{tpu_custom_call.1} parent=1 // pred_check
      _
    $region35: #{tpu_custom_call.1} parent=1 // pred_check_branch
      %126 = sbr.rel (0) target = $region37
    $region36: #{tpu_custom_call.1} parent=1 // pred_region
      %128 = vsyncadd [#allocation15], 0
      %s130 = sshll.u32 %s8, 4
      %s131 = int_to_ptr.hbm [resolvable:$true] %s130
      %s132 = sshll.u32 [#allocation16], 4
      %s133 = int_to_ptr.vmem [resolvable:$true] %s132
      %135 = dma.hbm_to_vmem [thread:$0]  %s131, 64, %s133, [#allocation15]
    $region37: #{tpu_custom_call.1} parent=1 // pred_fallthru
      _
    // Predicated region
    $region38: #{tpu_custom_call.1} parent=1 // pred_check
      _
    $region39: #{tpu_custom_call.1} parent=1 // pred_check_branch
      %137 = sbr.rel (0) target = $region41
    $region40: #{tpu_custom_call.1} parent=1 // pred_region
      %139 = vsyncadd [#allocation18], 0
      %s140 = sshll.u32 %s9, 4
      %s141 = int_to_ptr.hbm [resolvable:$true] %s140
      %s142 = sshll.u32 [#allocation17], 4
      %s143 = int_to_ptr.vmem [resolvable:$true] %s142
      %148 = dma.hbm_to_vmem [thread:$0]  %s141, 65536, %s143, [#allocation18], 1024, 1024, 64
    $region41: #{tpu_custom_call.1} parent=1 // pred_fallthru
      _
    // Predicated region
    $region42: #{tpu_custom_call.1} parent=1 // pred_check
      _
    $region43: #{tpu_custom_call.1} parent=1 // pred_check_branch
      %150 = sbr.rel (0) target = $region45
    $region44: #{tpu_custom_call.1} parent=1 // pred_region
      %152 = vsyncadd [#allocation18], 0
      %s154 = sshll.u32 %s10, 4
      %s155 = int_to_ptr.hbm [resolvable:$true] %s154
      %s156 = sshll.u32 [#allocation19], 4
      %s157 = int_to_ptr.vmem [resolvable:$true] %s156
      %159 = dma.hbm_to_vmem [thread:$0]  %s155, 128, %s157, [#allocation18]
    $region45: #{tpu_custom_call.1} parent=1 // pred_fallthru
      _
    // Predicated region
    $region46: #{tpu_custom_call.1} parent=1 // pred_check
      _
    $region47: #{tpu_custom_call.1} parent=1 // pred_check_branch
      %161 = sbr.rel (0) target = $region49
    $region48: #{tpu_custom_call.1} parent=1 // pred_region
      %163 = vsyncadd [#allocation21], 0
      %s164 = sshll.u32 %s11, 4
      %s165 = int_to_ptr.hbm [resolvable:$true] %s164
      %s166 = sshll.u32 [#allocation20], 4
      %s167 = int_to_ptr.vmem [resolvable:$true] %s166
      %172 = dma.hbm_to_vmem [thread:$0]  %s165, 131072, %s167, [#allocation21], 1024, 1024, 64
    $region49: #{tpu_custom_call.1} parent=1 // pred_fallthru
      _
    // Predicated region
    $region50: #{tpu_custom_call.1} parent=1 // pred_check
      _
    $region51: #{tpu_custom_call.1} parent=1 // pred_check_branch
      %174 = sbr.rel (0) target = $region53
    $region52: #{tpu_custom_call.1} parent=1 // pred_region
      %176 = vsyncadd [#allocation21], 0
      %s178 = sshll.u32 %s12, 4
      %s179 = int_to_ptr.hbm [resolvable:$true] %s178
      %s180 = sshll.u32 [#allocation22], 4
      %s181 = int_to_ptr.vmem [resolvable:$true] %s180
      %183 = dma.hbm_to_vmem [thread:$0]  %s179, 128, %s181, [#allocation21]
    $region53: #{tpu_custom_call.1} parent=1 // pred_fallthru
      _
    // Predicated region
    $region54: #{tpu_custom_call.1} parent=1 // pred_check
      _
    $region55: #{tpu_custom_call.1} parent=1 // pred_check_branch
      %185 = sbr.rel (0) target = $region57
    $region56: #{tpu_custom_call.1} parent=1 // pred_region
      %187 = vsyncadd [#allocation24], 0
      %s188 = sshll.u32 %s13, 4
      %s189 = int_to_ptr.hbm [resolvable:$true] %s188
      %s190 = sshll.u32 [#allocation23], 4
      %s191 = int_to_ptr.vmem [resolvable:$true] %s190
      %196 = dma.hbm_to_vmem [thread:$0]  %s189, 32768, %s191, [#allocation24], 256, 256, 16
    $region57: #{tpu_custom_call.1} parent=1 // pred_fallthru
      _
    // Predicated region
    $region58: #{tpu_custom_call.1} parent=1 // pred_check
      _
    $region59: #{tpu_custom_call.1} parent=1 // pred_check_branch
      %198 = sbr.rel (0) target = $region61
    $region60: #{tpu_custom_call.1} parent=1 // pred_region
      %200 = vsyncadd [#allocation24], 0
      %s202 = sshll.u32 %s14, 4
      %s203 = int_to_ptr.hbm [resolvable:$true] %s202
      %s204 = sshll.u32 [#allocation25], 4
      %s205 = int_to_ptr.vmem [resolvable:$true] %s204
      %207 = dma.hbm_to_vmem [thread:$0]  %s203, 32, %s205, [#allocation24]
    $region61: #{tpu_custom_call.1} parent=1 // pred_fallthru
      _
    // Predicated region
    $region62: #{tpu_custom_call.1} parent=1 // pred_check
      _
    $region63: #{tpu_custom_call.1} parent=1 // pred_check_branch
      %209 = sbr.rel (0) target = $region65
    $region64: #{tpu_custom_call.1} parent=1 // pred_region
      %211 = dma.done [#allocation3], 128
    $region65: #{tpu_custom_call.1} parent=1 // pred_fallthru
      _
    // Predicated region
    $region66: #{tpu_custom_call.1} parent=1 // pred_check
      _
    $region67: #{tpu_custom_call.1} parent=1 // pred_check_branch
      %213 = sbr.rel (0) target = $region69
    $region68: #{tpu_custom_call.1} parent=1 // pred_region
      %215 = dma.done [#allocation6], 2048
    $region69: #{tpu_custom_call.1} parent=1 // pred_fallthru
      _
    // Predicated region
    $region70: #{tpu_custom_call.1} parent=1 // pred_check
      _
    $region71: #{tpu_custom_call.1} parent=1 // pred_check_branch
      %217 = sbr.rel (0) target = $region73
    $region72: #{tpu_custom_call.1} parent=1 // pred_region
      %219 = dma.done [#allocation6], 16
    $region73: #{tpu_custom_call.1} parent=1 // pred_fallthru
      _
    // Predicated region
    $region74: #{tpu_custom_call.1} parent=1 // pred_check
      _
    $region75: #{tpu_custom_call.1} parent=1 // pred_check_branch
      %221 = sbr.rel (0) target = $region77
    $region76: #{tpu_custom_call.1} parent=1 // pred_region
      %223 = dma.done [#allocation9], 2048
    $region77: #{tpu_custom_call.1} parent=1 // pred_fallthru
      _
    // Predicated region
    $region78: #{tpu_custom_call.1} parent=1 // pred_check
      _
    $region79: #{tpu_custom_call.1} parent=1 // pred_check_branch
      %225 = sbr.rel (0) target = $region81
    $region80: #{tpu_custom_call.1} parent=1 // pred_region
      %227 = dma.done [#allocation9], 16
    $region81: #{tpu_custom_call.1} parent=1 // pred_fallthru
      _
    // Predicated region
    $region82: #{tpu_custom_call.1} parent=1 // pred_check
      _
    $region83: #{tpu_custom_call.1} parent=1 // pred_check_branch
      %229 = sbr.rel (0) target = $region85
    $region84: #{tpu_custom_call.1} parent=1 // pred_region
      %231 = dma.done [#allocation12], 4096
    $region85: #{tpu_custom_call.1} parent=1 // pred_fallthru
      _
    // Predicated region
    $region86: #{tpu_custom_call.1} parent=1 // pred_check
      _
    $region87: #{tpu_custom_call.1} parent=1 // pred_check_branch
      %233 = sbr.rel (0) target = $region89
    $region88: #{tpu_custom_call.1} parent=1 // pred_region
      %235 = dma.done [#allocation12], 32
    $region89: #{tpu_custom_call.1} parent=1 // pred_fallthru
      _
    // Predicated region
    $region90: #{tpu_custom_call.1} parent=1 // pred_check
      _
    $region91: #{tpu_custom_call.1} parent=1 // pred_check_branch
      %237 = sbr.rel (0) target = $region93
    $region92: #{tpu_custom_call.1} parent=1 // pred_region
      %239 = dma.done [#allocation15], 16384
    $region93: #{tpu_custom_call.1} parent=1 // pred_fallthru
      _
    // Predicated region
    $region94: #{tpu_custom_call.1} parent=1 // pred_check
      _
    $region95: #{tpu_custom_call.1} parent=1 // pred_check_branch
      %241 = sbr.rel (0) target = $region97
    $region96: #{tpu_custom_call.1} parent=1 // pred_region
      %243 = dma.done [#allocation15], 64
    $region97: #{tpu_custom_call.1} parent=1 // pred_fallthru
      _
    // Predicated region
    $region98: #{tpu_custom_call.1} parent=1 // pred_check
      _
    $region99: #{tpu_custom_call.1} parent=1 // pred_check_branch
      %245 = sbr.rel (0) target = $region101
    $region100: #{tpu_custom_call.1} parent=1 // pred_region
      %247 = dma.done [#allocation18], 65536
    $region101: #{tpu_custom_call.1} parent=1 // pred_fallthru
      _
    // Predicated region
    $region102: #{tpu_custom_call.1} parent=1 // pred_check
      _
    $region103: #{tpu_custom_call.1} parent=1 // pred_check_branch
      %249 = sbr.rel (0) target = $region105
    $region104: #{tpu_custom_call.1} parent=1 // pred_region
      %251 = dma.done [#allocation18], 128
    $region105: #{tpu_custom_call.1} parent=1 // pred_fallthru
      _
    // Predicated region
    $region106: #{tpu_custom_call.1} parent=1 // pred_check
      _
    $region107: #{tpu_custom_call.1} parent=1 // pred_check_branch
      %253 = sbr.rel (0) target = $region109
    $region108: #{tpu_custom_call.1} parent=1 // pred_region
      %255 = dma.done [#allocation21], 131072
    $region109: #{tpu_custom_call.1} parent=1 // pred_fallthru
      _
    // Predicated region
    $region110: #{tpu_custom_call.1} parent=1 // pred_check
      _
    $region111: #{tpu_custom_call.1} parent=1 // pred_check_branch
      %257 = sbr.rel (0) target = $region113
    $region112: #{tpu_custom_call.1} parent=1 // pred_region
      %259 = dma.done [#allocation21], 128
    $region113: #{tpu_custom_call.1} parent=1 // pred_fallthru
      _
    // Predicated region
    $region114: #{tpu_custom_call.1} parent=1 // pred_check
      _
    $region115: #{tpu_custom_call.1} parent=1 // pred_check_branch
      %261 = sbr.rel (0) target = $region117
    $region116: #{tpu_custom_call.1} parent=1 // pred_region
      %263 = dma.done [#allocation24], 32768
    $region117: #{tpu_custom_call.1} parent=1 // pred_fallthru
      _
    // Predicated region
    $region118: #{tpu_custom_call.1} parent=1 // pred_check
      _
    $region119: #{tpu_custom_call.1} parent=1 // pred_check_branch
      %265 = sbr.rel (0) target = $region121
    $region120: #{tpu_custom_call.1} parent=1 // pred_region
      %267 = dma.done [#allocation24], 32
    $region121: #{tpu_custom_call.1} parent=1 // pred_fallthru
      _
    %v268 = vld [vmem:[#allocation2] sm:$0xff]
    %v269 = vld [vmem:[#allocation5] sm:$0xff]
    %v270 = vld [vmem:[#allocation5 + $0x8] sm:$0xff]
    %v271 = vld [vmem:[#allocation5 + $0x10] sm:$0xff]
    %v272 = vld [vmem:[#allocation5 + $0x18] sm:$0xff]
    %v273 = vld [vmem:[#allocation5 + $0x20] sm:$0xff]
    %v274 = vld [vmem:[#allocation5 + $0x28] sm:$0xff]
    %v275 = vld [vmem:[#allocation5 + $0x30] sm:$0xff]
    %v276 = vld [vmem:[#allocation5 + $0x38] sm:$0xff]
    %v277 = vld [vmem:[#allocation5 + $0x40] sm:$0xff]
    %v278 = vld [vmem:[#allocation5 + $0x48] sm:$0xff]
    %v279 = vld [vmem:[#allocation5 + $0x50] sm:$0xff]
    %v280 = vld [vmem:[#allocation5 + $0x58] sm:$0xff]
    %v281 = vld [vmem:[#allocation5 + $0x60] sm:$0xff]
    %v282 = vld [vmem:[#allocation5 + $0x68] sm:$0xff]
    %v283 = vld [vmem:[#allocation5 + $0x70] sm:$0xff]
    %v284 = vld [vmem:[#allocation5 + $0x78] sm:$0xff]
    %v285 = vld [vmem:[#allocation7] sm:$0x1]
    %v287 = vperm.slane %v285, 0
    %289 = vmatpush.msra.mxu0 %v284
    %290 = vmatpush.msra.mxu0 %v283
    %291 = vmatpush.msra.mxu0 %v282
    %292 = vmatpush.msra.mxu0 %v281
    %293 = vmatpush.msra.mxu0 %v280
    %294 = vmatpush.msra.mxu0 %v279
    %295 = vmatpush.msra.mxu0 %v278
    %296 = vmatpush.msra.mxu0 %v277
    %297 = vmatpush.msra.mxu0 %v276
    %298 = vmatpush.msra.mxu0 %v275
    %299 = vmatpush.msra.mxu0 %v274
    %300 = vmatpush.msra.mxu0 %v273
    %301 = vmatpush.msra.mxu0 %v272
    %302 = vmatpush.msra.mxu0 %v271
    %303 = vmatpush.msra.mxu0 %v270
    %304 = vmatpush.msra.mxu0 %v269
    %305 = vmatmul.f32.gmra.mxu0 %v268
    %v306 = vpop.f32.mrf.mxu0
    %v307 = vadd.f32 %v287, %v306
    %308 = vdwg.mxu0
    %v309 = vmax.f32 %v307, 0.0
    %v310 = vld [vmem:[#allocation8] sm:$0xff]
    %v311 = vld [vmem:[#allocation8 + $0x8] sm:$0xff]
    %v312 = vld [vmem:[#allocation8 + $0x10] sm:$0xff]
    %v313 = vld [vmem:[#allocation8 + $0x18] sm:$0xff]
    %v314 = vld [vmem:[#allocation8 + $0x20] sm:$0xff]
    %v315 = vld [vmem:[#allocation8 + $0x28] sm:$0xff]
    %v316 = vld [vmem:[#allocation8 + $0x30] sm:$0xff]
    %v317 = vld [vmem:[#allocation8 + $0x38] sm:$0xff]
    %v318 = vld [vmem:[#allocation8 + $0x40] sm:$0xff]
    %v319 = vld [vmem:[#allocation8 + $0x48] sm:$0xff]
    %v320 = vld [vmem:[#allocation8 + $0x50] sm:$0xff]
    %v321 = vld [vmem:[#allocation8 + $0x58] sm:$0xff]
    %v322 = vld [vmem:[#allocation8 + $0x60] sm:$0xff]
    %v323 = vld [vmem:[#allocation8 + $0x68] sm:$0xff]
    %v324 = vld [vmem:[#allocation8 + $0x70] sm:$0xff]
    %v325 = vld [vmem:[#allocation8 + $0x78] sm:$0xff]
    %v326 = vld [vmem:[#allocation10] sm:$0x1]
    %v328 = vperm.slane %v326, 0
    %330 = vmatpush.msra.mxu0 %v325
    %331 = vmatpush.msra.mxu0 %v324
    %332 = vmatpush.msra.mxu0 %v323
    %333 = vmatpush.msra.mxu0 %v322
    %334 = vmatpush.msra.mxu0 %v321
    %335 = vmatpush.msra.mxu0 %v320
    %336 = vmatpush.msra.mxu0 %v319
    %337 = vmatpush.msra.mxu0 %v318
    %338 = vmatpush.msra.mxu0 %v317
    %339 = vmatpush.msra.mxu0 %v316
    %340 = vmatpush.msra.mxu0 %v315
    %341 = vmatpush.msra.mxu0 %v314
    %342 = vmatpush.msra.mxu0 %v313
    %343 = vmatpush.msra.mxu0 %v312
    %344 = vmatpush.msra.mxu0 %v311
    %345 = vmatpush.msra.mxu0 %v310
    %346 = vmatmul.f32.gmra.mxu0 %v309
    %v347 = vpop.f32.mrf.mxu0
    %v348 = vadd.f32 %v328, %v347
    %349 = vdwg.mxu0
    %v350 = vmax.f32 %v348, 0.0
    %v351 = vld [vmem:[#allocation11] sm:$0xff]
    %v352 = vld [vmem:[#allocation11 + $0x8] sm:$0xff]
    %v353 = vld [vmem:[#allocation11 + $0x10] sm:$0xff]
    %v354 = vld [vmem:[#allocation11 + $0x18] sm:$0xff]
    %v355 = vld [vmem:[#allocation11 + $0x20] sm:$0xff]
    %v356 = vld [vmem:[#allocation11 + $0x28] sm:$0xff]
    %v357 = vld [vmem:[#allocation11 + $0x30] sm:$0xff]
    %v358 = vld [vmem:[#allocation11 + $0x38] sm:$0xff]
    %v359 = vld [vmem:[#allocation11 + $0x40] sm:$0xff]
    %v360 = vld [vmem:[#allocation11 + $0x48] sm:$0xff]
    %v361 = vld [vmem:[#allocation11 + $0x50] sm:$0xff]
    %v362 = vld [vmem:[#allocation11 + $0x58] sm:$0xff]
    %v363 = vld [vmem:[#allocation11 + $0x60] sm:$0xff]
    %v364 = vld [vmem:[#allocation11 + $0x68] sm:$0xff]
    %v365 = vld [vmem:[#allocation11 + $0x70] sm:$0xff]
    %v366 = vld [vmem:[#allocation11 + $0x78] sm:$0xff]
    %v367 = vld [vmem:[#allocation11 + $0x80] sm:$0xff]
    %v368 = vld [vmem:[#allocation11 + $0x88] sm:$0xff]
    %v369 = vld [vmem:[#allocation11 + $0x90] sm:$0xff]
    %v370 = vld [vmem:[#allocation11 + $0x98] sm:$0xff]
    %v371 = vld [vmem:[#allocation11 + $0xa0] sm:$0xff]
    %v372 = vld [vmem:[#allocation11 + $0xa8] sm:$0xff]
    %v373 = vld [vmem:[#allocation11 + $0xb0] sm:$0xff]
    %v374 = vld [vmem:[#allocation11 + $0xb8] sm:$0xff]
    %v375 = vld [vmem:[#allocation11 + $0xc0] sm:$0xff]
    %v376 = vld [vmem:[#allocation11 + $0xc8] sm:$0xff]
    %v377 = vld [vmem:[#allocation11 + $0xd0] sm:$0xff]
    %v378 = vld [vmem:[#allocation11 + $0xd8] sm:$0xff]
    %v379 = vld [vmem:[#allocation11 + $0xe0] sm:$0xff]
    %v380 = vld [vmem:[#allocation11 + $0xe8] sm:$0xff]
    %v381 = vld [vmem:[#allocation11 + $0xf0] sm:$0xff]
    %v382 = vld [vmem:[#allocation11 + $0xf8] sm:$0xff]
    %v383 = vld [vmem:[#allocation13] sm:$0x3]
    %v385 = vperm.slane %v383, 0
    %v386 = vperm.slane %v383, 1
    %389 = vmatpush.msra.mxu0 %v381
    %390 = vmatpush.msra.mxu0 %v379
    %391 = vmatpush.msra.mxu0 %v377
    %392 = vmatpush.msra.mxu0 %v375
    %393 = vmatpush.msra.mxu0 %v373
    %394 = vmatpush.msra.mxu0 %v371
    %395 = vmatpush.msra.mxu0 %v369
    %396 = vmatpush.msra.mxu0 %v367
    %397 = vmatpush.msra.mxu0 %v365
    %398 = vmatpush.msra.mxu0 %v363
    %399 = vmatpush.msra.mxu0 %v361
    %400 = vmatpush.msra.mxu0 %v359
    %401 = vmatpush.msra.mxu0 %v357
    %402 = vmatpush.msra.mxu0 %v355
    %403 = vmatpush.msra.mxu0 %v353
    %404 = vmatpush.msra.mxu0 %v351
    %405 = vmatmul.f32.gmra.mxu0 %v350
    %v406 = vpop.f32.mrf.mxu0
    %v407 = vadd.f32 %v385, %v406
    %408 = vdwg.mxu0
    %409 = vmatpush.msra.mxu0 %v382
    %410 = vmatpush.msra.mxu0 %v380
    %411 = vmatpush.msra.mxu0 %v378
    %412 = vmatpush.msra.mxu0 %v376
    %413 = vmatpush.msra.mxu0 %v374
    %414 = vmatpush.msra.mxu0 %v372
    %415 = vmatpush.msra.mxu0 %v370
    %416 = vmatpush.msra.mxu0 %v368
    %417 = vmatpush.msra.mxu0 %v366
    %418 = vmatpush.msra.mxu0 %v364
    %419 = vmatpush.msra.mxu0 %v362
    %420 = vmatpush.msra.mxu0 %v360
    %421 = vmatpush.msra.mxu0 %v358
    %422 = vmatpush.msra.mxu0 %v356
    %423 = vmatpush.msra.mxu0 %v354
    %424 = vmatpush.msra.mxu0 %v352
    %425 = vmatmul.f32.gmra.mxu0 %v350
    %v426 = vpop.f32.mrf.mxu0
    %v427 = vadd.f32 %v386, %v426
    %428 = vdwg.mxu0
    %v429 = vmax.f32 %v407, 0.0
    %v430 = vmax.f32 %v427, 0.0
    %v431 = vld [vmem:[#allocation14] sm:$0xff]
    %v432 = vld [vmem:[#allocation14 + $0x8] sm:$0xff]
    %v433 = vld [vmem:[#allocation14 + $0x10] sm:$0xff]
    %v434 = vld [vmem:[#allocation14 + $0x18] sm:$0xff]
    %v435 = vld [vmem:[#allocation14 + $0x20] sm:$0xff]
    %v436 = vld [vmem:[#allocation14 + $0x28] sm:$0xff]
    %v437 = vld [vmem:[#allocation14 + $0x30] sm:$0xff]
    %v438 = vld [vmem:[#allocation14 + $0x38] sm:$0xff]
    %v439 = vld [vmem:[#allocation14 + $0x40] sm:$0xff]
    %v440 = vld [vmem:[#allocation14 + $0x48] sm:$0xff]
    %v441 = vld [vmem:[#allocation14 + $0x50] sm:$0xff]
    %v442 = vld [vmem:[#allocation14 + $0x58] sm:$0xff]
    %v443 = vld [vmem:[#allocation14 + $0x60] sm:$0xff]
    %v444 = vld [vmem:[#allocation14 + $0x68] sm:$0xff]
    %v445 = vld [vmem:[#allocation14 + $0x70] sm:$0xff]
    %v446 = vld [vmem:[#allocation14 + $0x78] sm:$0xff]
    %v447 = vld [vmem:[#allocation14 + $0x80] sm:$0xff]
    %v448 = vld [vmem:[#allocation14 + $0x88] sm:$0xff]
    %v449 = vld [vmem:[#allocation14 + $0x90] sm:$0xff]
    %v450 = vld [vmem:[#allocation14 + $0x98] sm:$0xff]
    %v451 = vld [vmem:[#allocation14 + $0xa0] sm:$0xff]
    %v452 = vld [vmem:[#allocation14 + $0xa8] sm:$0xff]
    %v453 = vld [vmem:[#allocation14 + $0xb0] sm:$0xff]
    %v454 = vld [vmem:[#allocation14 + $0xb8] sm:$0xff]
    %v455 = vld [vmem:[#allocation14 + $0xc0] sm:$0xff]
    %v456 = vld [vmem:[#allocation14 + $0xc8] sm:$0xff]
    %v457 = vld [vmem:[#allocation14 + $0xd0] sm:$0xff]
    %v458 = vld [vmem:[#allocation14 + $0xd8] sm:$0xff]
    %v459 = vld [vmem:[#allocation14 + $0xe0] sm:$0xff]
    %v460 = vld [vmem:[#allocation14 + $0xe8] sm:$0xff]
    %v461 = vld [vmem:[#allocation14 + $0xf0] sm:$0xff]
    %v462 = vld [vmem:[#allocation14 + $0xf8] sm:$0xff]
    %v463 = vld [vmem:[#allocation14 + $0x100] sm:$0xff]
    %v464 = vld [vmem:[#allocation14 + $0x108] sm:$0xff]
    %v465 = vld [vmem:[#allocation14 + $0x110] sm:$0xff]
    %v466 = vld [vmem:[#allocation14 + $0x118] sm:$0xff]
    %v467 = vld [vmem:[#allocation14 + $0x120] sm:$0xff]
    %v468 = vld [vmem:[#allocation14 + $0x128] sm:$0xff]
    %v469 = vld [vmem:[#allocation14 + $0x130] sm:$0xff]
    %v470 = vld [vmem:[#allocation14 + $0x138] sm:$0xff]
    %v471 = vld [vmem:[#allocation14 + $0x140] sm:$0xff]
    %v472 = vld [vmem:[#allocation14 + $0x148] sm:$0xff]
    %v473 = vld [vmem:[#allocation14 + $0x150] sm:$0xff]
    %v474 = vld [vmem:[#allocation14 + $0x158] sm:$0xff]
    %v475 = vld [vmem:[#allocation14 + $0x160] sm:$0xff]
    %v476 = vld [vmem:[#allocation14 + $0x168] sm:$0xff]
    %v477 = vld [vmem:[#allocation14 + $0x170] sm:$0xff]
    %v478 = vld [vmem:[#allocation14 + $0x178] sm:$0xff]
    %v479 = vld [vmem:[#allocation14 + $0x180] sm:$0xff]
    %v480 = vld [vmem:[#allocation14 + $0x188] sm:$0xff]
    %v481 = vld [vmem:[#allocation14 + $0x190] sm:$0xff]
    %v482 = vld [vmem:[#allocation14 + $0x198] sm:$0xff]
    %v483 = vld [vmem:[#allocation14 + $0x1a0] sm:$0xff]
    %v484 = vld [vmem:[#allocation14 + $0x1a8] sm:$0xff]
    %v485 = vld [vmem:[#allocation14 + $0x1b0] sm:$0xff]
    %v486 = vld [vmem:[#allocation14 + $0x1b8] sm:$0xff]
    %v487 = vld [vmem:[#allocation14 + $0x1c0] sm:$0xff]
    %v488 = vld [vmem:[#allocation14 + $0x1c8] sm:$0xff]
    %v489 = vld [vmem:[#allocation14 + $0x1d0] sm:$0xff]
    %v490 = vld [vmem:[#allocation14 + $0x1d8] sm:$0xff]
    %v491 = vld [vmem:[#allocation14 + $0x1e0] sm:$0xff]
    %v492 = vld [vmem:[#allocation14 + $0x1e8] sm:$0xff]
    %v493 = vld [vmem:[#allocation14 + $0x1f0] sm:$0xff]
    %v494 = vld [vmem:[#allocation14 + $0x1f8] sm:$0xff]
    %v495 = vld [vmem:[#allocation14 + $0x200] sm:$0xff]
    %v496 = vld [vmem:[#allocation14 + $0x208] sm:$0xff]
    %v497 = vld [vmem:[#allocation14 + $0x210] sm:$0xff]
    %v498 = vld [vmem:[#allocation14 + $0x218] sm:$0xff]
    %v499 = vld [vmem:[#allocation14 + $0x220] sm:$0xff]
    %v500 = vld [vmem:[#allocation14 + $0x228] sm:$0xff]
    %v501 = vld [vmem:[#allocation14 + $0x230] sm:$0xff]
    %v502 = vld [vmem:[#allocation14 + $0x238] sm:$0xff]
    %v503 = vld [vmem:[#allocation14 + $0x240] sm:$0xff]
    %v504 = vld [vmem:[#allocation14 + $0x248] sm:$0xff]
    %v505 = vld [vmem:[#allocation14 + $0x250] sm:$0xff]
    %v506 = vld [vmem:[#allocation14 + $0x258] sm:$0xff]
    %v507 = vld [vmem:[#allocation14 + $0x260] sm:$0xff]
    %v508 = vld [vmem:[#allocation14 + $0x268] sm:$0xff]
    %v509 = vld [vmem:[#allocation14 + $0x270] sm:$0xff]
    %v510 = vld [vmem:[#allocation14 + $0x278] sm:$0xff]
    %v511 = vld [vmem:[#allocation14 + $0x280] sm:$0xff]
    %v512 = vld [vmem:[#allocation14 + $0x288] sm:$0xff]
    %v513 = vld [vmem:[#allocation14 + $0x290] sm:$0xff]
    %v514 = vld [vmem:[#allocation14 + $0x298] sm:$0xff]
    %v515 = vld [vmem:[#allocation14 + $0x2a0] sm:$0xff]
    %v516 = vld [vmem:[#allocation14 + $0x2a8] sm:$0xff]
    %v517 = vld [vmem:[#allocation14 + $0x2b0] sm:$0xff]
    %v518 = vld [vmem:[#allocation14 + $0x2b8] sm:$0xff]
    %v519 = vld [vmem:[#allocation14 + $0x2c0] sm:$0xff]
    %v520 = vld [vmem:[#allocation14 + $0x2c8] sm:$0xff]
    %v521 = vld [vmem:[#allocation14 + $0x2d0] sm:$0xff]
    %v522 = vld [vmem:[#allocation14 + $0x2d8] sm:$0xff]
    %v523 = vld [vmem:[#allocation14 + $0x2e0] sm:$0xff]
    %v524 = vld [vmem:[#allocation14 + $0x2e8] sm:$0xff]
    %v525 = vld [vmem:[#allocation14 + $0x2f0] sm:$0xff]
    %v526 = vld [vmem:[#allocation14 + $0x2f8] sm:$0xff]
    %v527 = vld [vmem:[#allocation14 + $0x300] sm:$0xff]
    %v528 = vld [vmem:[#allocation14 + $0x308] sm:$0xff]
    %v529 = vld [vmem:[#allocation14 + $0x310] sm:$0xff]
    %v530 = vld [vmem:[#allocation14 + $0x318] sm:$0xff]
    %v531 = vld [vmem:[#allocation14 + $0x320] sm:$0xff]
    %v532 = vld [vmem:[#allocation14 + $0x328] sm:$0xff]
    %v533 = vld [vmem:[#allocation14 + $0x330] sm:$0xff]
    %v534 = vld [vmem:[#allocation14 + $0x338] sm:$0xff]
    %v535 = vld [vmem:[#allocation14 + $0x340] sm:$0xff]
    %v536 = vld [vmem:[#allocation14 + $0x348] sm:$0xff]
    %v537 = vld [vmem:[#allocation14 + $0x350] sm:$0xff]
    %v538 = vld [vmem:[#allocation14 + $0x358] sm:$0xff]
    %v539 = vld [vmem:[#allocation14 + $0x360] sm:$0xff]
    %v540 = vld [vmem:[#allocation14 + $0x368] sm:$0xff]
    %v541 = vld [vmem:[#allocation14 + $0x370] sm:$0xff]
    %v542 = vld [vmem:[#allocation14 + $0x378] sm:$0xff]
    %v543 = vld [vmem:[#allocation14 + $0x380] sm:$0xff]
    %v544 = vld [vmem:[#allocation14 + $0x388] sm:$0xff]
    %v545 = vld [vmem:[#allocation14 + $0x390] sm:$0xff]
    %v546 = vld [vmem:[#allocation14 + $0x398] sm:$0xff]
    %v547 = vld [vmem:[#allocation14 + $0x3a0] sm:$0xff]
    %v548 = vld [vmem:[#allocation14 + $0x3a8] sm:$0xff]
    %v549 = vld [vmem:[#allocation14 + $0x3b0] sm:$0xff]
    %v550 = vld [vmem:[#allocation14 + $0x3b8] sm:$0xff]
    %v551 = vld [vmem:[#allocation14 + $0x3c0] sm:$0xff]
    %v552 = vld [vmem:[#allocation14 + $0x3c8] sm:$0xff]
    %v553 = vld [vmem:[#allocation14 + $0x3d0] sm:$0xff]
    %v554 = vld [vmem:[#allocation14 + $0x3d8] sm:$0xff]
    %v555 = vld [vmem:[#allocation14 + $0x3e0] sm:$0xff]
    %v556 = vld [vmem:[#allocation14 + $0x3e8] sm:$0xff]
    %v557 = vld [vmem:[#allocation14 + $0x3f0] sm:$0xff]
    %v558 = vld [vmem:[#allocation14 + $0x3f8] sm:$0xff]
    %v559 = vld [vmem:[#allocation16] sm:$0xf]
    %v561 = vperm.slane %v559, 0
    %v562 = vperm.slane %v559, 1
    %v563 = vperm.slane %v559, 2
    %v564 = vperm.slane %v559, 3
    %569 = vmatpush.msra.mxu0 %v491
    %570 = vmatpush.msra.mxu0 %v487
    %571 = vmatpush.msra.mxu0 %v483
    %572 = vmatpush.msra.mxu0 %v479
    %573 = vmatpush.msra.mxu0 %v475
    %574 = vmatpush.msra.mxu0 %v471
    %575 = vmatpush.msra.mxu0 %v467
    %576 = vmatpush.msra.mxu0 %v463
    %577 = vmatpush.msra.mxu0 %v459
    %578 = vmatpush.msra.mxu0 %v455
    %579 = vmatpush.msra.mxu0 %v451
    %580 = vmatpush.msra.mxu0 %v447
    %581 = vmatpush.msra.mxu0 %v443
    %582 = vmatpush.msra.mxu0 %v439
    %583 = vmatpush.msra.mxu0 %v435
    %584 = vmatpush.msra.mxu0 %v431
    %585 = vmatmul.f32.gmra.mxu0 %v429
    %v586 = vpop.f32.mrf.mxu0
    %v587 = vadd.f32 %v561, %v586
    %588 = vdwg.mxu0
    %589 = vmatpush.msra.mxu0 %v555
    %590 = vmatpush.msra.mxu0 %v551
    %591 = vmatpush.msra.mxu0 %v547
    %592 = vmatpush.msra.mxu0 %v543
    %593 = vmatpush.msra.mxu0 %v539
    %594 = vmatpush.msra.mxu0 %v535
    %595 = vmatpush.msra.mxu0 %v531
    %596 = vmatpush.msra.mxu0 %v527
    %597 = vmatpush.msra.mxu0 %v523
    %598 = vmatpush.msra.mxu0 %v519
    %599 = vmatpush.msra.mxu0 %v515
    %600 = vmatpush.msra.mxu0 %v511
    %601 = vmatpush.msra.mxu0 %v507
    %602 = vmatpush.msra.mxu0 %v503
    %603 = vmatpush.msra.mxu0 %v499
    %604 = vmatpush.msra.mxu0 %v495
    %605 = vmatmul.f32.gmra.mxu0 %v430
    %v606 = vpop.f32.mrf.mxu0
    %v607 = vadd.f32 %v587, %v606
    %608 = vdwg.mxu0
    %609 = vmatpush.msra.mxu0 %v492
    %610 = vmatpush.msra.mxu0 %v488
    %611 = vmatpush.msra.mxu0 %v484
    %612 = vmatpush.msra.mxu0 %v480
    %613 = vmatpush.msra.mxu0 %v476
    %614 = vmatpush.msra.mxu0 %v472
    %615 = vmatpush.msra.mxu0 %v468
    %616 = vmatpush.msra.mxu0 %v464
    %617 = vmatpush.msra.mxu0 %v460
    %618 = vmatpush.msra.mxu0 %v456
    %619 = vmatpush.msra.mxu0 %v452
    %620 = vmatpush.msra.mxu0 %v448
    %621 = vmatpush.msra.mxu0 %v444
    %622 = vmatpush.msra.mxu0 %v440
    %623 = vmatpush.msra.mxu0 %v436
    %624 = vmatpush.msra.mxu0 %v432
    %625 = vmatmul.f32.gmra.mxu0 %v429
    %v626 = vpop.f32.mrf.mxu0
    %v627 = vadd.f32 %v562, %v626
    %628 = vdwg.mxu0
    %629 = vmatpush.msra.mxu0 %v556
    %630 = vmatpush.msra.mxu0 %v552
    %631 = vmatpush.msra.mxu0 %v548
    %632 = vmatpush.msra.mxu0 %v544
    %633 = vmatpush.msra.mxu0 %v540
    %634 = vmatpush.msra.mxu0 %v536
    %635 = vmatpush.msra.mxu0 %v532
    %636 = vmatpush.msra.mxu0 %v528
    %637 = vmatpush.msra.mxu0 %v524
    %638 = vmatpush.msra.mxu0 %v520
    %639 = vmatpush.msra.mxu0 %v516
    %640 = vmatpush.msra.mxu0 %v512
    %641 = vmatpush.msra.mxu0 %v508
    %642 = vmatpush.msra.mxu0 %v504
    %643 = vmatpush.msra.mxu0 %v500
    %644 = vmatpush.msra.mxu0 %v496
    %645 = vmatmul.f32.gmra.mxu0 %v430
    %v646 = vpop.f32.mrf.mxu0
    %v647 = vadd.f32 %v627, %v646
    %648 = vdwg.mxu0
    %649 = vmatpush.msra.mxu0 %v493
    %650 = vmatpush.msra.mxu0 %v489
    %651 = vmatpush.msra.mxu0 %v485
    %652 = vmatpush.msra.mxu0 %v481
    %653 = vmatpush.msra.mxu0 %v477
    %654 = vmatpush.msra.mxu0 %v473
    %655 = vmatpush.msra.mxu0 %v469
    %656 = vmatpush.msra.mxu0 %v465
    %657 = vmatpush.msra.mxu0 %v461
    %658 = vmatpush.msra.mxu0 %v457
    %659 = vmatpush.msra.mxu0 %v453
    %660 = vmatpush.msra.mxu0 %v449
    %661 = vmatpush.msra.mxu0 %v445
    %662 = vmatpush.msra.mxu0 %v441
    %663 = vmatpush.msra.mxu0 %v437
    %664 = vmatpush.msra.mxu0 %v433
    %665 = vmatmul.f32.gmra.mxu0 %v429
    %v666 = vpop.f32.mrf.mxu0
    %v667 = vadd.f32 %v563, %v666
    %668 = vdwg.mxu0
    %669 = vmatpush.msra.mxu0 %v557
    %670 = vmatpush.msra.mxu0 %v553
    %671 = vmatpush.msra.mxu0 %v549
    %672 = vmatpush.msra.mxu0 %v545
    %673 = vmatpush.msra.mxu0 %v541
    %674 = vmatpush.msra.mxu0 %v537
    %675 = vmatpush.msra.mxu0 %v533
    %676 = vmatpush.msra.mxu0 %v529
    %677 = vmatpush.msra.mxu0 %v525
    %678 = vmatpush.msra.mxu0 %v521
    %679 = vmatpush.msra.mxu0 %v517
    %680 = vmatpush.msra.mxu0 %v513
    %681 = vmatpush.msra.mxu0 %v509
    %682 = vmatpush.msra.mxu0 %v505
    %683 = vmatpush.msra.mxu0 %v501
    %684 = vmatpush.msra.mxu0 %v497
    %685 = vmatmul.f32.gmra.mxu0 %v430
    %v686 = vpop.f32.mrf.mxu0
    %v687 = vadd.f32 %v667, %v686
    %688 = vdwg.mxu0
    %689 = vmatpush.msra.mxu0 %v494
    %690 = vmatpush.msra.mxu0 %v490
    %691 = vmatpush.msra.mxu0 %v486
    %692 = vmatpush.msra.mxu0 %v482
    %693 = vmatpush.msra.mxu0 %v478
    %694 = vmatpush.msra.mxu0 %v474
    %695 = vmatpush.msra.mxu0 %v470
    %696 = vmatpush.msra.mxu0 %v466
    %697 = vmatpush.msra.mxu0 %v462
    %698 = vmatpush.msra.mxu0 %v458
    %699 = vmatpush.msra.mxu0 %v454
    %700 = vmatpush.msra.mxu0 %v450
    %701 = vmatpush.msra.mxu0 %v446
    %702 = vmatpush.msra.mxu0 %v442
    %703 = vmatpush.msra.mxu0 %v438
    %704 = vmatpush.msra.mxu0 %v434
    %705 = vmatmul.f32.gmra.mxu0 %v429
    %v706 = vpop.f32.mrf.mxu0
    %v707 = vadd.f32 %v564, %v706
    %708 = vdwg.mxu0
    %709 = vmatpush.msra.mxu0 %v558
    %710 = vmatpush.msra.mxu0 %v554
    %711 = vmatpush.msra.mxu0 %v550
    %712 = vmatpush.msra.mxu0 %v546
    %713 = vmatpush.msra.mxu0 %v542
    %714 = vmatpush.msra.mxu0 %v538
    %715 = vmatpush.msra.mxu0 %v534
    %716 = vmatpush.msra.mxu0 %v530
    %717 = vmatpush.msra.mxu0 %v526
    %718 = vmatpush.msra.mxu0 %v522
    %719 = vmatpush.msra.mxu0 %v518
    %720 = vmatpush.msra.mxu0 %v514
    %721 = vmatpush.msra.mxu0 %v510
    %722 = vmatpush.msra.mxu0 %v506
    %723 = vmatpush.msra.mxu0 %v502
    %724 = vmatpush.msra.mxu0 %v498
    %725 = vmatmul.f32.gmra.mxu0 %v430
    %v726 = vpop.f32.mrf.mxu0
    %v727 = vadd.f32 %v707, %v726
    %728 = vdwg.mxu0
    %v729 = vmax.f32 %v607, 0.0
    %v730 = vmax.f32 %v647, 0.0
    %v731 = vmax.f32 %v687, 0.0
    %v732 = vmax.f32 %v727, 0.0
    %v733 = vld [vmem:[#allocation17] sm:$0xff]
    %v734 = vld [vmem:[#allocation17 + $0x8] sm:$0xff]
    %v735 = vld [vmem:[#allocation17 + $0x10] sm:$0xff]
    %v736 = vld [vmem:[#allocation17 + $0x18] sm:$0xff]
    %v737 = vld [vmem:[#allocation17 + $0x20] sm:$0xff]
    %v738 = vld [vmem:[#allocation17 + $0x28] sm:$0xff]
    %v739 = vld [vmem:[#allocation17 + $0x30] sm:$0xff]
    %v740 = vld [vmem:[#allocation17 + $0x38] sm:$0xff]
    %v741 = vld [vmem:[#allocation17 + $0x40] sm:$0xff]
    %v742 = vld [vmem:[#allocation17 + $0x48] sm:$0xff]
    %v743 = vld [vmem:[#allocation17 + $0x50] sm:$0xff]
    %v744 = vld [vmem:[#allocation17 + $0x58] sm:$0xff]
    %v745 = vld [vmem:[#allocation17 + $0x60] sm:$0xff]
    %v746 = vld [vmem:[#allocation17 + $0x68] sm:$0xff]
    %v747 = vld [vmem:[#allocation17 + $0x70] sm:$0xff]
    %v748 = vld [vmem:[#allocation17 + $0x78] sm:$0xff]
    %v749 = vld [vmem:[#allocation17 + $0x80] sm:$0xff]
    %v750 = vld [vmem:[#allocation17 + $0x88] sm:$0xff]
    %v751 = vld [vmem:[#allocation17 + $0x90] sm:$0xff]
    %v752 = vld [vmem:[#allocation17 + $0x98] sm:$0xff]
    %v753 = vld [vmem:[#allocation17 + $0xa0] sm:$0xff]
    %v754 = vld [vmem:[#allocation17 + $0xa8] sm:$0xff]
    %v755 = vld [vmem:[#allocation17 + $0xb0] sm:$0xff]
    %v756 = vld [vmem:[#allocation17 + $0xb8] sm:$0xff]
    %v757 = vld [vmem:[#allocation17 + $0xc0] sm:$0xff]
    %v758 = vld [vmem:[#allocation17 + $0xc8] sm:$0xff]
    %v759 = vld [vmem:[#allocation17 + $0xd0] sm:$0xff]
    %v760 = vld [vmem:[#allocation17 + $0xd8] sm:$0xff]
    %v761 = vld [vmem:[#allocation17 + $0xe0] sm:$0xff]
    %v762 = vld [vmem:[#allocation17 + $0xe8] sm:$0xff]
    %v763 = vld [vmem:[#allocation17 + $0xf0] sm:$0xff]
    %v764 = vld [vmem:[#allocation17 + $0xf8] sm:$0xff]
    %v765 = vld [vmem:[#allocation17 + $0x100] sm:$0xff]
    %v766 = vld [vmem:[#allocation17 + $0x108] sm:$0xff]
    %v767 = vld [vmem:[#allocation17 + $0x110] sm:$0xff]
    %v768 = vld [vmem:[#allocation17 + $0x118] sm:$0xff]
    %v769 = vld [vmem:[#allocation17 + $0x120] sm:$0xff]
    %v770 = vld [vmem:[#allocation17 + $0x128] sm:$0xff]
    %v771 = vld [vmem:[#allocation17 + $0x130] sm:$0xff]
    %v772 = vld [vmem:[#allocation17 + $0x138] sm:$0xff]
    %v773 = vld [vmem:[#allocation17 + $0x140] sm:$0xff]
    %v774 = vld [vmem:[#allocation17 + $0x148] sm:$0xff]
    %v775 = vld [vmem:[#allocation17 + $0x150] sm:$0xff]
    %v776 = vld [vmem:[#allocation17 + $0x158] sm:$0xff]
    %v777 = vld [vmem:[#allocation17 + $0x160] sm:$0xff]
    %v778 = vld [vmem:[#allocation17 + $0x168] sm:$0xff]
    %v779 = vld [vmem:[#allocation17 + $0x170] sm:$0xff]
    %v780 = vld [vmem:[#allocation17 + $0x178] sm:$0xff]
    %v781 = vld [vmem:[#allocation17 + $0x180] sm:$0xff]
    %v782 = vld [vmem:[#allocation17 + $0x188] sm:$0xff]
    %v783 = vld [vmem:[#allocation17 + $0x190] sm:$0xff]
    %v784 = vld [vmem:[#allocation17 + $0x198] sm:$0xff]
    %v785 = vld [vmem:[#allocation17 + $0x1a0] sm:$0xff]
    %v786 = vld [vmem:[#allocation17 + $0x1a8] sm:$0xff]
    %v787 = vld [vmem:[#allocation17 + $0x1b0] sm:$0xff]
    %v788 = vld [vmem:[#allocation17 + $0x1b8] sm:$0xff]
    %v789 = vld [vmem:[#allocation17 + $0x1c0] sm:$0xff]
    %v790 = vld [vmem:[#allocation17 + $0x1c8] sm:$0xff]
    %v791 = vld [vmem:[#allocation17 + $0x1d0] sm:$0xff]
    %v792 = vld [vmem:[#allocation17 + $0x1d8] sm:$0xff]
    %v793 = vld [vmem:[#allocation17 + $0x1e0] sm:$0xff]
    %v794 = vld [vmem:[#allocation17 + $0x1e8] sm:$0xff]
    %v795 = vld [vmem:[#allocation17 + $0x1f0] sm:$0xff]
    %v796 = vld [vmem:[#allocation17 + $0x1f8] sm:$0xff]
    %v797 = vld [vmem:[#allocation17 + $0x200] sm:$0xff]
    %v798 = vld [vmem:[#allocation17 + $0x208] sm:$0xff]
    %v799 = vld [vmem:[#allocation17 + $0x210] sm:$0xff]
    %v800 = vld [vmem:[#allocation17 + $0x218] sm:$0xff]
    %v801 = vld [vmem:[#allocation17 + $0x220] sm:$0xff]
    %v802 = vld [vmem:[#allocation17 + $0x228] sm:$0xff]
    %v803 = vld [vmem:[#allocation17 + $0x230] sm:$0xff]
    %v804 = vld [vmem:[#allocation17 + $0x238] sm:$0xff]
    %v805 = vld [vmem:[#allocation17 + $0x240] sm:$0xff]
    %v806 = vld [vmem:[#allocation17 + $0x248] sm:$0xff]
    %v807 = vld [vmem:[#allocation17 + $0x250] sm:$0xff]
    %v808 = vld [vmem:[#allocation17 + $0x258] sm:$0xff]
    %v809 = vld [vmem:[#allocation17 + $0x260] sm:$0xff]
    %v810 = vld [vmem:[#allocation17 + $0x268] sm:$0xff]
    %v811 = vld [vmem:[#allocation17 + $0x270] sm:$0xff]
    %v812 = vld [vmem:[#allocation17 + $0x278] sm:$0xff]
    %v813 = vld [vmem:[#allocation17 + $0x280] sm:$0xff]
    %v814 = vld [vmem:[#allocation17 + $0x288] sm:$0xff]
    %v815 = vld [vmem:[#allocation17 + $0x290] sm:$0xff]
    %v816 = vld [vmem:[#allocation17 + $0x298] sm:$0xff]
    %v817 = vld [vmem:[#allocation17 + $0x2a0] sm:$0xff]
    %v818 = vld [vmem:[#allocation17 + $0x2a8] sm:$0xff]
    %v819 = vld [vmem:[#allocation17 + $0x2b0] sm:$0xff]
    %v820 = vld [vmem:[#allocation17 + $0x2b8] sm:$0xff]
    %v821 = vld [vmem:[#allocation17 + $0x2c0] sm:$0xff]
    %v822 = vld [vmem:[#allocation17 + $0x2c8] sm:$0xff]
    %v823 = vld [vmem:[#allocation17 + $0x2d0] sm:$0xff]
    %v824 = vld [vmem:[#allocation17 + $0x2d8] sm:$0xff]
    %v825 = vld [vmem:[#allocation17 + $0x2e0] sm:$0xff]
    %v826 = vld [vmem:[#allocation17 + $0x2e8] sm:$0xff]
    %v827 = vld [vmem:[#allocation17 + $0x2f0] sm:$0xff]
    %v828 = vld [vmem:[#allocation17 + $0x2f8] sm:$0xff]
    %v829 = vld [vmem:[#allocation17 + $0x300] sm:$0xff]
    %v830 = vld [vmem:[#allocation17 + $0x308] sm:$0xff]
    %v831 = vld [vmem:[#allocation17 + $0x310] sm:$0xff]
    %v832 = vld [vmem:[#allocation17 + $0x318] sm:$0xff]
    %v833 = vld [vmem:[#allocation17 + $0x320] sm:$0xff]
    %v834 = vld [vmem:[#allocation17 + $0x328] sm:$0xff]
    %v835 = vld [vmem:[#allocation17 + $0x330] sm:$0xff]
    %v836 = vld [vmem:[#allocation17 + $0x338] sm:$0xff]
    %v837 = vld [vmem:[#allocation17 + $0x340] sm:$0xff]
    %v838 = vld [vmem:[#allocation17 + $0x348] sm:$0xff]
    %v839 = vld [vmem:[#allocation17 + $0x350] sm:$0xff]
    %v840 = vld [vmem:[#allocation17 + $0x358] sm:$0xff]
    %v841 = vld [vmem:[#allocation17 + $0x360] sm:$0xff]
    %v842 = vld [vmem:[#allocation17 + $0x368] sm:$0xff]
    %v843 = vld [vmem:[#allocation17 + $0x370] sm:$0xff]
    %v844 = vld [vmem:[#allocation17 + $0x378] sm:$0xff]
    %v845 = vld [vmem:[#allocation17 + $0x380] sm:$0xff]
    %v846 = vld [vmem:[#allocation17 + $0x388] sm:$0xff]
    %v847 = vld [vmem:[#allocation17 + $0x390] sm:$0xff]
    %v848 = vld [vmem:[#allocation17 + $0x398] sm:$0xff]
    %v849 = vld [vmem:[#allocation17 + $0x3a0] sm:$0xff]
    %v850 = vld [vmem:[#allocation17 + $0x3a8] sm:$0xff]
    %v851 = vld [vmem:[#allocation17 + $0x3b0] sm:$0xff]
    %v852 = vld [vmem:[#allocation17 + $0x3b8] sm:$0xff]
    %v853 = vld [vmem:[#allocation17 + $0x3c0] sm:$0xff]
    %v854 = vld [vmem:[#allocation17 + $0x3c8] sm:$0xff]
    %v855 = vld [vmem:[#allocation17 + $0x3d0] sm:$0xff]
    %v856 = vld [vmem:[#allocation17 + $0x3d8] sm:$0xff]
    %v857 = vld [vmem:[#allocation17 + $0x3e0] sm:$0xff]
    %v858 = vld [vmem:[#allocation17 + $0x3e8] sm:$0xff]
    %v859 = vld [vmem:[#allocation17 + $0x3f0] sm:$0xff]
    %v860 = vld [vmem:[#allocation17 + $0x3f8] sm:$0xff]
    %v861 = vld [vmem:[#allocation17 + $0x400] sm:$0xff]
    %v862 = vld [vmem:[#allocation17 + $0x408] sm:$0xff]
    %v863 = vld [vmem:[#allocation17 + $0x410] sm:$0xff]
    %v864 = vld [vmem:[#allocation17 + $0x418] sm:$0xff]
    %v865 = vld [vmem:[#allocation17 + $0x420] sm:$0xff]
    %v866 = vld [vmem:[#allocation17 + $0x428] sm:$0xff]
    %v867 = vld [vmem:[#allocation17 + $0x430] sm:$0xff]
    %v868 = vld [vmem:[#allocation17 + $0x438] sm:$0xff]
    %v869 = vld [vmem:[#allocation17 + $0x440] sm:$0xff]
    %v870 = vld [vmem:[#allocation17 + $0x448] sm:$0xff]
    %v871 = vld [vmem:[#allocation17 + $0x450] sm:$0xff]
    %v872 = vld [vmem:[#allocation17 + $0x458] sm:$0xff]
    %v873 = vld [vmem:[#allocation17 + $0x460] sm:$0xff]
    %v874 = vld [vmem:[#allocation17 + $0x468] sm:$0xff]
    %v875 = vld [vmem:[#allocation17 + $0x470] sm:$0xff]
    %v876 = vld [vmem:[#allocation17 + $0x478] sm:$0xff]
    %v877 = vld [vmem:[#allocation17 + $0x480] sm:$0xff]
    %v878 = vld [vmem:[#allocation17 + $0x488] sm:$0xff]
    %v879 = vld [vmem:[#allocation17 + $0x490] sm:$0xff]
    %v880 = vld [vmem:[#allocation17 + $0x498] sm:$0xff]
    %v881 = vld [vmem:[#allocation17 + $0x4a0] sm:$0xff]
    %v882 = vld [vmem:[#allocation17 + $0x4a8] sm:$0xff]
    %v883 = vld [vmem:[#allocation17 + $0x4b0] sm:$0xff]
    %v884 = vld [vmem:[#allocation17 + $0x4b8] sm:$0xff]
    %v885 = vld [vmem:[#allocation17 + $0x4c0] sm:$0xff]
    %v886 = vld [vmem:[#allocation17 + $0x4c8] sm:$0xff]
    %v887 = vld [vmem:[#allocation17 + $0x4d0] sm:$0xff]
    %v888 = vld [vmem:[#allocation17 + $0x4d8] sm:$0xff]
    %v889 = vld [vmem:[#allocation17 + $0x4e0] sm:$0xff]
    %v890 = vld [vmem:[#allocation17 + $0x4e8] sm:$0xff]
    %v891 = vld [vmem:[#allocation17 + $0x4f0] sm:$0xff]
    %v892 = vld [vmem:[#allocation17 + $0x4f8] sm:$0xff]
    %v893 = vld [vmem:[#allocation17 + $0x500] sm:$0xff]
    %v894 = vld [vmem:[#allocation17 + $0x508] sm:$0xff]
    %v895 = vld [vmem:[#allocation17 + $0x510] sm:$0xff]
    %v896 = vld [vmem:[#allocation17 + $0x518] sm:$0xff]
    %v897 = vld [vmem:[#allocation17 + $0x520] sm:$0xff]
    %v898 = vld [vmem:[#allocation17 + $0x528] sm:$0xff]
    %v899 = vld [vmem:[#allocation17 + $0x530] sm:$0xff]
    %v900 = vld [vmem:[#allocation17 + $0x538] sm:$0xff]
    %v901 = vld [vmem:[#allocation17 + $0x540] sm:$0xff]
    %v902 = vld [vmem:[#allocation17 + $0x548] sm:$0xff]
    %v903 = vld [vmem:[#allocation17 + $0x550] sm:$0xff]
    %v904 = vld [vmem:[#allocation17 + $0x558] sm:$0xff]
    %v905 = vld [vmem:[#allocation17 + $0x560] sm:$0xff]
    %v906 = vld [vmem:[#allocation17 + $0x568] sm:$0xff]
    %v907 = vld [vmem:[#allocation17 + $0x570] sm:$0xff]
    %v908 = vld [vmem:[#allocation17 + $0x578] sm:$0xff]
    %v909 = vld [vmem:[#allocation17 + $0x580] sm:$0xff]
    %v910 = vld [vmem:[#allocation17 + $0x588] sm:$0xff]
    %v911 = vld [vmem:[#allocation17 + $0x590] sm:$0xff]
    %v912 = vld [vmem:[#allocation17 + $0x598] sm:$0xff]
    %v913 = vld [vmem:[#allocation17 + $0x5a0] sm:$0xff]
    %v914 = vld [vmem:[#allocation17 + $0x5a8] sm:$0xff]
    %v915 = vld [vmem:[#allocation17 + $0x5b0] sm:$0xff]
    %v916 = vld [vmem:[#allocation17 + $0x5b8] sm:$0xff]
    %v917 = vld [vmem:[#allocation17 + $0x5c0] sm:$0xff]
    %v918 = vld [vmem:[#allocation17 + $0x5c8] sm:$0xff]
    %v919 = vld [vmem:[#allocation17 + $0x5d0] sm:$0xff]
    %v920 = vld [vmem:[#allocation17 + $0x5d8] sm:$0xff]
    %v921 = vld [vmem:[#allocation17 + $0x5e0] sm:$0xff]
    %v922 = vld [vmem:[#allocation17 + $0x5e8] sm:$0xff]
    %v923 = vld [vmem:[#allocation17 + $0x5f0] sm:$0xff]
    %v924 = vld [vmem:[#allocation17 + $0x5f8] sm:$0xff]
    %v925 = vld [vmem:[#allocation17 + $0x600] sm:$0xff]
    %v926 = vld [vmem:[#allocation17 + $0x608] sm:$0xff]
    %v927 = vld [vmem:[#allocation17 + $0x610] sm:$0xff]
    %v928 = vld [vmem:[#allocation17 + $0x618] sm:$0xff]
    %v929 = vld [vmem:[#allocation17 + $0x620] sm:$0xff]
    %v930 = vld [vmem:[#allocation17 + $0x628] sm:$0xff]
    %v931 = vld [vmem:[#allocation17 + $0x630] sm:$0xff]
    %v932 = vld [vmem:[#allocation17 + $0x638] sm:$0xff]
    %v933 = vld [vmem:[#allocation17 + $0x640] sm:$0xff]
    %v934 = vld [vmem:[#allocation17 + $0x648] sm:$0xff]
    %v935 = vld [vmem:[#allocation17 + $0x650] sm:$0xff]
    %v936 = vld [vmem:[#allocation17 + $0x658] sm:$0xff]
    %v937 = vld [vmem:[#allocation17 + $0x660] sm:$0xff]
    %v938 = vld [vmem:[#allocation17 + $0x668] sm:$0xff]
    %v939 = vld [vmem:[#allocation17 + $0x670] sm:$0xff]
    %v940 = vld [vmem:[#allocation17 + $0x678] sm:$0xff]
    %v941 = vld [vmem:[#allocation17 + $0x680] sm:$0xff]
    %v942 = vld [vmem:[#allocation17 + $0x688] sm:$0xff]
    %v943 = vld [vmem:[#allocation17 + $0x690] sm:$0xff]
    %v944 = vld [vmem:[#allocation17 + $0x698] sm:$0xff]
    %v945 = vld [vmem:[#allocation17 + $0x6a0] sm:$0xff]
    %v946 = vld [vmem:[#allocation17 + $0x6a8] sm:$0xff]
    %v947 = vld [vmem:[#allocation17 + $0x6b0] sm:$0xff]
    %v948 = vld [vmem:[#allocation17 + $0x6b8] sm:$0xff]
    %v949 = vld [vmem:[#allocation17 + $0x6c0] sm:$0xff]
    %v950 = vld [vmem:[#allocation17 + $0x6c8] sm:$0xff]
    %v951 = vld [vmem:[#allocation17 + $0x6d0] sm:$0xff]
    %v952 = vld [vmem:[#allocation17 + $0x6d8] sm:$0xff]
    %v953 = vld [vmem:[#allocation17 + $0x6e0] sm:$0xff]
    %v954 = vld [vmem:[#allocation17 + $0x6e8] sm:$0xff]
    %v955 = vld [vmem:[#allocation17 + $0x6f0] sm:$0xff]
    %v956 = vld [vmem:[#allocation17 + $0x6f8] sm:$0xff]
    %v957 = vld [vmem:[#allocation17 + $0x700] sm:$0xff]
    %v958 = vld [vmem:[#allocation17 + $0x708] sm:$0xff]
    %v959 = vld [vmem:[#allocation17 + $0x710] sm:$0xff]
    %v960 = vld [vmem:[#allocation17 + $0x718] sm:$0xff]
    %v961 = vld [vmem:[#allocation17 + $0x720] sm:$0xff]
    %v962 = vld [vmem:[#allocation17 + $0x728] sm:$0xff]
    %v963 = vld [vmem:[#allocation17 + $0x730] sm:$0xff]
    %v964 = vld [vmem:[#allocation17 + $0x738] sm:$0xff]
    %v965 = vld [vmem:[#allocation17 + $0x740] sm:$0xff]
    %v966 = vld [vmem:[#allocation17 + $0x748] sm:$0xff]
    %v967 = vld [vmem:[#allocation17 + $0x750] sm:$0xff]
    %v968 = vld [vmem:[#allocation17 + $0x758] sm:$0xff]
    %v969 = vld [vmem:[#allocation17 + $0x760] sm:$0xff]
    %v970 = vld [vmem:[#allocation17 + $0x768] sm:$0xff]
    %v971 = vld [vmem:[#allocation17 + $0x770] sm:$0xff]
    %v972 = vld [vmem:[#allocation17 + $0x778] sm:$0xff]
    %v973 = vld [vmem:[#allocation17 + $0x780] sm:$0xff]
    %v974 = vld [vmem:[#allocation17 + $0x788] sm:$0xff]
    %v975 = vld [vmem:[#allocation17 + $0x790] sm:$0xff]
    %v976 = vld [vmem:[#allocation17 + $0x798] sm:$0xff]
    %v977 = vld [vmem:[#allocation17 + $0x7a0] sm:$0xff]
    %v978 = vld [vmem:[#allocation17 + $0x7a8] sm:$0xff]
    %v979 = vld [vmem:[#allocation17 + $0x7b0] sm:$0xff]
    %v980 = vld [vmem:[#allocation17 + $0x7b8] sm:$0xff]
    %v981 = vld [vmem:[#allocation17 + $0x7c0] sm:$0xff]
    %v982 = vld [vmem:[#allocation17 + $0x7c8] sm:$0xff]
    %v983 = vld [vmem:[#allocation17 + $0x7d0] sm:$0xff]
    %v984 = vld [vmem:[#allocation17 + $0x7d8] sm:$0xff]
    %v985 = vld [vmem:[#allocation17 + $0x7e0] sm:$0xff]
    %v986 = vld [vmem:[#allocation17 + $0x7e8] sm:$0xff]
    %v987 = vld [vmem:[#allocation17 + $0x7f0] sm:$0xff]
    %v988 = vld [vmem:[#allocation17 + $0x7f8] sm:$0xff]
    %v989 = vld [vmem:[#allocation17 + $0x800] sm:$0xff]
    %v990 = vld [vmem:[#allocation17 + $0x808] sm:$0xff]
    %v991 = vld [vmem:[#allocation17 + $0x810] sm:$0xff]
    %v992 = vld [vmem:[#allocation17 + $0x818] sm:$0xff]
    %v993 = vld [vmem:[#allocation17 + $0x820] sm:$0xff]
    %v994 = vld [vmem:[#allocation17 + $0x828] sm:$0xff]
    %v995 = vld [vmem:[#allocation17 + $0x830] sm:$0xff]
    %v996 = vld [vmem:[#allocation17 + $0x838] sm:$0xff]
    %v997 = vld [vmem:[#allocation17 + $0x840] sm:$0xff]
    %v998 = vld [vmem:[#allocation17 + $0x848] sm:$0xff]
    %v999 = vld [vmem:[#allocation17 + $0x850] sm:$0xff]
    %v1000 = vld [vmem:[#allocation17 + $0x858] sm:$0xff]
    %v1001 = vld [vmem:[#allocation17 + $0x860] sm:$0xff]
    %v1002 = vld [vmem:[#allocation17 + $0x868] sm:$0xff]
    %v1003 = vld [vmem:[#allocation17 + $0x870] sm:$0xff]
    %v1004 = vld [vmem:[#allocation17 + $0x878] sm:$0xff]
    %v1005 = vld [vmem:[#allocation17 + $0x880] sm:$0xff]
    %v1006 = vld [vmem:[#allocation17 + $0x888] sm:$0xff]
    %v1007 = vld [vmem:[#allocation17 + $0x890] sm:$0xff]
    %v1008 = vld [vmem:[#allocation17 + $0x898] sm:$0xff]
    %v1009 = vld [vmem:[#allocation17 + $0x8a0] sm:$0xff]
    %v1010 = vld [vmem:[#allocation17 + $0x8a8] sm:$0xff]
    %v1011 = vld [vmem:[#allocation17 + $0x8b0] sm:$0xff]
    %v1012 = vld [vmem:[#allocation17 + $0x8b8] sm:$0xff]
    %v1013 = vld [vmem:[#allocation17 + $0x8c0] sm:$0xff]
    %v1014 = vld [vmem:[#allocation17 + $0x8c8] sm:$0xff]
    %v1015 = vld [vmem:[#allocation17 + $0x8d0] sm:$0xff]
    %v1016 = vld [vmem:[#allocation17 + $0x8d8] sm:$0xff]
    %v1017 = vld [vmem:[#allocation17 + $0x8e0] sm:$0xff]
    %v1018 = vld [vmem:[#allocation17 + $0x8e8] sm:$0xff]
    %v1019 = vld [vmem:[#allocation17 + $0x8f0] sm:$0xff]
    %v1020 = vld [vmem:[#allocation17 + $0x8f8] sm:$0xff]
    %v1021 = vld [vmem:[#allocation17 + $0x900] sm:$0xff]
    %v1022 = vld [vmem:[#allocation17 + $0x908] sm:$0xff]
    %v1023 = vld [vmem:[#allocation17 + $0x910] sm:$0xff]
    %v1024 = vld [vmem:[#allocation17 + $0x918] sm:$0xff]
    %v1025 = vld [vmem:[#allocation17 + $0x920] sm:$0xff]
    %v1026 = vld [vmem:[#allocation17 + $0x928] sm:$0xff]
    %v1027 = vld [vmem:[#allocation17 + $0x930] sm:$0xff]
    %v1028 = vld [vmem:[#allocation17 + $0x938] sm:$0xff]
    %v1029 = vld [vmem:[#allocation17 + $0x940] sm:$0xff]
    %v1030 = vld [vmem:[#allocation17 + $0x948] sm:$0xff]
    %v1031 = vld [vmem:[#allocation17 + $0x950] sm:$0xff]
    %v1032 = vld [vmem:[#allocation17 + $0x958] sm:$0xff]
    %v1033 = vld [vmem:[#allocation17 + $0x960] sm:$0xff]
    %v1034 = vld [vmem:[#allocation17 + $0x968] sm:$0xff]
    %v1035 = vld [vmem:[#allocation17 + $0x970] sm:$0xff]
    %v1036 = vld [vmem:[#allocation17 + $0x978] sm:$0xff]
    %v1037 = vld [vmem:[#allocation17 + $0x980] sm:$0xff]
    %v1038 = vld [vmem:[#allocation17 + $0x988] sm:$0xff]
    %v1039 = vld [vmem:[#allocation17 + $0x990] sm:$0xff]
    %v1040 = vld [vmem:[#allocation17 + $0x998] sm:$0xff]
    %v1041 = vld [vmem:[#allocation17 + $0x9a0] sm:$0xff]
    %v1042 = vld [vmem:[#allocation17 + $0x9a8] sm:$0xff]
    %v1043 = vld [vmem:[#allocation17 + $0x9b0] sm:$0xff]
    %v1044 = vld [vmem:[#allocation17 + $0x9b8] sm:$0xff]
    %v1045 = vld [vmem:[#allocation17 + $0x9c0] sm:$0xff]
    %v1046 = vld [vmem:[#allocation17 + $0x9c8] sm:$0xff]
    %v1047 = vld [vmem:[#allocation17 + $0x9d0] sm:$0xff]
    %v1048 = vld [vmem:[#allocation17 + $0x9d8] sm:$0xff]
    %v1049 = vld [vmem:[#allocation17 + $0x9e0] sm:$0xff]
    %v1050 = vld [vmem:[#allocation17 + $0x9e8] sm:$0xff]
    %v1051 = vld [vmem:[#allocation17 + $0x9f0] sm:$0xff]
    %v1052 = vld [vmem:[#allocation17 + $0x9f8] sm:$0xff]
    %v1053 = vld [vmem:[#allocation17 + $0xa00] sm:$0xff]
    %v1054 = vld [vmem:[#allocation17 + $0xa08] sm:$0xff]
    %v1055 = vld [vmem:[#allocation17 + $0xa10] sm:$0xff]
    %v1056 = vld [vmem:[#allocation17 + $0xa18] sm:$0xff]
    %v1057 = vld [vmem:[#allocation17 + $0xa20] sm:$0xff]
    %v1058 = vld [vmem:[#allocation17 + $0xa28] sm:$0xff]
    %v1059 = vld [vmem:[#allocation17 + $0xa30] sm:$0xff]
    %v1060 = vld [vmem:[#allocation17 + $0xa38] sm:$0xff]
    %v1061 = vld [vmem:[#allocation17 + $0xa40] sm:$0xff]
    %v1062 = vld [vmem:[#allocation17 + $0xa48] sm:$0xff]
    %v1063 = vld [vmem:[#allocation17 + $0xa50] sm:$0xff]
    %v1064 = vld [vmem:[#allocation17 + $0xa58] sm:$0xff]
    %v1065 = vld [vmem:[#allocation17 + $0xa60] sm:$0xff]
    %v1066 = vld [vmem:[#allocation17 + $0xa68] sm:$0xff]
    %v1067 = vld [vmem:[#allocation17 + $0xa70] sm:$0xff]
    %v1068 = vld [vmem:[#allocation17 + $0xa78] sm:$0xff]
    %v1069 = vld [vmem:[#allocation17 + $0xa80] sm:$0xff]
    %v1070 = vld [vmem:[#allocation17 + $0xa88] sm:$0xff]
    %v1071 = vld [vmem:[#allocation17 + $0xa90] sm:$0xff]
    %v1072 = vld [vmem:[#allocation17 + $0xa98] sm:$0xff]
    %v1073 = vld [vmem:[#allocation17 + $0xaa0] sm:$0xff]
    %v1074 = vld [vmem:[#allocation17 + $0xaa8] sm:$0xff]
    %v1075 = vld [vmem:[#allocation17 + $0xab0] sm:$0xff]
    %v1076 = vld [vmem:[#allocation17 + $0xab8] sm:$0xff]
    %v1077 = vld [vmem:[#allocation17 + $0xac0] sm:$0xff]
    %v1078 = vld [vmem:[#allocation17 + $0xac8] sm:$0xff]
    %v1079 = vld [vmem:[#allocation17 + $0xad0] sm:$0xff]
    %v1080 = vld [vmem:[#allocation17 + $0xad8] sm:$0xff]
    %v1081 = vld [vmem:[#allocation17 + $0xae0] sm:$0xff]
    %v1082 = vld [vmem:[#allocation17 + $0xae8] sm:$0xff]
    %v1083 = vld [vmem:[#allocation17 + $0xaf0] sm:$0xff]
    %v1084 = vld [vmem:[#allocation17 + $0xaf8] sm:$0xff]
    %v1085 = vld [vmem:[#allocation17 + $0xb00] sm:$0xff]
    %v1086 = vld [vmem:[#allocation17 + $0xb08] sm:$0xff]
    %v1087 = vld [vmem:[#allocation17 + $0xb10] sm:$0xff]
    %v1088 = vld [vmem:[#allocation17 + $0xb18] sm:$0xff]
    %v1089 = vld [vmem:[#allocation17 + $0xb20] sm:$0xff]
    %v1090 = vld [vmem:[#allocation17 + $0xb28] sm:$0xff]
    %v1091 = vld [vmem:[#allocation17 + $0xb30] sm:$0xff]
    %v1092 = vld [vmem:[#allocation17 + $0xb38] sm:$0xff]
    %v1093 = vld [vmem:[#allocation17 + $0xb40] sm:$0xff]
    %v1094 = vld [vmem:[#allocation17 + $0xb48] sm:$0xff]
    %v1095 = vld [vmem:[#allocation17 + $0xb50] sm:$0xff]
    %v1096 = vld [vmem:[#allocation17 + $0xb58] sm:$0xff]
    %v1097 = vld [vmem:[#allocation17 + $0xb60] sm:$0xff]
    %v1098 = vld [vmem:[#allocation17 + $0xb68] sm:$0xff]
    %v1099 = vld [vmem:[#allocation17 + $0xb70] sm:$0xff]
    %v1100 = vld [vmem:[#allocation17 + $0xb78] sm:$0xff]
    %v1101 = vld [vmem:[#allocation17 + $0xb80] sm:$0xff]
    %v1102 = vld [vmem:[#allocation17 + $0xb88] sm:$0xff]
    %v1103 = vld [vmem:[#allocation17 + $0xb90] sm:$0xff]
    %v1104 = vld [vmem:[#allocation17 + $0xb98] sm:$0xff]
    %v1105 = vld [vmem:[#allocation17 + $0xba0] sm:$0xff]
    %v1106 = vld [vmem:[#allocation17 + $0xba8] sm:$0xff]
    %v1107 = vld [vmem:[#allocation17 + $0xbb0] sm:$0xff]
    %v1108 = vld [vmem:[#allocation17 + $0xbb8] sm:$0xff]
    %v1109 = vld [vmem:[#allocation17 + $0xbc0] sm:$0xff]
    %v1110 = vld [vmem:[#allocation17 + $0xbc8] sm:$0xff]
    %v1111 = vld [vmem:[#allocation17 + $0xbd0] sm:$0xff]
    %v1112 = vld [vmem:[#allocation17 + $0xbd8] sm:$0xff]
    %v1113 = vld [vmem:[#allocation17 + $0xbe0] sm:$0xff]
    %v1114 = vld [vmem:[#allocation17 + $0xbe8] sm:$0xff]
    %v1115 = vld [vmem:[#allocation17 + $0xbf0] sm:$0xff]
    %v1116 = vld [vmem:[#allocation17 + $0xbf8] sm:$0xff]
    %v1117 = vld [vmem:[#allocation17 + $0xc00] sm:$0xff]
    %v1118 = vld [vmem:[#allocation17 + $0xc08] sm:$0xff]
    %v1119 = vld [vmem:[#allocation17 + $0xc10] sm:$0xff]
    %v1120 = vld [vmem:[#allocation17 + $0xc18] sm:$0xff]
    %v1121 = vld [vmem:[#allocation17 + $0xc20] sm:$0xff]
    %v1122 = vld [vmem:[#allocation17 + $0xc28] sm:$0xff]
    %v1123 = vld [vmem:[#allocation17 + $0xc30] sm:$0xff]
    %v1124 = vld [vmem:[#allocation17 + $0xc38] sm:$0xff]
    %v1125 = vld [vmem:[#allocation17 + $0xc40] sm:$0xff]
    %v1126 = vld [vmem:[#allocation17 + $0xc48] sm:$0xff]
    %v1127 = vld [vmem:[#allocation17 + $0xc50] sm:$0xff]
    %v1128 = vld [vmem:[#allocation17 + $0xc58] sm:$0xff]
    %v1129 = vld [vmem:[#allocation17 + $0xc60] sm:$0xff]
    %v1130 = vld [vmem:[#allocation17 + $0xc68] sm:$0xff]
    %v1131 = vld [vmem:[#allocation17 + $0xc70] sm:$0xff]
    %v1132 = vld [vmem:[#allocation17 + $0xc78] sm:$0xff]
    %v1133 = vld [vmem:[#allocation17 + $0xc80] sm:$0xff]
    %v1134 = vld [vmem:[#allocation17 + $0xc88] sm:$0xff]
    %v1135 = vld [vmem:[#allocation17 + $0xc90] sm:$0xff]
    %v1136 = vld [vmem:[#allocation17 + $0xc98] sm:$0xff]
    %v1137 = vld [vmem:[#allocation17 + $0xca0] sm:$0xff]
    %v1138 = vld [vmem:[#allocation17 + $0xca8] sm:$0xff]
    %v1139 = vld [vmem:[#allocation17 + $0xcb0] sm:$0xff]
    %v1140 = vld [vmem:[#allocation17 + $0xcb8] sm:$0xff]
    %v1141 = vld [vmem:[#allocation17 + $0xcc0] sm:$0xff]
    %v1142 = vld [vmem:[#allocation17 + $0xcc8] sm:$0xff]
    %v1143 = vld [vmem:[#allocation17 + $0xcd0] sm:$0xff]
    %v1144 = vld [vmem:[#allocation17 + $0xcd8] sm:$0xff]
    %v1145 = vld [vmem:[#allocation17 + $0xce0] sm:$0xff]
    %v1146 = vld [vmem:[#allocation17 + $0xce8] sm:$0xff]
    %v1147 = vld [vmem:[#allocation17 + $0xcf0] sm:$0xff]
    %v1148 = vld [vmem:[#allocation17 + $0xcf8] sm:$0xff]
    %v1149 = vld [vmem:[#allocation17 + $0xd00] sm:$0xff]
    %v1150 = vld [vmem:[#allocation17 + $0xd08] sm:$0xff]
    %v1151 = vld [vmem:[#allocation17 + $0xd10] sm:$0xff]
    %v1152 = vld [vmem:[#allocation17 + $0xd18] sm:$0xff]
    %v1153 = vld [vmem:[#allocation17 + $0xd20] sm:$0xff]
    %v1154 = vld [vmem:[#allocation17 + $0xd28] sm:$0xff]
    %v1155 = vld [vmem:[#allocation17 + $0xd30] sm:$0xff]
    %v1156 = vld [vmem:[#allocation17 + $0xd38] sm:$0xff]
    %v1157 = vld [vmem:[#allocation17 + $0xd40] sm:$0xff]
    %v1158 = vld [vmem:[#allocation17 + $0xd48] sm:$0xff]
    %v1159 = vld [vmem:[#allocation17 + $0xd50] sm:$0xff]
    %v1160 = vld [vmem:[#allocation17 + $0xd58] sm:$0xff]
    %v1161 = vld [vmem:[#allocation17 + $0xd60] sm:$0xff]
    %v1162 = vld [vmem:[#allocation17 + $0xd68] sm:$0xff]
    %v1163 = vld [vmem:[#allocation17 + $0xd70] sm:$0xff]
    %v1164 = vld [vmem:[#allocation17 + $0xd78] sm:$0xff]
    %v1165 = vld [vmem:[#allocation17 + $0xd80] sm:$0xff]
    %v1166 = vld [vmem:[#allocation17 + $0xd88] sm:$0xff]
    %v1167 = vld [vmem:[#allocation17 + $0xd90] sm:$0xff]
    %v1168 = vld [vmem:[#allocation17 + $0xd98] sm:$0xff]
    %v1169 = vld [vmem:[#allocation17 + $0xda0] sm:$0xff]
    %v1170 = vld [vmem:[#allocation17 + $0xda8] sm:$0xff]
    %v1171 = vld [vmem:[#allocation17 + $0xdb0] sm:$0xff]
    %v1172 = vld [vmem:[#allocation17 + $0xdb8] sm:$0xff]
    %v1173 = vld [vmem:[#allocation17 + $0xdc0] sm:$0xff]
    %v1174 = vld [vmem:[#allocation17 + $0xdc8] sm:$0xff]
    %v1175 = vld [vmem:[#allocation17 + $0xdd0] sm:$0xff]
    %v1176 = vld [vmem:[#allocation17 + $0xdd8] sm:$0xff]
    %v1177 = vld [vmem:[#allocation17 + $0xde0] sm:$0xff]
    %v1178 = vld [vmem:[#allocation17 + $0xde8] sm:$0xff]
    %v1179 = vld [vmem:[#allocation17 + $0xdf0] sm:$0xff]
    %v1180 = vld [vmem:[#allocation17 + $0xdf8] sm:$0xff]
    %v1181 = vld [vmem:[#allocation17 + $0xe00] sm:$0xff]
    %v1182 = vld [vmem:[#allocation17 + $0xe08] sm:$0xff]
    %v1183 = vld [vmem:[#allocation17 + $0xe10] sm:$0xff]
    %v1184 = vld [vmem:[#allocation17 + $0xe18] sm:$0xff]
    %v1185 = vld [vmem:[#allocation17 + $0xe20] sm:$0xff]
    %v1186 = vld [vmem:[#allocation17 + $0xe28] sm:$0xff]
    %v1187 = vld [vmem:[#allocation17 + $0xe30] sm:$0xff]
    %v1188 = vld [vmem:[#allocation17 + $0xe38] sm:$0xff]
    %v1189 = vld [vmem:[#allocation17 + $0xe40] sm:$0xff]
    %v1190 = vld [vmem:[#allocation17 + $0xe48] sm:$0xff]
    %v1191 = vld [vmem:[#allocation17 + $0xe50] sm:$0xff]
    %v1192 = vld [vmem:[#allocation17 + $0xe58] sm:$0xff]
    %v1193 = vld [vmem:[#allocation17 + $0xe60] sm:$0xff]
    %v1194 = vld [vmem:[#allocation17 + $0xe68] sm:$0xff]
    %v1195 = vld [vmem:[#allocation17 + $0xe70] sm:$0xff]
    %v1196 = vld [vmem:[#allocation17 + $0xe78] sm:$0xff]
    %v1197 = vld [vmem:[#allocation17 + $0xe80] sm:$0xff]
    %v1198 = vld [vmem:[#allocation17 + $0xe88] sm:$0xff]
    %v1199 = vld [vmem:[#allocation17 + $0xe90] sm:$0xff]
    %v1200 = vld [vmem:[#allocation17 + $0xe98] sm:$0xff]
    %v1201 = vld [vmem:[#allocation17 + $0xea0] sm:$0xff]
    %v1202 = vld [vmem:[#allocation17 + $0xea8] sm:$0xff]
    %v1203 = vld [vmem:[#allocation17 + $0xeb0] sm:$0xff]
    %v1204 = vld [vmem:[#allocation17 + $0xeb8] sm:$0xff]
    %v1205 = vld [vmem:[#allocation17 + $0xec0] sm:$0xff]
    %v1206 = vld [vmem:[#allocation17 + $0xec8] sm:$0xff]
    %v1207 = vld [vmem:[#allocation17 + $0xed0] sm:$0xff]
    %v1208 = vld [vmem:[#allocation17 + $0xed8] sm:$0xff]
    %v1209 = vld [vmem:[#allocation17 + $0xee0] sm:$0xff]
    %v1210 = vld [vmem:[#allocation17 + $0xee8] sm:$0xff]
    %v1211 = vld [vmem:[#allocation17 + $0xef0] sm:$0xff]
    %v1212 = vld [vmem:[#allocation17 + $0xef8] sm:$0xff]
    %v1213 = vld [vmem:[#allocation17 + $0xf00] sm:$0xff]
    %v1214 = vld [vmem:[#allocation17 + $0xf08] sm:$0xff]
    %v1215 = vld [vmem:[#allocation17 + $0xf10] sm:$0xff]
    %v1216 = vld [vmem:[#allocation17 + $0xf18] sm:$0xff]
    %v1217 = vld [vmem:[#allocation17 + $0xf20] sm:$0xff]
    %v1218 = vld [vmem:[#allocation17 + $0xf28] sm:$0xff]
    %v1219 = vld [vmem:[#allocation17 + $0xf30] sm:$0xff]
    %v1220 = vld [vmem:[#allocation17 + $0xf38] sm:$0xff]
    %v1221 = vld [vmem:[#allocation17 + $0xf40] sm:$0xff]
    %v1222 = vld [vmem:[#allocation17 + $0xf48] sm:$0xff]
    %v1223 = vld [vmem:[#allocation17 + $0xf50] sm:$0xff]
    %v1224 = vld [vmem:[#allocation17 + $0xf58] sm:$0xff]
    %v1225 = vld [vmem:[#allocation17 + $0xf60] sm:$0xff]
    %v1226 = vld [vmem:[#allocation17 + $0xf68] sm:$0xff]
    %v1227 = vld [vmem:[#allocation17 + $0xf70] sm:$0xff]
    %v1228 = vld [vmem:[#allocation17 + $0xf78] sm:$0xff]
    %v1229 = vld [vmem:[#allocation17 + $0xf80] sm:$0xff]
    %v1230 = vld [vmem:[#allocation17 + $0xf88] sm:$0xff]
    %v1231 = vld [vmem:[#allocation17 + $0xf90] sm:$0xff]
    %v1232 = vld [vmem:[#allocation17 + $0xf98] sm:$0xff]
    %v1233 = vld [vmem:[#allocation17 + $0xfa0] sm:$0xff]
    %v1234 = vld [vmem:[#allocation17 + $0xfa8] sm:$0xff]
    %v1235 = vld [vmem:[#allocation17 + $0xfb0] sm:$0xff]
    %v1236 = vld [vmem:[#allocation17 + $0xfb8] sm:$0xff]
    %v1237 = vld [vmem:[#allocation17 + $0xfc0] sm:$0xff]
    %v1238 = vld [vmem:[#allocation17 + $0xfc8] sm:$0xff]
    %v1239 = vld [vmem:[#allocation17 + $0xfd0] sm:$0xff]
    %v1240 = vld [vmem:[#allocation17 + $0xfd8] sm:$0xff]
    %v1241 = vld [vmem:[#allocation17 + $0xfe0] sm:$0xff]
    %v1242 = vld [vmem:[#allocation17 + $0xfe8] sm:$0xff]
    %v1243 = vld [vmem:[#allocation17 + $0xff0] sm:$0xff]
    %v1244 = vld [vmem:[#allocation17 + $0xff8] sm:$0xff]
    %v1245 = vld [vmem:[#allocation19] sm:$0xff]
    %v1247 = vperm.slane %v1245, 0
    %v1248 = vperm.slane %v1245, 1
    %v1249 = vperm.slane %v1245, 2
    %v1250 = vperm.slane %v1245, 3
    %v1251 = vperm.slane %v1245, 4
    %v1252 = vperm.slane %v1245, 5
    %v1253 = vperm.slane %v1245, 6
    %v1254 = vperm.slane %v1245, 7
    %1263 = vmatpush.msra.mxu0 %v853
    %1264 = vmatpush.msra.mxu0 %v845
    %1265 = vmatpush.msra.mxu0 %v837
    %1266 = vmatpush.msra.mxu0 %v829
    %1267 = vmatpush.msra.mxu0 %v821
    %1268 = vmatpush.msra.mxu0 %v813
    %1269 = vmatpush.msra.mxu0 %v805
    %1270 = vmatpush.msra.mxu0 %v797
    %1271 = vmatpush.msra.mxu0 %v789
    %1272 = vmatpush.msra.mxu0 %v781
    %1273 = vmatpush.msra.mxu0 %v773
    %1274 = vmatpush.msra.mxu0 %v765
    %1275 = vmatpush.msra.mxu0 %v757
    %1276 = vmatpush.msra.mxu0 %v749
    %1277 = vmatpush.msra.mxu0 %v741
    %1278 = vmatpush.msra.mxu0 %v733
    %1279 = vmatmul.f32.gmra.mxu0 %v729
    %v1280 = vpop.f32.mrf.mxu0
    %v1281 = vadd.f32 %v1247, %v1280
    %1282 = vdwg.mxu0
    %1283 = vmatpush.msra.mxu0 %v981
    %1284 = vmatpush.msra.mxu0 %v973
    %1285 = vmatpush.msra.mxu0 %v965
    %1286 = vmatpush.msra.mxu0 %v957
    %1287 = vmatpush.msra.mxu0 %v949
    %1288 = vmatpush.msra.mxu0 %v941
    %1289 = vmatpush.msra.mxu0 %v933
    %1290 = vmatpush.msra.mxu0 %v925
    %1291 = vmatpush.msra.mxu0 %v917
    %1292 = vmatpush.msra.mxu0 %v909
    %1293 = vmatpush.msra.mxu0 %v901
    %1294 = vmatpush.msra.mxu0 %v893
    %1295 = vmatpush.msra.mxu0 %v885
    %1296 = vmatpush.msra.mxu0 %v877
    %1297 = vmatpush.msra.mxu0 %v869
    %1298 = vmatpush.msra.mxu0 %v861
    %1299 = vmatmul.f32.gmra.mxu0 %v730
    %v1300 = vpop.f32.mrf.mxu0
    %v1301 = vadd.f32 %v1281, %v1300
    %1302 = vdwg.mxu0
    %1303 = vmatpush.msra.mxu0 %v1109
    %1304 = vmatpush.msra.mxu0 %v1101
    %1305 = vmatpush.msra.mxu0 %v1093
    %1306 = vmatpush.msra.mxu0 %v1085
    %1307 = vmatpush.msra.mxu0 %v1077
    %1308 = vmatpush.msra.mxu0 %v1069
    %1309 = vmatpush.msra.mxu0 %v1061
    %1310 = vmatpush.msra.mxu0 %v1053
    %1311 = vmatpush.msra.mxu0 %v1045
    %1312 = vmatpush.msra.mxu0 %v1037
    %1313 = vmatpush.msra.mxu0 %v1029
    %1314 = vmatpush.msra.mxu0 %v1021
    %1315 = vmatpush.msra.mxu0 %v1013
    %1316 = vmatpush.msra.mxu0 %v1005
    %1317 = vmatpush.msra.mxu0 %v997
    %1318 = vmatpush.msra.mxu0 %v989
    %1319 = vmatmul.f32.gmra.mxu0 %v731
    %v1320 = vpop.f32.mrf.mxu0
    %v1321 = vadd.f32 %v1301, %v1320
    %1322 = vdwg.mxu0
    %1323 = vmatpush.msra.mxu0 %v1237
    %1324 = vmatpush.msra.mxu0 %v1229
    %1325 = vmatpush.msra.mxu0 %v1221
    %1326 = vmatpush.msra.mxu0 %v1213
    %1327 = vmatpush.msra.mxu0 %v1205
    %1328 = vmatpush.msra.mxu0 %v1197
    %1329 = vmatpush.msra.mxu0 %v1189
    %1330 = vmatpush.msra.mxu0 %v1181
    %1331 = vmatpush.msra.mxu0 %v1173
    %1332 = vmatpush.msra.mxu0 %v1165
    %1333 = vmatpush.msra.mxu0 %v1157
    %1334 = vmatpush.msra.mxu0 %v1149
    %1335 = vmatpush.msra.mxu0 %v1141
    %1336 = vmatpush.msra.mxu0 %v1133
    %1337 = vmatpush.msra.mxu0 %v1125
    %1338 = vmatpush.msra.mxu0 %v1117
    %1339 = vmatmul.f32.gmra.mxu0 %v732
    %v1340 = vpop.f32.mrf.mxu0
    %v1341 = vadd.f32 %v1321, %v1340
    %1342 = vdwg.mxu0
    %1343 = vmatpush.msra.mxu0 %v854
    %1344 = vmatpush.msra.mxu0 %v846
    %1345 = vmatpush.msra.mxu0 %v838
    %1346 = vmatpush.msra.mxu0 %v830
    %1347 = vmatpush.msra.mxu0 %v822
    %1348 = vmatpush.msra.mxu0 %v814
    %1349 = vmatpush.msra.mxu0 %v806
    %1350 = vmatpush.msra.mxu0 %v798
    %1351 = vmatpush.msra.mxu0 %v790
    %1352 = vmatpush.msra.mxu0 %v782
    %1353 = vmatpush.msra.mxu0 %v774
    %1354 = vmatpush.msra.mxu0 %v766
    %1355 = vmatpush.msra.mxu0 %v758
    %1356 = vmatpush.msra.mxu0 %v750
    %1357 = vmatpush.msra.mxu0 %v742
    %1358 = vmatpush.msra.mxu0 %v734
    %1359 = vmatmul.f32.gmra.mxu0 %v729
    %v1360 = vpop.f32.mrf.mxu0
    %v1361 = vadd.f32 %v1248, %v1360
    %1362 = vdwg.mxu0
    %1363 = vmatpush.msra.mxu0 %v982
    %1364 = vmatpush.msra.mxu0 %v974
    %1365 = vmatpush.msra.mxu0 %v966
    %1366 = vmatpush.msra.mxu0 %v958
    %1367 = vmatpush.msra.mxu0 %v950
    %1368 = vmatpush.msra.mxu0 %v942
    %1369 = vmatpush.msra.mxu0 %v934
    %1370 = vmatpush.msra.mxu0 %v926
    %1371 = vmatpush.msra.mxu0 %v918
    %1372 = vmatpush.msra.mxu0 %v910
    %1373 = vmatpush.msra.mxu0 %v902
    %1374 = vmatpush.msra.mxu0 %v894
    %1375 = vmatpush.msra.mxu0 %v886
    %1376 = vmatpush.msra.mxu0 %v878
    %1377 = vmatpush.msra.mxu0 %v870
    %1378 = vmatpush.msra.mxu0 %v862
    %1379 = vmatmul.f32.gmra.mxu0 %v730
    %v1380 = vpop.f32.mrf.mxu0
    %v1381 = vadd.f32 %v1361, %v1380
    %1382 = vdwg.mxu0
    %1383 = vmatpush.msra.mxu0 %v1110
    %1384 = vmatpush.msra.mxu0 %v1102
    %1385 = vmatpush.msra.mxu0 %v1094
    %1386 = vmatpush.msra.mxu0 %v1086
    %1387 = vmatpush.msra.mxu0 %v1078
    %1388 = vmatpush.msra.mxu0 %v1070
    %1389 = vmatpush.msra.mxu0 %v1062
    %1390 = vmatpush.msra.mxu0 %v1054
    %1391 = vmatpush.msra.mxu0 %v1046
    %1392 = vmatpush.msra.mxu0 %v1038
    %1393 = vmatpush.msra.mxu0 %v1030
    %1394 = vmatpush.msra.mxu0 %v1022
    %1395 = vmatpush.msra.mxu0 %v1014
    %1396 = vmatpush.msra.mxu0 %v1006
    %1397 = vmatpush.msra.mxu0 %v998
    %1398 = vmatpush.msra.mxu0 %v990
    %1399 = vmatmul.f32.gmra.mxu0 %v731
    %v1400 = vpop.f32.mrf.mxu0
    %v1401 = vadd.f32 %v1381, %v1400
    %1402 = vdwg.mxu0
    %1403 = vmatpush.msra.mxu0 %v1238
    %1404 = vmatpush.msra.mxu0 %v1230
    %1405 = vmatpush.msra.mxu0 %v1222
    %1406 = vmatpush.msra.mxu0 %v1214
    %1407 = vmatpush.msra.mxu0 %v1206
    %1408 = vmatpush.msra.mxu0 %v1198
    %1409 = vmatpush.msra.mxu0 %v1190
    %1410 = vmatpush.msra.mxu0 %v1182
    %1411 = vmatpush.msra.mxu0 %v1174
    %1412 = vmatpush.msra.mxu0 %v1166
    %1413 = vmatpush.msra.mxu0 %v1158
    %1414 = vmatpush.msra.mxu0 %v1150
    %1415 = vmatpush.msra.mxu0 %v1142
    %1416 = vmatpush.msra.mxu0 %v1134
    %1417 = vmatpush.msra.mxu0 %v1126
    %1418 = vmatpush.msra.mxu0 %v1118
    %1419 = vmatmul.f32.gmra.mxu0 %v732
    %v1420 = vpop.f32.mrf.mxu0
    %v1421 = vadd.f32 %v1401, %v1420
    %1422 = vdwg.mxu0
    %1423 = vmatpush.msra.mxu0 %v855
    %1424 = vmatpush.msra.mxu0 %v847
    %1425 = vmatpush.msra.mxu0 %v839
    %1426 = vmatpush.msra.mxu0 %v831
    %1427 = vmatpush.msra.mxu0 %v823
    %1428 = vmatpush.msra.mxu0 %v815
    %1429 = vmatpush.msra.mxu0 %v807
    %1430 = vmatpush.msra.mxu0 %v799
    %1431 = vmatpush.msra.mxu0 %v791
    %1432 = vmatpush.msra.mxu0 %v783
    %1433 = vmatpush.msra.mxu0 %v775
    %1434 = vmatpush.msra.mxu0 %v767
    %1435 = vmatpush.msra.mxu0 %v759
    %1436 = vmatpush.msra.mxu0 %v751
    %1437 = vmatpush.msra.mxu0 %v743
    %1438 = vmatpush.msra.mxu0 %v735
    %1439 = vmatmul.f32.gmra.mxu0 %v729
    %v1440 = vpop.f32.mrf.mxu0
    %v1441 = vadd.f32 %v1249, %v1440
    %1442 = vdwg.mxu0
    %1443 = vmatpush.msra.mxu0 %v983
    %1444 = vmatpush.msra.mxu0 %v975
    %1445 = vmatpush.msra.mxu0 %v967
    %1446 = vmatpush.msra.mxu0 %v959
    %1447 = vmatpush.msra.mxu0 %v951
    %1448 = vmatpush.msra.mxu0 %v943
    %1449 = vmatpush.msra.mxu0 %v935
    %1450 = vmatpush.msra.mxu0 %v927
    %1451 = vmatpush.msra.mxu0 %v919
    %1452 = vmatpush.msra.mxu0 %v911
    %1453 = vmatpush.msra.mxu0 %v903
    %1454 = vmatpush.msra.mxu0 %v895
    %1455 = vmatpush.msra.mxu0 %v887
    %1456 = vmatpush.msra.mxu0 %v879
    %1457 = vmatpush.msra.mxu0 %v871
    %1458 = vmatpush.msra.mxu0 %v863
    %1459 = vmatmul.f32.gmra.mxu0 %v730
    %v1460 = vpop.f32.mrf.mxu0
    %v1461 = vadd.f32 %v1441, %v1460
    %1462 = vdwg.mxu0
    %1463 = vmatpush.msra.mxu0 %v1111
    %1464 = vmatpush.msra.mxu0 %v1103
    %1465 = vmatpush.msra.mxu0 %v1095
    %1466 = vmatpush.msra.mxu0 %v1087
    %1467 = vmatpush.msra.mxu0 %v1079
    %1468 = vmatpush.msra.mxu0 %v1071
    %1469 = vmatpush.msra.mxu0 %v1063
    %1470 = vmatpush.msra.mxu0 %v1055
    %1471 = vmatpush.msra.mxu0 %v1047
    %1472 = vmatpush.msra.mxu0 %v1039
    %1473 = vmatpush.msra.mxu0 %v1031
    %1474 = vmatpush.msra.mxu0 %v1023
    %1475 = vmatpush.msra.mxu0 %v1015
    %1476 = vmatpush.msra.mxu0 %v1007
    %1477 = vmatpush.msra.mxu0 %v999
    %1478 = vmatpush.msra.mxu0 %v991
    %1479 = vmatmul.f32.gmra.mxu0 %v731
    %v1480 = vpop.f32.mrf.mxu0
    %v1481 = vadd.f32 %v1461, %v1480
    %1482 = vdwg.mxu0
    %1483 = vmatpush.msra.mxu0 %v1239
    %1484 = vmatpush.msra.mxu0 %v1231
    %1485 = vmatpush.msra.mxu0 %v1223
    %1486 = vmatpush.msra.mxu0 %v1215
    %1487 = vmatpush.msra.mxu0 %v1207
    %1488 = vmatpush.msra.mxu0 %v1199
    %1489 = vmatpush.msra.mxu0 %v1191
    %1490 = vmatpush.msra.mxu0 %v1183
    %1491 = vmatpush.msra.mxu0 %v1175
    %1492 = vmatpush.msra.mxu0 %v1167
    %1493 = vmatpush.msra.mxu0 %v1159
    %1494 = vmatpush.msra.mxu0 %v1151
    %1495 = vmatpush.msra.mxu0 %v1143
    %1496 = vmatpush.msra.mxu0 %v1135
    %1497 = vmatpush.msra.mxu0 %v1127
    %1498 = vmatpush.msra.mxu0 %v1119
    %1499 = vmatmul.f32.gmra.mxu0 %v732
    %v1500 = vpop.f32.mrf.mxu0
    %v1501 = vadd.f32 %v1481, %v1500
    %1502 = vdwg.mxu0
    %1503 = vmatpush.msra.mxu0 %v856
    %1504 = vmatpush.msra.mxu0 %v848
    %1505 = vmatpush.msra.mxu0 %v840
    %1506 = vmatpush.msra.mxu0 %v832
    %1507 = vmatpush.msra.mxu0 %v824
    %1508 = vmatpush.msra.mxu0 %v816
    %1509 = vmatpush.msra.mxu0 %v808
    %1510 = vmatpush.msra.mxu0 %v800
    %1511 = vmatpush.msra.mxu0 %v792
    %1512 = vmatpush.msra.mxu0 %v784
    %1513 = vmatpush.msra.mxu0 %v776
    %1514 = vmatpush.msra.mxu0 %v768
    %1515 = vmatpush.msra.mxu0 %v760
    %1516 = vmatpush.msra.mxu0 %v752
    %1517 = vmatpush.msra.mxu0 %v744
    %1518 = vmatpush.msra.mxu0 %v736
    %1519 = vmatmul.f32.gmra.mxu0 %v729
    %v1520 = vpop.f32.mrf.mxu0
    %v1521 = vadd.f32 %v1250, %v1520
    %1522 = vdwg.mxu0
    %1523 = vmatpush.msra.mxu0 %v984
    %1524 = vmatpush.msra.mxu0 %v976
    %1525 = vmatpush.msra.mxu0 %v968
    %1526 = vmatpush.msra.mxu0 %v960
    %1527 = vmatpush.msra.mxu0 %v952
    %1528 = vmatpush.msra.mxu0 %v944
    %1529 = vmatpush.msra.mxu0 %v936
    %1530 = vmatpush.msra.mxu0 %v928
    %1531 = vmatpush.msra.mxu0 %v920
    %1532 = vmatpush.msra.mxu0 %v912
    %1533 = vmatpush.msra.mxu0 %v904
    %1534 = vmatpush.msra.mxu0 %v896
    %1535 = vmatpush.msra.mxu0 %v888
    %1536 = vmatpush.msra.mxu0 %v880
    %1537 = vmatpush.msra.mxu0 %v872
    %1538 = vmatpush.msra.mxu0 %v864
    %1539 = vmatmul.f32.gmra.mxu0 %v730
    %v1540 = vpop.f32.mrf.mxu0
    %v1541 = vadd.f32 %v1521, %v1540
    %1542 = vdwg.mxu0
    %1543 = vmatpush.msra.mxu0 %v1112
    %1544 = vmatpush.msra.mxu0 %v1104
    %1545 = vmatpush.msra.mxu0 %v1096
    %1546 = vmatpush.msra.mxu0 %v1088
    %1547 = vmatpush.msra.mxu0 %v1080
    %1548 = vmatpush.msra.mxu0 %v1072
    %1549 = vmatpush.msra.mxu0 %v1064
    %1550 = vmatpush.msra.mxu0 %v1056
    %1551 = vmatpush.msra.mxu0 %v1048
    %1552 = vmatpush.msra.mxu0 %v1040
    %1553 = vmatpush.msra.mxu0 %v1032
    %1554 = vmatpush.msra.mxu0 %v1024
    %1555 = vmatpush.msra.mxu0 %v1016
    %1556 = vmatpush.msra.mxu0 %v1008
    %1557 = vmatpush.msra.mxu0 %v1000
    %1558 = vmatpush.msra.mxu0 %v992
    %1559 = vmatmul.f32.gmra.mxu0 %v731
    %v1560 = vpop.f32.mrf.mxu0
    %v1561 = vadd.f32 %v1541, %v1560
    %1562 = vdwg.mxu0
    %1563 = vmatpush.msra.mxu0 %v1240
    %1564 = vmatpush.msra.mxu0 %v1232
    %1565 = vmatpush.msra.mxu0 %v1224
    %1566 = vmatpush.msra.mxu0 %v1216
    %1567 = vmatpush.msra.mxu0 %v1208
    %1568 = vmatpush.msra.mxu0 %v1200
    %1569 = vmatpush.msra.mxu0 %v1192
    %1570 = vmatpush.msra.mxu0 %v1184
    %1571 = vmatpush.msra.mxu0 %v1176
    %1572 = vmatpush.msra.mxu0 %v1168
    %1573 = vmatpush.msra.mxu0 %v1160
    %1574 = vmatpush.msra.mxu0 %v1152
    %1575 = vmatpush.msra.mxu0 %v1144
    %1576 = vmatpush.msra.mxu0 %v1136
    %1577 = vmatpush.msra.mxu0 %v1128
    %1578 = vmatpush.msra.mxu0 %v1120
    %1579 = vmatmul.f32.gmra.mxu0 %v732
    %v1580 = vpop.f32.mrf.mxu0
    %v1581 = vadd.f32 %v1561, %v1580
    %1582 = vdwg.mxu0
    %1583 = vmatpush.msra.mxu0 %v857
    %1584 = vmatpush.msra.mxu0 %v849
    %1585 = vmatpush.msra.mxu0 %v841
    %1586 = vmatpush.msra.mxu0 %v833
    %1587 = vmatpush.msra.mxu0 %v825
    %1588 = vmatpush.msra.mxu0 %v817
    %1589 = vmatpush.msra.mxu0 %v809
    %1590 = vmatpush.msra.mxu0 %v801
    %1591 = vmatpush.msra.mxu0 %v793
    %1592 = vmatpush.msra.mxu0 %v785
    %1593 = vmatpush.msra.mxu0 %v777
    %1594 = vmatpush.msra.mxu0 %v769
    %1595 = vmatpush.msra.mxu0 %v761
    %1596 = vmatpush.msra.mxu0 %v753
    %1597 = vmatpush.msra.mxu0 %v745
    %1598 = vmatpush.msra.mxu0 %v737
    %1599 = vmatmul.f32.gmra.mxu0 %v729
    %v1600 = vpop.f32.mrf.mxu0
    %v1601 = vadd.f32 %v1251, %v1600
    %1602 = vdwg.mxu0
    %1603 = vmatpush.msra.mxu0 %v985
    %1604 = vmatpush.msra.mxu0 %v977
    %1605 = vmatpush.msra.mxu0 %v969
    %1606 = vmatpush.msra.mxu0 %v961
    %1607 = vmatpush.msra.mxu0 %v953
    %1608 = vmatpush.msra.mxu0 %v945
    %1609 = vmatpush.msra.mxu0 %v937
    %1610 = vmatpush.msra.mxu0 %v929
    %1611 = vmatpush.msra.mxu0 %v921
    %1612 = vmatpush.msra.mxu0 %v913
    %1613 = vmatpush.msra.mxu0 %v905
    %1614 = vmatpush.msra.mxu0 %v897
    %1615 = vmatpush.msra.mxu0 %v889
    %1616 = vmatpush.msra.mxu0 %v881
    %1617 = vmatpush.msra.mxu0 %v873
    %1618 = vmatpush.msra.mxu0 %v865
    %1619 = vmatmul.f32.gmra.mxu0 %v730
    %v1620 = vpop.f32.mrf.mxu0
    %v1621 = vadd.f32 %v1601, %v1620
    %1622 = vdwg.mxu0
    %1623 = vmatpush.msra.mxu0 %v1113
    %1624 = vmatpush.msra.mxu0 %v1105
    %1625 = vmatpush.msra.mxu0 %v1097
    %1626 = vmatpush.msra.mxu0 %v1089
    %1627 = vmatpush.msra.mxu0 %v1081
    %1628 = vmatpush.msra.mxu0 %v1073
    %1629 = vmatpush.msra.mxu0 %v1065
    %1630 = vmatpush.msra.mxu0 %v1057
    %1631 = vmatpush.msra.mxu0 %v1049
    %1632 = vmatpush.msra.mxu0 %v1041
    %1633 = vmatpush.msra.mxu0 %v1033
    %1634 = vmatpush.msra.mxu0 %v1025
    %1635 = vmatpush.msra.mxu0 %v1017
    %1636 = vmatpush.msra.mxu0 %v1009
    %1637 = vmatpush.msra.mxu0 %v1001
    %1638 = vmatpush.msra.mxu0 %v993
    %1639 = vmatmul.f32.gmra.mxu0 %v731
    %v1640 = vpop.f32.mrf.mxu0
    %v1641 = vadd.f32 %v1621, %v1640
    %1642 = vdwg.mxu0
    %1643 = vmatpush.msra.mxu0 %v1241
    %1644 = vmatpush.msra.mxu0 %v1233
    %1645 = vmatpush.msra.mxu0 %v1225
    %1646 = vmatpush.msra.mxu0 %v1217
    %1647 = vmatpush.msra.mxu0 %v1209
    %1648 = vmatpush.msra.mxu0 %v1201
    %1649 = vmatpush.msra.mxu0 %v1193
    %1650 = vmatpush.msra.mxu0 %v1185
    %1651 = vmatpush.msra.mxu0 %v1177
    %1652 = vmatpush.msra.mxu0 %v1169
    %1653 = vmatpush.msra.mxu0 %v1161
    %1654 = vmatpush.msra.mxu0 %v1153
    %1655 = vmatpush.msra.mxu0 %v1145
    %1656 = vmatpush.msra.mxu0 %v1137
    %1657 = vmatpush.msra.mxu0 %v1129
    %1658 = vmatpush.msra.mxu0 %v1121
    %1659 = vmatmul.f32.gmra.mxu0 %v732
    %v1660 = vpop.f32.mrf.mxu0
    %v1661 = vadd.f32 %v1641, %v1660
    %1662 = vdwg.mxu0
    %1663 = vmatpush.msra.mxu0 %v858
    %1664 = vmatpush.msra.mxu0 %v850
    %1665 = vmatpush.msra.mxu0 %v842
    %1666 = vmatpush.msra.mxu0 %v834
    %1667 = vmatpush.msra.mxu0 %v826
    %1668 = vmatpush.msra.mxu0 %v818
    %1669 = vmatpush.msra.mxu0 %v810
    %1670 = vmatpush.msra.mxu0 %v802
    %1671 = vmatpush.msra.mxu0 %v794
    %1672 = vmatpush.msra.mxu0 %v786
    %1673 = vmatpush.msra.mxu0 %v778
    %1674 = vmatpush.msra.mxu0 %v770
    %1675 = vmatpush.msra.mxu0 %v762
    %1676 = vmatpush.msra.mxu0 %v754
    %1677 = vmatpush.msra.mxu0 %v746
    %1678 = vmatpush.msra.mxu0 %v738
    %1679 = vmatmul.f32.gmra.mxu0 %v729
    %v1680 = vpop.f32.mrf.mxu0
    %v1681 = vadd.f32 %v1252, %v1680
    %1682 = vdwg.mxu0
    %1683 = vmatpush.msra.mxu0 %v986
    %1684 = vmatpush.msra.mxu0 %v978
    %1685 = vmatpush.msra.mxu0 %v970
    %1686 = vmatpush.msra.mxu0 %v962
    %1687 = vmatpush.msra.mxu0 %v954
    %1688 = vmatpush.msra.mxu0 %v946
    %1689 = vmatpush.msra.mxu0 %v938
    %1690 = vmatpush.msra.mxu0 %v930
    %1691 = vmatpush.msra.mxu0 %v922
    %1692 = vmatpush.msra.mxu0 %v914
    %1693 = vmatpush.msra.mxu0 %v906
    %1694 = vmatpush.msra.mxu0 %v898
    %1695 = vmatpush.msra.mxu0 %v890
    %1696 = vmatpush.msra.mxu0 %v882
    %1697 = vmatpush.msra.mxu0 %v874
    %1698 = vmatpush.msra.mxu0 %v866
    %1699 = vmatmul.f32.gmra.mxu0 %v730
    %v1700 = vpop.f32.mrf.mxu0
    %v1701 = vadd.f32 %v1681, %v1700
    %1702 = vdwg.mxu0
    %1703 = vmatpush.msra.mxu0 %v1114
    %1704 = vmatpush.msra.mxu0 %v1106
    %1705 = vmatpush.msra.mxu0 %v1098
    %1706 = vmatpush.msra.mxu0 %v1090
    %1707 = vmatpush.msra.mxu0 %v1082
    %1708 = vmatpush.msra.mxu0 %v1074
    %1709 = vmatpush.msra.mxu0 %v1066
    %1710 = vmatpush.msra.mxu0 %v1058
    %1711 = vmatpush.msra.mxu0 %v1050
    %1712 = vmatpush.msra.mxu0 %v1042
    %1713 = vmatpush.msra.mxu0 %v1034
    %1714 = vmatpush.msra.mxu0 %v1026
    %1715 = vmatpush.msra.mxu0 %v1018
    %1716 = vmatpush.msra.mxu0 %v1010
    %1717 = vmatpush.msra.mxu0 %v1002
    %1718 = vmatpush.msra.mxu0 %v994
    %1719 = vmatmul.f32.gmra.mxu0 %v731
    %v1720 = vpop.f32.mrf.mxu0
    %v1721 = vadd.f32 %v1701, %v1720
    %1722 = vdwg.mxu0
    %1723 = vmatpush.msra.mxu0 %v1242
    %1724 = vmatpush.msra.mxu0 %v1234
    %1725 = vmatpush.msra.mxu0 %v1226
    %1726 = vmatpush.msra.mxu0 %v1218
    %1727 = vmatpush.msra.mxu0 %v1210
    %1728 = vmatpush.msra.mxu0 %v1202
    %1729 = vmatpush.msra.mxu0 %v1194
    %1730 = vmatpush.msra.mxu0 %v1186
    %1731 = vmatpush.msra.mxu0 %v1178
    %1732 = vmatpush.msra.mxu0 %v1170
    %1733 = vmatpush.msra.mxu0 %v1162
    %1734 = vmatpush.msra.mxu0 %v1154
    %1735 = vmatpush.msra.mxu0 %v1146
    %1736 = vmatpush.msra.mxu0 %v1138
    %1737 = vmatpush.msra.mxu0 %v1130
    %1738 = vmatpush.msra.mxu0 %v1122
    %1739 = vmatmul.f32.gmra.mxu0 %v732
    %v1740 = vpop.f32.mrf.mxu0
    %v1741 = vadd.f32 %v1721, %v1740
    %1742 = vdwg.mxu0
    %1743 = vmatpush.msra.mxu0 %v859
    %1744 = vmatpush.msra.mxu0 %v851
    %1745 = vmatpush.msra.mxu0 %v843
    %1746 = vmatpush.msra.mxu0 %v835
    %1747 = vmatpush.msra.mxu0 %v827
    %1748 = vmatpush.msra.mxu0 %v819
    %1749 = vmatpush.msra.mxu0 %v811
    %1750 = vmatpush.msra.mxu0 %v803
    %1751 = vmatpush.msra.mxu0 %v795
    %1752 = vmatpush.msra.mxu0 %v787
    %1753 = vmatpush.msra.mxu0 %v779
    %1754 = vmatpush.msra.mxu0 %v771
    %1755 = vmatpush.msra.mxu0 %v763
    %1756 = vmatpush.msra.mxu0 %v755
    %1757 = vmatpush.msra.mxu0 %v747
    %1758 = vmatpush.msra.mxu0 %v739
    %1759 = vmatmul.f32.gmra.mxu0 %v729
    %v1760 = vpop.f32.mrf.mxu0
    %v1761 = vadd.f32 %v1253, %v1760
    %1762 = vdwg.mxu0
    %1763 = vmatpush.msra.mxu0 %v987
    %1764 = vmatpush.msra.mxu0 %v979
    %1765 = vmatpush.msra.mxu0 %v971
    %1766 = vmatpush.msra.mxu0 %v963
    %1767 = vmatpush.msra.mxu0 %v955
    %1768 = vmatpush.msra.mxu0 %v947
    %1769 = vmatpush.msra.mxu0 %v939
    %1770 = vmatpush.msra.mxu0 %v931
    %1771 = vmatpush.msra.mxu0 %v923
    %1772 = vmatpush.msra.mxu0 %v915
    %1773 = vmatpush.msra.mxu0 %v907
    %1774 = vmatpush.msra.mxu0 %v899
    %1775 = vmatpush.msra.mxu0 %v891
    %1776 = vmatpush.msra.mxu0 %v883
    %1777 = vmatpush.msra.mxu0 %v875
    %1778 = vmatpush.msra.mxu0 %v867
    %1779 = vmatmul.f32.gmra.mxu0 %v730
    %v1780 = vpop.f32.mrf.mxu0
    %v1781 = vadd.f32 %v1761, %v1780
    %1782 = vdwg.mxu0
    %1783 = vmatpush.msra.mxu0 %v1115
    %1784 = vmatpush.msra.mxu0 %v1107
    %1785 = vmatpush.msra.mxu0 %v1099
    %1786 = vmatpush.msra.mxu0 %v1091
    %1787 = vmatpush.msra.mxu0 %v1083
    %1788 = vmatpush.msra.mxu0 %v1075
    %1789 = vmatpush.msra.mxu0 %v1067
    %1790 = vmatpush.msra.mxu0 %v1059
    %1791 = vmatpush.msra.mxu0 %v1051
    %1792 = vmatpush.msra.mxu0 %v1043
    %1793 = vmatpush.msra.mxu0 %v1035
    %1794 = vmatpush.msra.mxu0 %v1027
    %1795 = vmatpush.msra.mxu0 %v1019
    %1796 = vmatpush.msra.mxu0 %v1011
    %1797 = vmatpush.msra.mxu0 %v1003
    %1798 = vmatpush.msra.mxu0 %v995
    %1799 = vmatmul.f32.gmra.mxu0 %v731
    %v1800 = vpop.f32.mrf.mxu0
    %v1801 = vadd.f32 %v1781, %v1800
    %1802 = vdwg.mxu0
    %1803 = vmatpush.msra.mxu0 %v1243
    %1804 = vmatpush.msra.mxu0 %v1235
    %1805 = vmatpush.msra.mxu0 %v1227
    %1806 = vmatpush.msra.mxu0 %v1219
    %1807 = vmatpush.msra.mxu0 %v1211
    %1808 = vmatpush.msra.mxu0 %v1203
    %1809 = vmatpush.msra.mxu0 %v1195
    %1810 = vmatpush.msra.mxu0 %v1187
    %1811 = vmatpush.msra.mxu0 %v1179
    %1812 = vmatpush.msra.mxu0 %v1171
    %1813 = vmatpush.msra.mxu0 %v1163
    %1814 = vmatpush.msra.mxu0 %v1155
    %1815 = vmatpush.msra.mxu0 %v1147
    %1816 = vmatpush.msra.mxu0 %v1139
    %1817 = vmatpush.msra.mxu0 %v1131
    %1818 = vmatpush.msra.mxu0 %v1123
    %1819 = vmatmul.f32.gmra.mxu0 %v732
    %v1820 = vpop.f32.mrf.mxu0
    %v1821 = vadd.f32 %v1801, %v1820
    %1822 = vdwg.mxu0
    %1823 = vmatpush.msra.mxu0 %v860
    %1824 = vmatpush.msra.mxu0 %v852
    %1825 = vmatpush.msra.mxu0 %v844
    %1826 = vmatpush.msra.mxu0 %v836
    %1827 = vmatpush.msra.mxu0 %v828
    %1828 = vmatpush.msra.mxu0 %v820
    %1829 = vmatpush.msra.mxu0 %v812
    %1830 = vmatpush.msra.mxu0 %v804
    %1831 = vmatpush.msra.mxu0 %v796
    %1832 = vmatpush.msra.mxu0 %v788
    %1833 = vmatpush.msra.mxu0 %v780
    %1834 = vmatpush.msra.mxu0 %v772
    %1835 = vmatpush.msra.mxu0 %v764
    %1836 = vmatpush.msra.mxu0 %v756
    %1837 = vmatpush.msra.mxu0 %v748
    %1838 = vmatpush.msra.mxu0 %v740
    %1839 = vmatmul.f32.gmra.mxu0 %v729
    %v1840 = vpop.f32.mrf.mxu0
    %v1841 = vadd.f32 %v1254, %v1840
    %1842 = vdwg.mxu0
    %1843 = vmatpush.msra.mxu0 %v988
    %1844 = vmatpush.msra.mxu0 %v980
    %1845 = vmatpush.msra.mxu0 %v972
    %1846 = vmatpush.msra.mxu0 %v964
    %1847 = vmatpush.msra.mxu0 %v956
    %1848 = vmatpush.msra.mxu0 %v948
    %1849 = vmatpush.msra.mxu0 %v940
    %1850 = vmatpush.msra.mxu0 %v932
    %1851 = vmatpush.msra.mxu0 %v924
    %1852 = vmatpush.msra.mxu0 %v916
    %1853 = vmatpush.msra.mxu0 %v908
    %1854 = vmatpush.msra.mxu0 %v900
    %1855 = vmatpush.msra.mxu0 %v892
    %1856 = vmatpush.msra.mxu0 %v884
    %1857 = vmatpush.msra.mxu0 %v876
    %1858 = vmatpush.msra.mxu0 %v868
    %1859 = vmatmul.f32.gmra.mxu0 %v730
    %v1860 = vpop.f32.mrf.mxu0
    %v1861 = vadd.f32 %v1841, %v1860
    %1862 = vdwg.mxu0
    %1863 = vmatpush.msra.mxu0 %v1116
    %1864 = vmatpush.msra.mxu0 %v1108
    %1865 = vmatpush.msra.mxu0 %v1100
    %1866 = vmatpush.msra.mxu0 %v1092
    %1867 = vmatpush.msra.mxu0 %v1084
    %1868 = vmatpush.msra.mxu0 %v1076
    %1869 = vmatpush.msra.mxu0 %v1068
    %1870 = vmatpush.msra.mxu0 %v1060
    %1871 = vmatpush.msra.mxu0 %v1052
    %1872 = vmatpush.msra.mxu0 %v1044
    %1873 = vmatpush.msra.mxu0 %v1036
    %1874 = vmatpush.msra.mxu0 %v1028
    %1875 = vmatpush.msra.mxu0 %v1020
    %1876 = vmatpush.msra.mxu0 %v1012
    %1877 = vmatpush.msra.mxu0 %v1004
    %1878 = vmatpush.msra.mxu0 %v996
    %1879 = vmatmul.f32.gmra.mxu0 %v731
    %v1880 = vpop.f32.mrf.mxu0
    %v1881 = vadd.f32 %v1861, %v1880
    %1882 = vdwg.mxu0
    %1883 = vmatpush.msra.mxu0 %v1244
    %1884 = vmatpush.msra.mxu0 %v1236
    %1885 = vmatpush.msra.mxu0 %v1228
    %1886 = vmatpush.msra.mxu0 %v1220
    %1887 = vmatpush.msra.mxu0 %v1212
    %1888 = vmatpush.msra.mxu0 %v1204
    %1889 = vmatpush.msra.mxu0 %v1196
    %1890 = vmatpush.msra.mxu0 %v1188
    %1891 = vmatpush.msra.mxu0 %v1180
    %1892 = vmatpush.msra.mxu0 %v1172
    %1893 = vmatpush.msra.mxu0 %v1164
    %1894 = vmatpush.msra.mxu0 %v1156
    %1895 = vmatpush.msra.mxu0 %v1148
    %1896 = vmatpush.msra.mxu0 %v1140
    %1897 = vmatpush.msra.mxu0 %v1132
    %1898 = vmatpush.msra.mxu0 %v1124
    %1899 = vmatmul.f32.gmra.mxu0 %v732
    %v1900 = vpop.f32.mrf.mxu0
    %v1901 = vadd.f32 %v1881, %v1900
    %1902 = vdwg.mxu0
    %v1903 = vmax.f32 %v1341, 0.0
    %v1904 = vmax.f32 %v1421, 0.0
    %v1905 = vmax.f32 %v1501, 0.0
    %v1906 = vmax.f32 %v1581, 0.0
    %v1907 = vmax.f32 %v1661, 0.0
    %v1908 = vmax.f32 %v1741, 0.0
    %v1909 = vmax.f32 %v1821, 0.0
    %v1910 = vmax.f32 %v1901, 0.0
    %v1911 = vld [vmem:[#allocation20] sm:$0xff]
    %v1912 = vld [vmem:[#allocation20 + $0x8] sm:$0xff]
    %v1913 = vld [vmem:[#allocation20 + $0x10] sm:$0xff]
    %v1914 = vld [vmem:[#allocation20 + $0x18] sm:$0xff]
    %v1915 = vld [vmem:[#allocation20 + $0x20] sm:$0xff]
    %v1916 = vld [vmem:[#allocation20 + $0x28] sm:$0xff]
    %v1917 = vld [vmem:[#allocation20 + $0x30] sm:$0xff]
    %v1918 = vld [vmem:[#allocation20 + $0x38] sm:$0xff]
    %v1919 = vld [vmem:[#allocation20 + $0x40] sm:$0xff]
    %v1920 = vld [vmem:[#allocation20 + $0x48] sm:$0xff]
    %v1921 = vld [vmem:[#allocation20 + $0x50] sm:$0xff]
    %v1922 = vld [vmem:[#allocation20 + $0x58] sm:$0xff]
    %v1923 = vld [vmem:[#allocation20 + $0x60] sm:$0xff]
    %v1924 = vld [vmem:[#allocation20 + $0x68] sm:$0xff]
    %v1925 = vld [vmem:[#allocation20 + $0x70] sm:$0xff]
    %v1926 = vld [vmem:[#allocation20 + $0x78] sm:$0xff]
    %v1927 = vld [vmem:[#allocation20 + $0x80] sm:$0xff]
    %v1928 = vld [vmem:[#allocation20 + $0x88] sm:$0xff]
    %v1929 = vld [vmem:[#allocation20 + $0x90] sm:$0xff]
    %v1930 = vld [vmem:[#allocation20 + $0x98] sm:$0xff]
    %v1931 = vld [vmem:[#allocation20 + $0xa0] sm:$0xff]
    %v1932 = vld [vmem:[#allocation20 + $0xa8] sm:$0xff]
    %v1933 = vld [vmem:[#allocation20 + $0xb0] sm:$0xff]
    %v1934 = vld [vmem:[#allocation20 + $0xb8] sm:$0xff]
    %v1935 = vld [vmem:[#allocation20 + $0xc0] sm:$0xff]
    %v1936 = vld [vmem:[#allocation20 + $0xc8] sm:$0xff]
    %v1937 = vld [vmem:[#allocation20 + $0xd0] sm:$0xff]
    %v1938 = vld [vmem:[#allocation20 + $0xd8] sm:$0xff]
    %v1939 = vld [vmem:[#allocation20 + $0xe0] sm:$0xff]
    %v1940 = vld [vmem:[#allocation20 + $0xe8] sm:$0xff]
    %v1941 = vld [vmem:[#allocation20 + $0xf0] sm:$0xff]
    %v1942 = vld [vmem:[#allocation20 + $0xf8] sm:$0xff]
    %v1943 = vld [vmem:[#allocation20 + $0x100] sm:$0xff]
    %v1944 = vld [vmem:[#allocation20 + $0x108] sm:$0xff]
    %v1945 = vld [vmem:[#allocation20 + $0x110] sm:$0xff]
    %v1946 = vld [vmem:[#allocation20 + $0x118] sm:$0xff]
    %v1947 = vld [vmem:[#allocation20 + $0x120] sm:$0xff]
    %v1948 = vld [vmem:[#allocation20 + $0x128] sm:$0xff]
    %v1949 = vld [vmem:[#allocation20 + $0x130] sm:$0xff]
    %v1950 = vld [vmem:[#allocation20 + $0x138] sm:$0xff]
    %v1951 = vld [vmem:[#allocation20 + $0x140] sm:$0xff]
    %v1952 = vld [vmem:[#allocation20 + $0x148] sm:$0xff]
    %v1953 = vld [vmem:[#allocation20 + $0x150] sm:$0xff]
    %v1954 = vld [vmem:[#allocation20 + $0x158] sm:$0xff]
    %v1955 = vld [vmem:[#allocation20 + $0x160] sm:$0xff]
    %v1956 = vld [vmem:[#allocation20 + $0x168] sm:$0xff]
    %v1957 = vld [vmem:[#allocation20 + $0x170] sm:$0xff]
    %v1958 = vld [vmem:[#allocation20 + $0x178] sm:$0xff]
    %v1959 = vld [vmem:[#allocation20 + $0x180] sm:$0xff]
    %v1960 = vld [vmem:[#allocation20 + $0x188] sm:$0xff]
    %v1961 = vld [vmem:[#allocation20 + $0x190] sm:$0xff]
    %v1962 = vld [vmem:[#allocation20 + $0x198] sm:$0xff]
    %v1963 = vld [vmem:[#allocation20 + $0x1a0] sm:$0xff]
    %v1964 = vld [vmem:[#allocation20 + $0x1a8] sm:$0xff]
    %v1965 = vld [vmem:[#allocation20 + $0x1b0] sm:$0xff]
    %v1966 = vld [vmem:[#allocation20 + $0x1b8] sm:$0xff]
    %v1967 = vld [vmem:[#allocation20 + $0x1c0] sm:$0xff]
    %v1968 = vld [vmem:[#allocation20 + $0x1c8] sm:$0xff]
    %v1969 = vld [vmem:[#allocation20 + $0x1d0] sm:$0xff]
    %v1970 = vld [vmem:[#allocation20 + $0x1d8] sm:$0xff]
    %v1971 = vld [vmem:[#allocation20 + $0x1e0] sm:$0xff]
    %v1972 = vld [vmem:[#allocation20 + $0x1e8] sm:$0xff]
    %v1973 = vld [vmem:[#allocation20 + $0x1f0] sm:$0xff]
    %v1974 = vld [vmem:[#allocation20 + $0x1f8] sm:$0xff]
    %v1975 = vld [vmem:[#allocation20 + $0x200] sm:$0xff]
    %v1976 = vld [vmem:[#allocation20 + $0x208] sm:$0xff]
    %v1977 = vld [vmem:[#allocation20 + $0x210] sm:$0xff]
    %v1978 = vld [vmem:[#allocation20 + $0x218] sm:$0xff]
    %v1979 = vld [vmem:[#allocation20 + $0x220] sm:$0xff]
    %v1980 = vld [vmem:[#allocation20 + $0x228] sm:$0xff]
    %v1981 = vld [vmem:[#allocation20 + $0x230] sm:$0xff]
    %v1982 = vld [vmem:[#allocation20 + $0x238] sm:$0xff]
    %v1983 = vld [vmem:[#allocation20 + $0x240] sm:$0xff]
    %v1984 = vld [vmem:[#allocation20 + $0x248] sm:$0xff]
    %v1985 = vld [vmem:[#allocation20 + $0x250] sm:$0xff]
    %v1986 = vld [vmem:[#allocation20 + $0x258] sm:$0xff]
    %v1987 = vld [vmem:[#allocation20 + $0x260] sm:$0xff]
    %v1988 = vld [vmem:[#allocation20 + $0x268] sm:$0xff]
    %v1989 = vld [vmem:[#allocation20 + $0x270] sm:$0xff]
    %v1990 = vld [vmem:[#allocation20 + $0x278] sm:$0xff]
    %v1991 = vld [vmem:[#allocation20 + $0x280] sm:$0xff]
    %v1992 = vld [vmem:[#allocation20 + $0x288] sm:$0xff]
    %v1993 = vld [vmem:[#allocation20 + $0x290] sm:$0xff]
    %v1994 = vld [vmem:[#allocation20 + $0x298] sm:$0xff]
    %v1995 = vld [vmem:[#allocation20 + $0x2a0] sm:$0xff]
    %v1996 = vld [vmem:[#allocation20 + $0x2a8] sm:$0xff]
    %v1997 = vld [vmem:[#allocation20 + $0x2b0] sm:$0xff]
    %v1998 = vld [vmem:[#allocation20 + $0x2b8] sm:$0xff]
    %v1999 = vld [vmem:[#allocation20 + $0x2c0] sm:$0xff]
    %v2000 = vld [vmem:[#allocation20 + $0x2c8] sm:$0xff]
    %v2001 = vld [vmem:[#allocation20 + $0x2d0] sm:$0xff]
    %v2002 = vld [vmem:[#allocation20 + $0x2d8] sm:$0xff]
    %v2003 = vld [vmem:[#allocation20 + $0x2e0] sm:$0xff]
    %v2004 = vld [vmem:[#allocation20 + $0x2e8] sm:$0xff]
    %v2005 = vld [vmem:[#allocation20 + $0x2f0] sm:$0xff]
    %v2006 = vld [vmem:[#allocation20 + $0x2f8] sm:$0xff]
    %v2007 = vld [vmem:[#allocation20 + $0x300] sm:$0xff]
    %v2008 = vld [vmem:[#allocation20 + $0x308] sm:$0xff]
    %v2009 = vld [vmem:[#allocation20 + $0x310] sm:$0xff]
    %v2010 = vld [vmem:[#allocation20 + $0x318] sm:$0xff]
    %v2011 = vld [vmem:[#allocation20 + $0x320] sm:$0xff]
    %v2012 = vld [vmem:[#allocation20 + $0x328] sm:$0xff]
    %v2013 = vld [vmem:[#allocation20 + $0x330] sm:$0xff]
    %v2014 = vld [vmem:[#allocation20 + $0x338] sm:$0xff]
    %v2015 = vld [vmem:[#allocation20 + $0x340] sm:$0xff]
    %v2016 = vld [vmem:[#allocation20 + $0x348] sm:$0xff]
    %v2017 = vld [vmem:[#allocation20 + $0x350] sm:$0xff]
    %v2018 = vld [vmem:[#allocation20 + $0x358] sm:$0xff]
    %v2019 = vld [vmem:[#allocation20 + $0x360] sm:$0xff]
    %v2020 = vld [vmem:[#allocation20 + $0x368] sm:$0xff]
    %v2021 = vld [vmem:[#allocation20 + $0x370] sm:$0xff]
    %v2022 = vld [vmem:[#allocation20 + $0x378] sm:$0xff]
    %v2023 = vld [vmem:[#allocation20 + $0x380] sm:$0xff]
    %v2024 = vld [vmem:[#allocation20 + $0x388] sm:$0xff]
    %v2025 = vld [vmem:[#allocation20 + $0x390] sm:$0xff]
    %v2026 = vld [vmem:[#allocation20 + $0x398] sm:$0xff]
    %v2027 = vld [vmem:[#allocation20 + $0x3a0] sm:$0xff]
    %v2028 = vld [vmem:[#allocation20 + $0x3a8] sm:$0xff]
    %v2029 = vld [vmem:[#allocation20 + $0x3b0] sm:$0xff]
    %v2030 = vld [vmem:[#allocation20 + $0x3b8] sm:$0xff]
    %v2031 = vld [vmem:[#allocation20 + $0x3c0] sm:$0xff]
    %v2032 = vld [vmem:[#allocation20 + $0x3c8] sm:$0xff]
    %v2033 = vld [vmem:[#allocation20 + $0x3d0] sm:$0xff]
    %v2034 = vld [vmem:[#allocation20 + $0x3d8] sm:$0xff]
    %v2035 = vld [vmem:[#allocation20 + $0x3e0] sm:$0xff]
    %v2036 = vld [vmem:[#allocation20 + $0x3e8] sm:$0xff]
    %v2037 = vld [vmem:[#allocation20 + $0x3f0] sm:$0xff]
    %v2038 = vld [vmem:[#allocation20 + $0x3f8] sm:$0xff]
    %v2039 = vld [vmem:[#allocation20 + $0x400] sm:$0xff]
    %v2040 = vld [vmem:[#allocation20 + $0x408] sm:$0xff]
    %v2041 = vld [vmem:[#allocation20 + $0x410] sm:$0xff]
    %v2042 = vld [vmem:[#allocation20 + $0x418] sm:$0xff]
    %v2043 = vld [vmem:[#allocation20 + $0x420] sm:$0xff]
    %v2044 = vld [vmem:[#allocation20 + $0x428] sm:$0xff]
    %v2045 = vld [vmem:[#allocation20 + $0x430] sm:$0xff]
    %v2046 = vld [vmem:[#allocation20 + $0x438] sm:$0xff]
    %v2047 = vld [vmem:[#allocation20 + $0x440] sm:$0xff]
    %v2048 = vld [vmem:[#allocation20 + $0x448] sm:$0xff]
    %v2049 = vld [vmem:[#allocation20 + $0x450] sm:$0xff]
    %v2050 = vld [vmem:[#allocation20 + $0x458] sm:$0xff]
    %v2051 = vld [vmem:[#allocation20 + $0x460] sm:$0xff]
    %v2052 = vld [vmem:[#allocation20 + $0x468] sm:$0xff]
    %v2053 = vld [vmem:[#allocation20 + $0x470] sm:$0xff]
    %v2054 = vld [vmem:[#allocation20 + $0x478] sm:$0xff]
    %v2055 = vld [vmem:[#allocation20 + $0x480] sm:$0xff]
    %v2056 = vld [vmem:[#allocation20 + $0x488] sm:$0xff]
    %v2057 = vld [vmem:[#allocation20 + $0x490] sm:$0xff]
    %v2058 = vld [vmem:[#allocation20 + $0x498] sm:$0xff]
    %v2059 = vld [vmem:[#allocation20 + $0x4a0] sm:$0xff]
    %v2060 = vld [vmem:[#allocation20 + $0x4a8] sm:$0xff]
    %v2061 = vld [vmem:[#allocation20 + $0x4b0] sm:$0xff]
    %v2062 = vld [vmem:[#allocation20 + $0x4b8] sm:$0xff]
    %v2063 = vld [vmem:[#allocation20 + $0x4c0] sm:$0xff]
    %v2064 = vld [vmem:[#allocation20 + $0x4c8] sm:$0xff]
    %v2065 = vld [vmem:[#allocation20 + $0x4d0] sm:$0xff]
    %v2066 = vld [vmem:[#allocation20 + $0x4d8] sm:$0xff]
    %v2067 = vld [vmem:[#allocation20 + $0x4e0] sm:$0xff]
    %v2068 = vld [vmem:[#allocation20 + $0x4e8] sm:$0xff]
    %v2069 = vld [vmem:[#allocation20 + $0x4f0] sm:$0xff]
    %v2070 = vld [vmem:[#allocation20 + $0x4f8] sm:$0xff]
    %v2071 = vld [vmem:[#allocation20 + $0x500] sm:$0xff]
    %v2072 = vld [vmem:[#allocation20 + $0x508] sm:$0xff]
    %v2073 = vld [vmem:[#allocation20 + $0x510] sm:$0xff]
    %v2074 = vld [vmem:[#allocation20 + $0x518] sm:$0xff]
    %v2075 = vld [vmem:[#allocation20 + $0x520] sm:$0xff]
    %v2076 = vld [vmem:[#allocation20 + $0x528] sm:$0xff]
    %v2077 = vld [vmem:[#allocation20 + $0x530] sm:$0xff]
    %v2078 = vld [vmem:[#allocation20 + $0x538] sm:$0xff]
    %v2079 = vld [vmem:[#allocation20 + $0x540] sm:$0xff]
    %v2080 = vld [vmem:[#allocation20 + $0x548] sm:$0xff]
    %v2081 = vld [vmem:[#allocation20 + $0x550] sm:$0xff]
    %v2082 = vld [vmem:[#allocation20 + $0x558] sm:$0xff]
    %v2083 = vld [vmem:[#allocation20 + $0x560] sm:$0xff]
    %v2084 = vld [vmem:[#allocation20 + $0x568] sm:$0xff]
    %v2085 = vld [vmem:[#allocation20 + $0x570] sm:$0xff]
    %v2086 = vld [vmem:[#allocation20 + $0x578] sm:$0xff]
    %v2087 = vld [vmem:[#allocation20 + $0x580] sm:$0xff]
    %v2088 = vld [vmem:[#allocation20 + $0x588] sm:$0xff]
    %v2089 = vld [vmem:[#allocation20 + $0x590] sm:$0xff]
    %v2090 = vld [vmem:[#allocation20 + $0x598] sm:$0xff]
    %v2091 = vld [vmem:[#allocation20 + $0x5a0] sm:$0xff]
    %v2092 = vld [vmem:[#allocation20 + $0x5a8] sm:$0xff]
    %v2093 = vld [vmem:[#allocation20 + $0x5b0] sm:$0xff]
    %v2094 = vld [vmem:[#allocation20 + $0x5b8] sm:$0xff]
    %v2095 = vld [vmem:[#allocation20 + $0x5c0] sm:$0xff]
    %v2096 = vld [vmem:[#allocation20 + $0x5c8] sm:$0xff]
    %v2097 = vld [vmem:[#allocation20 + $0x5d0] sm:$0xff]
    %v2098 = vld [vmem:[#allocation20 + $0x5d8] sm:$0xff]
    %v2099 = vld [vmem:[#allocation20 + $0x5e0] sm:$0xff]
    %v2100 = vld [vmem:[#allocation20 + $0x5e8] sm:$0xff]
    %v2101 = vld [vmem:[#allocation20 + $0x5f0] sm:$0xff]
    %v2102 = vld [vmem:[#allocation20 + $0x5f8] sm:$0xff]
    %v2103 = vld [vmem:[#allocation20 + $0x600] sm:$0xff]
    %v2104 = vld [vmem:[#allocation20 + $0x608] sm:$0xff]
    %v2105 = vld [vmem:[#allocation20 + $0x610] sm:$0xff]
    %v2106 = vld [vmem:[#allocation20 + $0x618] sm:$0xff]
    %v2107 = vld [vmem:[#allocation20 + $0x620] sm:$0xff]
    %v2108 = vld [vmem:[#allocation20 + $0x628] sm:$0xff]
    %v2109 = vld [vmem:[#allocation20 + $0x630] sm:$0xff]
    %v2110 = vld [vmem:[#allocation20 + $0x638] sm:$0xff]
    %v2111 = vld [vmem:[#allocation20 + $0x640] sm:$0xff]
    %v2112 = vld [vmem:[#allocation20 + $0x648] sm:$0xff]
    %v2113 = vld [vmem:[#allocation20 + $0x650] sm:$0xff]
    %v2114 = vld [vmem:[#allocation20 + $0x658] sm:$0xff]
    %v2115 = vld [vmem:[#allocation20 + $0x660] sm:$0xff]
    %v2116 = vld [vmem:[#allocation20 + $0x668] sm:$0xff]
    %v2117 = vld [vmem:[#allocation20 + $0x670] sm:$0xff]
    %v2118 = vld [vmem:[#allocation20 + $0x678] sm:$0xff]
    %v2119 = vld [vmem:[#allocation20 + $0x680] sm:$0xff]
    %v2120 = vld [vmem:[#allocation20 + $0x688] sm:$0xff]
    %v2121 = vld [vmem:[#allocation20 + $0x690] sm:$0xff]
    %v2122 = vld [vmem:[#allocation20 + $0x698] sm:$0xff]
    %v2123 = vld [vmem:[#allocation20 + $0x6a0] sm:$0xff]
    %v2124 = vld [vmem:[#allocation20 + $0x6a8] sm:$0xff]
    %v2125 = vld [vmem:[#allocation20 + $0x6b0] sm:$0xff]
    %v2126 = vld [vmem:[#allocation20 + $0x6b8] sm:$0xff]
    %v2127 = vld [vmem:[#allocation20 + $0x6c0] sm:$0xff]
    %v2128 = vld [vmem:[#allocation20 + $0x6c8] sm:$0xff]
    %v2129 = vld [vmem:[#allocation20 + $0x6d0] sm:$0xff]
    %v2130 = vld [vmem:[#allocation20 + $0x6d8] sm:$0xff]
    %v2131 = vld [vmem:[#allocation20 + $0x6e0] sm:$0xff]
    %v2132 = vld [vmem:[#allocation20 + $0x6e8] sm:$0xff]
    %v2133 = vld [vmem:[#allocation20 + $0x6f0] sm:$0xff]
    %v2134 = vld [vmem:[#allocation20 + $0x6f8] sm:$0xff]
    %v2135 = vld [vmem:[#allocation20 + $0x700] sm:$0xff]
    %v2136 = vld [vmem:[#allocation20 + $0x708] sm:$0xff]
    %v2137 = vld [vmem:[#allocation20 + $0x710] sm:$0xff]
    %v2138 = vld [vmem:[#allocation20 + $0x718] sm:$0xff]
    %v2139 = vld [vmem:[#allocation20 + $0x720] sm:$0xff]
    %v2140 = vld [vmem:[#allocation20 + $0x728] sm:$0xff]
    %v2141 = vld [vmem:[#allocation20 + $0x730] sm:$0xff]
    %v2142 = vld [vmem:[#allocation20 + $0x738] sm:$0xff]
    %v2143 = vld [vmem:[#allocation20 + $0x740] sm:$0xff]
    %v2144 = vld [vmem:[#allocation20 + $0x748] sm:$0xff]
    %v2145 = vld [vmem:[#allocation20 + $0x750] sm:$0xff]
    %v2146 = vld [vmem:[#allocation20 + $0x758] sm:$0xff]
    %v2147 = vld [vmem:[#allocation20 + $0x760] sm:$0xff]
    %v2148 = vld [vmem:[#allocation20 + $0x768] sm:$0xff]
    %v2149 = vld [vmem:[#allocation20 + $0x770] sm:$0xff]
    %v2150 = vld [vmem:[#allocation20 + $0x778] sm:$0xff]
    %v2151 = vld [vmem:[#allocation20 + $0x780] sm:$0xff]
    %v2152 = vld [vmem:[#allocation20 + $0x788] sm:$0xff]
    %v2153 = vld [vmem:[#allocation20 + $0x790] sm:$0xff]
    %v2154 = vld [vmem:[#allocation20 + $0x798] sm:$0xff]
    %v2155 = vld [vmem:[#allocation20 + $0x7a0] sm:$0xff]
    %v2156 = vld [vmem:[#allocation20 + $0x7a8] sm:$0xff]
    %v2157 = vld [vmem:[#allocation20 + $0x7b0] sm:$0xff]
    %v2158 = vld [vmem:[#allocation20 + $0x7b8] sm:$0xff]
    %v2159 = vld [vmem:[#allocation20 + $0x7c0] sm:$0xff]
    %v2160 = vld [vmem:[#allocation20 + $0x7c8] sm:$0xff]
    %v2161 = vld [vmem:[#allocation20 + $0x7d0] sm:$0xff]
    %v2162 = vld [vmem:[#allocation20 + $0x7d8] sm:$0xff]
    %v2163 = vld [vmem:[#allocation20 + $0x7e0] sm:$0xff]
    %v2164 = vld [vmem:[#allocation20 + $0x7e8] sm:$0xff]
    %v2165 = vld [vmem:[#allocation20 + $0x7f0] sm:$0xff]
    %v2166 = vld [vmem:[#allocation20 + $0x7f8] sm:$0xff]
    %v2167 = vld [vmem:[#allocation20 + $0x800] sm:$0xff]
    %v2168 = vld [vmem:[#allocation20 + $0x808] sm:$0xff]
    %v2169 = vld [vmem:[#allocation20 + $0x810] sm:$0xff]
    %v2170 = vld [vmem:[#allocation20 + $0x818] sm:$0xff]
    %v2171 = vld [vmem:[#allocation20 + $0x820] sm:$0xff]
    %v2172 = vld [vmem:[#allocation20 + $0x828] sm:$0xff]
    %v2173 = vld [vmem:[#allocation20 + $0x830] sm:$0xff]
    %v2174 = vld [vmem:[#allocation20 + $0x838] sm:$0xff]
    %v2175 = vld [vmem:[#allocation20 + $0x840] sm:$0xff]
    %v2176 = vld [vmem:[#allocation20 + $0x848] sm:$0xff]
    %v2177 = vld [vmem:[#allocation20 + $0x850] sm:$0xff]
    %v2178 = vld [vmem:[#allocation20 + $0x858] sm:$0xff]
    %v2179 = vld [vmem:[#allocation20 + $0x860] sm:$0xff]
    %v2180 = vld [vmem:[#allocation20 + $0x868] sm:$0xff]
    %v2181 = vld [vmem:[#allocation20 + $0x870] sm:$0xff]
    %v2182 = vld [vmem:[#allocation20 + $0x878] sm:$0xff]
    %v2183 = vld [vmem:[#allocation20 + $0x880] sm:$0xff]
    %v2184 = vld [vmem:[#allocation20 + $0x888] sm:$0xff]
    %v2185 = vld [vmem:[#allocation20 + $0x890] sm:$0xff]
    %v2186 = vld [vmem:[#allocation20 + $0x898] sm:$0xff]
    %v2187 = vld [vmem:[#allocation20 + $0x8a0] sm:$0xff]
    %v2188 = vld [vmem:[#allocation20 + $0x8a8] sm:$0xff]
    %v2189 = vld [vmem:[#allocation20 + $0x8b0] sm:$0xff]
    %v2190 = vld [vmem:[#allocation20 + $0x8b8] sm:$0xff]
    %v2191 = vld [vmem:[#allocation20 + $0x8c0] sm:$0xff]
    %v2192 = vld [vmem:[#allocation20 + $0x8c8] sm:$0xff]
    %v2193 = vld [vmem:[#allocation20 + $0x8d0] sm:$0xff]
    %v2194 = vld [vmem:[#allocation20 + $0x8d8] sm:$0xff]
    %v2195 = vld [vmem:[#allocation20 + $0x8e0] sm:$0xff]
    %v2196 = vld [vmem:[#allocation20 + $0x8e8] sm:$0xff]
    %v2197 = vld [vmem:[#allocation20 + $0x8f0] sm:$0xff]
    %v2198 = vld [vmem:[#allocation20 + $0x8f8] sm:$0xff]
    %v2199 = vld [vmem:[#allocation20 + $0x900] sm:$0xff]
    %v2200 = vld [vmem:[#allocation20 + $0x908] sm:$0xff]
    %v2201 = vld [vmem:[#allocation20 + $0x910] sm:$0xff]
    %v2202 = vld [vmem:[#allocation20 + $0x918] sm:$0xff]
    %v2203 = vld [vmem:[#allocation20 + $0x920] sm:$0xff]
    %v2204 = vld [vmem:[#allocation20 + $0x928] sm:$0xff]
    %v2205 = vld [vmem:[#allocation20 + $0x930] sm:$0xff]
    %v2206 = vld [vmem:[#allocation20 + $0x938] sm:$0xff]
    %v2207 = vld [vmem:[#allocation20 + $0x940] sm:$0xff]
    %v2208 = vld [vmem:[#allocation20 + $0x948] sm:$0xff]
    %v2209 = vld [vmem:[#allocation20 + $0x950] sm:$0xff]
    %v2210 = vld [vmem:[#allocation20 + $0x958] sm:$0xff]
    %v2211 = vld [vmem:[#allocation20 + $0x960] sm:$0xff]
    %v2212 = vld [vmem:[#allocation20 + $0x968] sm:$0xff]
    %v2213 = vld [vmem:[#allocation20 + $0x970] sm:$0xff]
    %v2214 = vld [vmem:[#allocation20 + $0x978] sm:$0xff]
    %v2215 = vld [vmem:[#allocation20 + $0x980] sm:$0xff]
    %v2216 = vld [vmem:[#allocation20 + $0x988] sm:$0xff]
    %v2217 = vld [vmem:[#allocation20 + $0x990] sm:$0xff]
    %v2218 = vld [vmem:[#allocation20 + $0x998] sm:$0xff]
    %v2219 = vld [vmem:[#allocation20 + $0x9a0] sm:$0xff]
    %v2220 = vld [vmem:[#allocation20 + $0x9a8] sm:$0xff]
    %v2221 = vld [vmem:[#allocation20 + $0x9b0] sm:$0xff]
    %v2222 = vld [vmem:[#allocation20 + $0x9b8] sm:$0xff]
    %v2223 = vld [vmem:[#allocation20 + $0x9c0] sm:$0xff]
    %v2224 = vld [vmem:[#allocation20 + $0x9c8] sm:$0xff]
    %v2225 = vld [vmem:[#allocation20 + $0x9d0] sm:$0xff]
    %v2226 = vld [vmem:[#allocation20 + $0x9d8] sm:$0xff]
    %v2227 = vld [vmem:[#allocation20 + $0x9e0] sm:$0xff]
    %v2228 = vld [vmem:[#allocation20 + $0x9e8] sm:$0xff]
    %v2229 = vld [vmem:[#allocation20 + $0x9f0] sm:$0xff]
    %v2230 = vld [vmem:[#allocation20 + $0x9f8] sm:$0xff]
    %v2231 = vld [vmem:[#allocation20 + $0xa00] sm:$0xff]
    %v2232 = vld [vmem:[#allocation20 + $0xa08] sm:$0xff]
    %v2233 = vld [vmem:[#allocation20 + $0xa10] sm:$0xff]
    %v2234 = vld [vmem:[#allocation20 + $0xa18] sm:$0xff]
    %v2235 = vld [vmem:[#allocation20 + $0xa20] sm:$0xff]
    %v2236 = vld [vmem:[#allocation20 + $0xa28] sm:$0xff]
    %v2237 = vld [vmem:[#allocation20 + $0xa30] sm:$0xff]
    %v2238 = vld [vmem:[#allocation20 + $0xa38] sm:$0xff]
    %v2239 = vld [vmem:[#allocation20 + $0xa40] sm:$0xff]
    %v2240 = vld [vmem:[#allocation20 + $0xa48] sm:$0xff]
    %v2241 = vld [vmem:[#allocation20 + $0xa50] sm:$0xff]
    %v2242 = vld [vmem:[#allocation20 + $0xa58] sm:$0xff]
    %v2243 = vld [vmem:[#allocation20 + $0xa60] sm:$0xff]
    %v2244 = vld [vmem:[#allocation20 + $0xa68] sm:$0xff]
    %v2245 = vld [vmem:[#allocation20 + $0xa70] sm:$0xff]
    %v2246 = vld [vmem:[#allocation20 + $0xa78] sm:$0xff]
    %v2247 = vld [vmem:[#allocation20 + $0xa80] sm:$0xff]
    %v2248 = vld [vmem:[#allocation20 + $0xa88] sm:$0xff]
    %v2249 = vld [vmem:[#allocation20 + $0xa90] sm:$0xff]
    %v2250 = vld [vmem:[#allocation20 + $0xa98] sm:$0xff]
    %v2251 = vld [vmem:[#allocation20 + $0xaa0] sm:$0xff]
    %v2252 = vld [vmem:[#allocation20 + $0xaa8] sm:$0xff]
    %v2253 = vld [vmem:[#allocation20 + $0xab0] sm:$0xff]
    %v2254 = vld [vmem:[#allocation20 + $0xab8] sm:$0xff]
    %v2255 = vld [vmem:[#allocation20 + $0xac0] sm:$0xff]
    %v2256 = vld [vmem:[#allocation20 + $0xac8] sm:$0xff]
    %v2257 = vld [vmem:[#allocation20 + $0xad0] sm:$0xff]
    %v2258 = vld [vmem:[#allocation20 + $0xad8] sm:$0xff]
    %v2259 = vld [vmem:[#allocation20 + $0xae0] sm:$0xff]
    %v2260 = vld [vmem:[#allocation20 + $0xae8] sm:$0xff]
    %v2261 = vld [vmem:[#allocation20 + $0xaf0] sm:$0xff]
    %v2262 = vld [vmem:[#allocation20 + $0xaf8] sm:$0xff]
    %v2263 = vld [vmem:[#allocation20 + $0xb00] sm:$0xff]
    %v2264 = vld [vmem:[#allocation20 + $0xb08] sm:$0xff]
    %v2265 = vld [vmem:[#allocation20 + $0xb10] sm:$0xff]
    %v2266 = vld [vmem:[#allocation20 + $0xb18] sm:$0xff]
    %v2267 = vld [vmem:[#allocation20 + $0xb20] sm:$0xff]
    %v2268 = vld [vmem:[#allocation20 + $0xb28] sm:$0xff]
    %v2269 = vld [vmem:[#allocation20 + $0xb30] sm:$0xff]
    %v2270 = vld [vmem:[#allocation20 + $0xb38] sm:$0xff]
    %v2271 = vld [vmem:[#allocation20 + $0xb40] sm:$0xff]
    %v2272 = vld [vmem:[#allocation20 + $0xb48] sm:$0xff]
    %v2273 = vld [vmem:[#allocation20 + $0xb50] sm:$0xff]
    %v2274 = vld [vmem:[#allocation20 + $0xb58] sm:$0xff]
    %v2275 = vld [vmem:[#allocation20 + $0xb60] sm:$0xff]
    %v2276 = vld [vmem:[#allocation20 + $0xb68] sm:$0xff]
    %v2277 = vld [vmem:[#allocation20 + $0xb70] sm:$0xff]
    %v2278 = vld [vmem:[#allocation20 + $0xb78] sm:$0xff]
    %v2279 = vld [vmem:[#allocation20 + $0xb80] sm:$0xff]
    %v2280 = vld [vmem:[#allocation20 + $0xb88] sm:$0xff]
    %v2281 = vld [vmem:[#allocation20 + $0xb90] sm:$0xff]
    %v2282 = vld [vmem:[#allocation20 + $0xb98] sm:$0xff]
    %v2283 = vld [vmem:[#allocation20 + $0xba0] sm:$0xff]
    %v2284 = vld [vmem:[#allocation20 + $0xba8] sm:$0xff]
    %v2285 = vld [vmem:[#allocation20 + $0xbb0] sm:$0xff]
    %v2286 = vld [vmem:[#allocation20 + $0xbb8] sm:$0xff]
    %v2287 = vld [vmem:[#allocation20 + $0xbc0] sm:$0xff]
    %v2288 = vld [vmem:[#allocation20 + $0xbc8] sm:$0xff]
    %v2289 = vld [vmem:[#allocation20 + $0xbd0] sm:$0xff]
    %v2290 = vld [vmem:[#allocation20 + $0xbd8] sm:$0xff]
    %v2291 = vld [vmem:[#allocation20 + $0xbe0] sm:$0xff]
    %v2292 = vld [vmem:[#allocation20 + $0xbe8] sm:$0xff]
    %v2293 = vld [vmem:[#allocation20 + $0xbf0] sm:$0xff]
    %v2294 = vld [vmem:[#allocation20 + $0xbf8] sm:$0xff]
    %v2295 = vld [vmem:[#allocation20 + $0xc00] sm:$0xff]
    %v2296 = vld [vmem:[#allocation20 + $0xc08] sm:$0xff]
    %v2297 = vld [vmem:[#allocation20 + $0xc10] sm:$0xff]
    %v2298 = vld [vmem:[#allocation20 + $0xc18] sm:$0xff]
    %v2299 = vld [vmem:[#allocation20 + $0xc20] sm:$0xff]
    %v2300 = vld [vmem:[#allocation20 + $0xc28] sm:$0xff]
    %v2301 = vld [vmem:[#allocation20 + $0xc30] sm:$0xff]
    %v2302 = vld [vmem:[#allocation20 + $0xc38] sm:$0xff]
    %v2303 = vld [vmem:[#allocation20 + $0xc40] sm:$0xff]
    %v2304 = vld [vmem:[#allocation20 + $0xc48] sm:$0xff]
    %v2305 = vld [vmem:[#allocation20 + $0xc50] sm:$0xff]
    %v2306 = vld [vmem:[#allocation20 + $0xc58] sm:$0xff]
    %v2307 = vld [vmem:[#allocation20 + $0xc60] sm:$0xff]
    %v2308 = vld [vmem:[#allocation20 + $0xc68] sm:$0xff]
    %v2309 = vld [vmem:[#allocation20 + $0xc70] sm:$0xff]
    %v2310 = vld [vmem:[#allocation20 + $0xc78] sm:$0xff]
    %v2311 = vld [vmem:[#allocation20 + $0xc80] sm:$0xff]
    %v2312 = vld [vmem:[#allocation20 + $0xc88] sm:$0xff]
    %v2313 = vld [vmem:[#allocation20 + $0xc90] sm:$0xff]
    %v2314 = vld [vmem:[#allocation20 + $0xc98] sm:$0xff]
    %v2315 = vld [vmem:[#allocation20 + $0xca0] sm:$0xff]
    %v2316 = vld [vmem:[#allocation20 + $0xca8] sm:$0xff]
    %v2317 = vld [vmem:[#allocation20 + $0xcb0] sm:$0xff]
    %v2318 = vld [vmem:[#allocation20 + $0xcb8] sm:$0xff]
    %v2319 = vld [vmem:[#allocation20 + $0xcc0] sm:$0xff]
    %v2320 = vld [vmem:[#allocation20 + $0xcc8] sm:$0xff]
    %v2321 = vld [vmem:[#allocation20 + $0xcd0] sm:$0xff]
    %v2322 = vld [vmem:[#allocation20 + $0xcd8] sm:$0xff]
    %v2323 = vld [vmem:[#allocation20 + $0xce0] sm:$0xff]
    %v2324 = vld [vmem:[#allocation20 + $0xce8] sm:$0xff]
    %v2325 = vld [vmem:[#allocation20 + $0xcf0] sm:$0xff]
    %v2326 = vld [vmem:[#allocation20 + $0xcf8] sm:$0xff]
    %v2327 = vld [vmem:[#allocation20 + $0xd00] sm:$0xff]
    %v2328 = vld [vmem:[#allocation20 + $0xd08] sm:$0xff]
    %v2329 = vld [vmem:[#allocation20 + $0xd10] sm:$0xff]
    %v2330 = vld [vmem:[#allocation20 + $0xd18] sm:$0xff]
    %v2331 = vld [vmem:[#allocation20 + $0xd20] sm:$0xff]
    %v2332 = vld [vmem:[#allocation20 + $0xd28] sm:$0xff]
    %v2333 = vld [vmem:[#allocation20 + $0xd30] sm:$0xff]
    %v2334 = vld [vmem:[#allocation20 + $0xd38] sm:$0xff]
    %v2335 = vld [vmem:[#allocation20 + $0xd40] sm:$0xff]
    %v2336 = vld [vmem:[#allocation20 + $0xd48] sm:$0xff]
    %v2337 = vld [vmem:[#allocation20 + $0xd50] sm:$0xff]
    %v2338 = vld [vmem:[#allocation20 + $0xd58] sm:$0xff]
    %v2339 = vld [vmem:[#allocation20 + $0xd60] sm:$0xff]
    %v2340 = vld [vmem:[#allocation20 + $0xd68] sm:$0xff]
    %v2341 = vld [vmem:[#allocation20 + $0xd70] sm:$0xff]
    %v2342 = vld [vmem:[#allocation20 + $0xd78] sm:$0xff]
    %v2343 = vld [vmem:[#allocation20 + $0xd80] sm:$0xff]
    %v2344 = vld [vmem:[#allocation20 + $0xd88] sm:$0xff]
    %v2345 = vld [vmem:[#allocation20 + $0xd90] sm:$0xff]
    %v2346 = vld [vmem:[#allocation20 + $0xd98] sm:$0xff]
    %v2347 = vld [vmem:[#allocation20 + $0xda0] sm:$0xff]
    %v2348 = vld [vmem:[#allocation20 + $0xda8] sm:$0xff]
    %v2349 = vld [vmem:[#allocation20 + $0xdb0] sm:$0xff]
    %v2350 = vld [vmem:[#allocation20 + $0xdb8] sm:$0xff]
    %v2351 = vld [vmem:[#allocation20 + $0xdc0] sm:$0xff]
    %v2352 = vld [vmem:[#allocation20 + $0xdc8] sm:$0xff]
    %v2353 = vld [vmem:[#allocation20 + $0xdd0] sm:$0xff]
    %v2354 = vld [vmem:[#allocation20 + $0xdd8] sm:$0xff]
    %v2355 = vld [vmem:[#allocation20 + $0xde0] sm:$0xff]
    %v2356 = vld [vmem:[#allocation20 + $0xde8] sm:$0xff]
    %v2357 = vld [vmem:[#allocation20 + $0xdf0] sm:$0xff]
    %v2358 = vld [vmem:[#allocation20 + $0xdf8] sm:$0xff]
    %v2359 = vld [vmem:[#allocation20 + $0xe00] sm:$0xff]
    %v2360 = vld [vmem:[#allocation20 + $0xe08] sm:$0xff]
    %v2361 = vld [vmem:[#allocation20 + $0xe10] sm:$0xff]
    %v2362 = vld [vmem:[#allocation20 + $0xe18] sm:$0xff]
    %v2363 = vld [vmem:[#allocation20 + $0xe20] sm:$0xff]
    %v2364 = vld [vmem:[#allocation20 + $0xe28] sm:$0xff]
    %v2365 = vld [vmem:[#allocation20 + $0xe30] sm:$0xff]
    %v2366 = vld [vmem:[#allocation20 + $0xe38] sm:$0xff]
    %v2367 = vld [vmem:[#allocation20 + $0xe40] sm:$0xff]
    %v2368 = vld [vmem:[#allocation20 + $0xe48] sm:$0xff]
    %v2369 = vld [vmem:[#allocation20 + $0xe50] sm:$0xff]
    %v2370 = vld [vmem:[#allocation20 + $0xe58] sm:$0xff]
    %v2371 = vld [vmem:[#allocation20 + $0xe60] sm:$0xff]
    %v2372 = vld [vmem:[#allocation20 + $0xe68] sm:$0xff]
    %v2373 = vld [vmem:[#allocation20 + $0xe70] sm:$0xff]
    %v2374 = vld [vmem:[#allocation20 + $0xe78] sm:$0xff]
    %v2375 = vld [vmem:[#allocation20 + $0xe80] sm:$0xff]
    %v2376 = vld [vmem:[#allocation20 + $0xe88] sm:$0xff]
    %v2377 = vld [vmem:[#allocation20 + $0xe90] sm:$0xff]
    %v2378 = vld [vmem:[#allocation20 + $0xe98] sm:$0xff]
    %v2379 = vld [vmem:[#allocation20 + $0xea0] sm:$0xff]
    %v2380 = vld [vmem:[#allocation20 + $0xea8] sm:$0xff]
    %v2381 = vld [vmem:[#allocation20 + $0xeb0] sm:$0xff]
    %v2382 = vld [vmem:[#allocation20 + $0xeb8] sm:$0xff]
    %v2383 = vld [vmem:[#allocation20 + $0xec0] sm:$0xff]
    %v2384 = vld [vmem:[#allocation20 + $0xec8] sm:$0xff]
    %v2385 = vld [vmem:[#allocation20 + $0xed0] sm:$0xff]
    %v2386 = vld [vmem:[#allocation20 + $0xed8] sm:$0xff]
    %v2387 = vld [vmem:[#allocation20 + $0xee0] sm:$0xff]
    %v2388 = vld [vmem:[#allocation20 + $0xee8] sm:$0xff]
    %v2389 = vld [vmem:[#allocation20 + $0xef0] sm:$0xff]
    %v2390 = vld [vmem:[#allocation20 + $0xef8] sm:$0xff]
    %v2391 = vld [vmem:[#allocation20 + $0xf00] sm:$0xff]
    %v2392 = vld [vmem:[#allocation20 + $0xf08] sm:$0xff]
    %v2393 = vld [vmem:[#allocation20 + $0xf10] sm:$0xff]
    %v2394 = vld [vmem:[#allocation20 + $0xf18] sm:$0xff]
    %v2395 = vld [vmem:[#allocation20 + $0xf20] sm:$0xff]
    %v2396 = vld [vmem:[#allocation20 + $0xf28] sm:$0xff]
    %v2397 = vld [vmem:[#allocation20 + $0xf30] sm:$0xff]
    %v2398 = vld [vmem:[#allocation20 + $0xf38] sm:$0xff]
    %v2399 = vld [vmem:[#allocation20 + $0xf40] sm:$0xff]
    %v2400 = vld [vmem:[#allocation20 + $0xf48] sm:$0xff]
    %v2401 = vld [vmem:[#allocation20 + $0xf50] sm:$0xff]
    %v2402 = vld [vmem:[#allocation20 + $0xf58] sm:$0xff]
    %v2403 = vld [vmem:[#allocation20 + $0xf60] sm:$0xff]
    %v2404 = vld [vmem:[#allocation20 + $0xf68] sm:$0xff]
    %v2405 = vld [vmem:[#allocation20 + $0xf70] sm:$0xff]
    %v2406 = vld [vmem:[#allocation20 + $0xf78] sm:$0xff]
    %v2407 = vld [vmem:[#allocation20 + $0xf80] sm:$0xff]
    %v2408 = vld [vmem:[#allocation20 + $0xf88] sm:$0xff]
    %v2409 = vld [vmem:[#allocation20 + $0xf90] sm:$0xff]
    %v2410 = vld [vmem:[#allocation20 + $0xf98] sm:$0xff]
    %v2411 = vld [vmem:[#allocation20 + $0xfa0] sm:$0xff]
    %v2412 = vld [vmem:[#allocation20 + $0xfa8] sm:$0xff]
    %v2413 = vld [vmem:[#allocation20 + $0xfb0] sm:$0xff]
    %v2414 = vld [vmem:[#allocation20 + $0xfb8] sm:$0xff]
    %v2415 = vld [vmem:[#allocation20 + $0xfc0] sm:$0xff]
    %v2416 = vld [vmem:[#allocation20 + $0xfc8] sm:$0xff]
    %v2417 = vld [vmem:[#allocation20 + $0xfd0] sm:$0xff]
    %v2418 = vld [vmem:[#allocation20 + $0xfd8] sm:$0xff]
    %v2419 = vld [vmem:[#allocation20 + $0xfe0] sm:$0xff]
    %v2420 = vld [vmem:[#allocation20 + $0xfe8] sm:$0xff]
    %v2421 = vld [vmem:[#allocation20 + $0xff0] sm:$0xff]
    %v2422 = vld [vmem:[#allocation20 + $0xff8] sm:$0xff]
    %v2423 = vld [vmem:[#allocation20 + $0x1000] sm:$0xff]
    %v2424 = vld [vmem:[#allocation20 + $0x1008] sm:$0xff]
    %v2425 = vld [vmem:[#allocation20 + $0x1010] sm:$0xff]
    %v2426 = vld [vmem:[#allocation20 + $0x1018] sm:$0xff]
    %v2427 = vld [vmem:[#allocation20 + $0x1020] sm:$0xff]
    %v2428 = vld [vmem:[#allocation20 + $0x1028] sm:$0xff]
    %v2429 = vld [vmem:[#allocation20 + $0x1030] sm:$0xff]
    %v2430 = vld [vmem:[#allocation20 + $0x1038] sm:$0xff]
    %v2431 = vld [vmem:[#allocation20 + $0x1040] sm:$0xff]
    %v2432 = vld [vmem:[#allocation20 + $0x1048] sm:$0xff]
    %v2433 = vld [vmem:[#allocation20 + $0x1050] sm:$0xff]
    %v2434 = vld [vmem:[#allocation20 + $0x1058] sm:$0xff]
    %v2435 = vld [vmem:[#allocation20 + $0x1060] sm:$0xff]
    %v2436 = vld [vmem:[#allocation20 + $0x1068] sm:$0xff]
    %v2437 = vld [vmem:[#allocation20 + $0x1070] sm:$0xff]
    %v2438 = vld [vmem:[#allocation20 + $0x1078] sm:$0xff]
    %v2439 = vld [vmem:[#allocation20 + $0x1080] sm:$0xff]
    %v2440 = vld [vmem:[#allocation20 + $0x1088] sm:$0xff]
    %v2441 = vld [vmem:[#allocation20 + $0x1090] sm:$0xff]
    %v2442 = vld [vmem:[#allocation20 + $0x1098] sm:$0xff]
    %v2443 = vld [vmem:[#allocation20 + $0x10a0] sm:$0xff]
    %v2444 = vld [vmem:[#allocation20 + $0x10a8] sm:$0xff]
    %v2445 = vld [vmem:[#allocation20 + $0x10b0] sm:$0xff]
    %v2446 = vld [vmem:[#allocation20 + $0x10b8] sm:$0xff]
    %v2447 = vld [vmem:[#allocation20 + $0x10c0] sm:$0xff]
    %v2448 = vld [vmem:[#allocation20 + $0x10c8] sm:$0xff]
    %v2449 = vld [vmem:[#allocation20 + $0x10d0] sm:$0xff]
    %v2450 = vld [vmem:[#allocation20 + $0x10d8] sm:$0xff]
    %v2451 = vld [vmem:[#allocation20 + $0x10e0] sm:$0xff]
    %v2452 = vld [vmem:[#allocation20 + $0x10e8] sm:$0xff]
    %v2453 = vld [vmem:[#allocation20 + $0x10f0] sm:$0xff]
    %v2454 = vld [vmem:[#allocation20 + $0x10f8] sm:$0xff]
    %v2455 = vld [vmem:[#allocation20 + $0x1100] sm:$0xff]
    %v2456 = vld [vmem:[#allocation20 + $0x1108] sm:$0xff]
    %v2457 = vld [vmem:[#allocation20 + $0x1110] sm:$0xff]
    %v2458 = vld [vmem:[#allocation20 + $0x1118] sm:$0xff]
    %v2459 = vld [vmem:[#allocation20 + $0x1120] sm:$0xff]
    %v2460 = vld [vmem:[#allocation20 + $0x1128] sm:$0xff]
    %v2461 = vld [vmem:[#allocation20 + $0x1130] sm:$0xff]
    %v2462 = vld [vmem:[#allocation20 + $0x1138] sm:$0xff]
    %v2463 = vld [vmem:[#allocation20 + $0x1140] sm:$0xff]
    %v2464 = vld [vmem:[#allocation20 + $0x1148] sm:$0xff]
    %v2465 = vld [vmem:[#allocation20 + $0x1150] sm:$0xff]
    %v2466 = vld [vmem:[#allocation20 + $0x1158] sm:$0xff]
    %v2467 = vld [vmem:[#allocation20 + $0x1160] sm:$0xff]
    %v2468 = vld [vmem:[#allocation20 + $0x1168] sm:$0xff]
    %v2469 = vld [vmem:[#allocation20 + $0x1170] sm:$0xff]
    %v2470 = vld [vmem:[#allocation20 + $0x1178] sm:$0xff]
    %v2471 = vld [vmem:[#allocation20 + $0x1180] sm:$0xff]
    %v2472 = vld [vmem:[#allocation20 + $0x1188] sm:$0xff]
    %v2473 = vld [vmem:[#allocation20 + $0x1190] sm:$0xff]
    %v2474 = vld [vmem:[#allocation20 + $0x1198] sm:$0xff]
    %v2475 = vld [vmem:[#allocation20 + $0x11a0] sm:$0xff]
    %v2476 = vld [vmem:[#allocation20 + $0x11a8] sm:$0xff]
    %v2477 = vld [vmem:[#allocation20 + $0x11b0] sm:$0xff]
    %v2478 = vld [vmem:[#allocation20 + $0x11b8] sm:$0xff]
    %v2479 = vld [vmem:[#allocation20 + $0x11c0] sm:$0xff]
    %v2480 = vld [vmem:[#allocation20 + $0x11c8] sm:$0xff]
    %v2481 = vld [vmem:[#allocation20 + $0x11d0] sm:$0xff]
    %v2482 = vld [vmem:[#allocation20 + $0x11d8] sm:$0xff]
    %v2483 = vld [vmem:[#allocation20 + $0x11e0] sm:$0xff]
    %v2484 = vld [vmem:[#allocation20 + $0x11e8] sm:$0xff]
    %v2485 = vld [vmem:[#allocation20 + $0x11f0] sm:$0xff]
    %v2486 = vld [vmem:[#allocation20 + $0x11f8] sm:$0xff]
    %v2487 = vld [vmem:[#allocation20 + $0x1200] sm:$0xff]
    %v2488 = vld [vmem:[#allocation20 + $0x1208] sm:$0xff]
    %v2489 = vld [vmem:[#allocation20 + $0x1210] sm:$0xff]
    %v2490 = vld [vmem:[#allocation20 + $0x1218] sm:$0xff]
    %v2491 = vld [vmem:[#allocation20 + $0x1220] sm:$0xff]
    %v2492 = vld [vmem:[#allocation20 + $0x1228] sm:$0xff]
    %v2493 = vld [vmem:[#allocation20 + $0x1230] sm:$0xff]
    %v2494 = vld [vmem:[#allocation20 + $0x1238] sm:$0xff]
    %v2495 = vld [vmem:[#allocation20 + $0x1240] sm:$0xff]
    %v2496 = vld [vmem:[#allocation20 + $0x1248] sm:$0xff]
    %v2497 = vld [vmem:[#allocation20 + $0x1250] sm:$0xff]
    %v2498 = vld [vmem:[#allocation20 + $0x1258] sm:$0xff]
    %v2499 = vld [vmem:[#allocation20 + $0x1260] sm:$0xff]
    %v2500 = vld [vmem:[#allocation20 + $0x1268] sm:$0xff]
    %v2501 = vld [vmem:[#allocation20 + $0x1270] sm:$0xff]
    %v2502 = vld [vmem:[#allocation20 + $0x1278] sm:$0xff]
    %v2503 = vld [vmem:[#allocation20 + $0x1280] sm:$0xff]
    %v2504 = vld [vmem:[#allocation20 + $0x1288] sm:$0xff]
    %v2505 = vld [vmem:[#allocation20 + $0x1290] sm:$0xff]
    %v2506 = vld [vmem:[#allocation20 + $0x1298] sm:$0xff]
    %v2507 = vld [vmem:[#allocation20 + $0x12a0] sm:$0xff]
    %v2508 = vld [vmem:[#allocation20 + $0x12a8] sm:$0xff]
    %v2509 = vld [vmem:[#allocation20 + $0x12b0] sm:$0xff]
    %v2510 = vld [vmem:[#allocation20 + $0x12b8] sm:$0xff]
    %v2511 = vld [vmem:[#allocation20 + $0x12c0] sm:$0xff]
    %v2512 = vld [vmem:[#allocation20 + $0x12c8] sm:$0xff]
    %v2513 = vld [vmem:[#allocation20 + $0x12d0] sm:$0xff]
    %v2514 = vld [vmem:[#allocation20 + $0x12d8] sm:$0xff]
    %v2515 = vld [vmem:[#allocation20 + $0x12e0] sm:$0xff]
    %v2516 = vld [vmem:[#allocation20 + $0x12e8] sm:$0xff]
    %v2517 = vld [vmem:[#allocation20 + $0x12f0] sm:$0xff]
    %v2518 = vld [vmem:[#allocation20 + $0x12f8] sm:$0xff]
    %v2519 = vld [vmem:[#allocation20 + $0x1300] sm:$0xff]
    %v2520 = vld [vmem:[#allocation20 + $0x1308] sm:$0xff]
    %v2521 = vld [vmem:[#allocation20 + $0x1310] sm:$0xff]
    %v2522 = vld [vmem:[#allocation20 + $0x1318] sm:$0xff]
    %v2523 = vld [vmem:[#allocation20 + $0x1320] sm:$0xff]
    %v2524 = vld [vmem:[#allocation20 + $0x1328] sm:$0xff]
    %v2525 = vld [vmem:[#allocation20 + $0x1330] sm:$0xff]
    %v2526 = vld [vmem:[#allocation20 + $0x1338] sm:$0xff]
    %v2527 = vld [vmem:[#allocation20 + $0x1340] sm:$0xff]
    %v2528 = vld [vmem:[#allocation20 + $0x1348] sm:$0xff]
    %v2529 = vld [vmem:[#allocation20 + $0x1350] sm:$0xff]
    %v2530 = vld [vmem:[#allocation20 + $0x1358] sm:$0xff]
    %v2531 = vld [vmem:[#allocation20 + $0x1360] sm:$0xff]
    %v2532 = vld [vmem:[#allocation20 + $0x1368] sm:$0xff]
    %v2533 = vld [vmem:[#allocation20 + $0x1370] sm:$0xff]
    %v2534 = vld [vmem:[#allocation20 + $0x1378] sm:$0xff]
    %v2535 = vld [vmem:[#allocation20 + $0x1380] sm:$0xff]
    %v2536 = vld [vmem:[#allocation20 + $0x1388] sm:$0xff]
    %v2537 = vld [vmem:[#allocation20 + $0x1390] sm:$0xff]
    %v2538 = vld [vmem:[#allocation20 + $0x1398] sm:$0xff]
    %v2539 = vld [vmem:[#allocation20 + $0x13a0] sm:$0xff]
    %v2540 = vld [vmem:[#allocation20 + $0x13a8] sm:$0xff]
    %v2541 = vld [vmem:[#allocation20 + $0x13b0] sm:$0xff]
    %v2542 = vld [vmem:[#allocation20 + $0x13b8] sm:$0xff]
    %v2543 = vld [vmem:[#allocation20 + $0x13c0] sm:$0xff]
    %v2544 = vld [vmem:[#allocation20 + $0x13c8] sm:$0xff]
    %v2545 = vld [vmem:[#allocation20 + $0x13d0] sm:$0xff]
    %v2546 = vld [vmem:[#allocation20 + $0x13d8] sm:$0xff]
    %v2547 = vld [vmem:[#allocation20 + $0x13e0] sm:$0xff]
    %v2548 = vld [vmem:[#allocation20 + $0x13e8] sm:$0xff]
    %v2549 = vld [vmem:[#allocation20 + $0x13f0] sm:$0xff]
    %v2550 = vld [vmem:[#allocation20 + $0x13f8] sm:$0xff]
    %v2551 = vld [vmem:[#allocation20 + $0x1400] sm:$0xff]
    %v2552 = vld [vmem:[#allocation20 + $0x1408] sm:$0xff]
    %v2553 = vld [vmem:[#allocation20 + $0x1410] sm:$0xff]
    %v2554 = vld [vmem:[#allocation20 + $0x1418] sm:$0xff]
    %v2555 = vld [vmem:[#allocation20 + $0x1420] sm:$0xff]
    %v2556 = vld [vmem:[#allocation20 + $0x1428] sm:$0xff]
    %v2557 = vld [vmem:[#allocation20 + $0x1430] sm:$0xff]
    %v2558 = vld [vmem:[#allocation20 + $0x1438] sm:$0xff]
    %v2559 = vld [vmem:[#allocation20 + $0x1440] sm:$0xff]
    %v2560 = vld [vmem:[#allocation20 + $0x1448] sm:$0xff]
    %v2561 = vld [vmem:[#allocation20 + $0x1450] sm:$0xff]
    %v2562 = vld [vmem:[#allocation20 + $0x1458] sm:$0xff]
    %v2563 = vld [vmem:[#allocation20 + $0x1460] sm:$0xff]
    %v2564 = vld [vmem:[#allocation20 + $0x1468] sm:$0xff]
    %v2565 = vld [vmem:[#allocation20 + $0x1470] sm:$0xff]
    %v2566 = vld [vmem:[#allocation20 + $0x1478] sm:$0xff]
    %v2567 = vld [vmem:[#allocation20 + $0x1480] sm:$0xff]
    %v2568 = vld [vmem:[#allocation20 + $0x1488] sm:$0xff]
    %v2569 = vld [vmem:[#allocation20 + $0x1490] sm:$0xff]
    %v2570 = vld [vmem:[#allocation20 + $0x1498] sm:$0xff]
    %v2571 = vld [vmem:[#allocation20 + $0x14a0] sm:$0xff]
    %v2572 = vld [vmem:[#allocation20 + $0x14a8] sm:$0xff]
    %v2573 = vld [vmem:[#allocation20 + $0x14b0] sm:$0xff]
    %v2574 = vld [vmem:[#allocation20 + $0x14b8] sm:$0xff]
    %v2575 = vld [vmem:[#allocation20 + $0x14c0] sm:$0xff]
    %v2576 = vld [vmem:[#allocation20 + $0x14c8] sm:$0xff]
    %v2577 = vld [vmem:[#allocation20 + $0x14d0] sm:$0xff]
    %v2578 = vld [vmem:[#allocation20 + $0x14d8] sm:$0xff]
    %v2579 = vld [vmem:[#allocation20 + $0x14e0] sm:$0xff]
    %v2580 = vld [vmem:[#allocation20 + $0x14e8] sm:$0xff]
    %v2581 = vld [vmem:[#allocation20 + $0x14f0] sm:$0xff]
    %v2582 = vld [vmem:[#allocation20 + $0x14f8] sm:$0xff]
    %v2583 = vld [vmem:[#allocation20 + $0x1500] sm:$0xff]
    %v2584 = vld [vmem:[#allocation20 + $0x1508] sm:$0xff]
    %v2585 = vld [vmem:[#allocation20 + $0x1510] sm:$0xff]
    %v2586 = vld [vmem:[#allocation20 + $0x1518] sm:$0xff]
    %v2587 = vld [vmem:[#allocation20 + $0x1520] sm:$0xff]
    %v2588 = vld [vmem:[#allocation20 + $0x1528] sm:$0xff]
    %v2589 = vld [vmem:[#allocation20 + $0x1530] sm:$0xff]
    %v2590 = vld [vmem:[#allocation20 + $0x1538] sm:$0xff]
    %v2591 = vld [vmem:[#allocation20 + $0x1540] sm:$0xff]
    %v2592 = vld [vmem:[#allocation20 + $0x1548] sm:$0xff]
    %v2593 = vld [vmem:[#allocation20 + $0x1550] sm:$0xff]
    %v2594 = vld [vmem:[#allocation20 + $0x1558] sm:$0xff]
    %v2595 = vld [vmem:[#allocation20 + $0x1560] sm:$0xff]
    %v2596 = vld [vmem:[#allocation20 + $0x1568] sm:$0xff]
    %v2597 = vld [vmem:[#allocation20 + $0x1570] sm:$0xff]
    %v2598 = vld [vmem:[#allocation20 + $0x1578] sm:$0xff]
    %v2599 = vld [vmem:[#allocation20 + $0x1580] sm:$0xff]
    %v2600 = vld [vmem:[#allocation20 + $0x1588] sm:$0xff]
    %v2601 = vld [vmem:[#allocation20 + $0x1590] sm:$0xff]
    %v2602 = vld [vmem:[#allocation20 + $0x1598] sm:$0xff]
    %v2603 = vld [vmem:[#allocation20 + $0x15a0] sm:$0xff]
    %v2604 = vld [vmem:[#allocation20 + $0x15a8] sm:$0xff]
    %v2605 = vld [vmem:[#allocation20 + $0x15b0] sm:$0xff]
    %v2606 = vld [vmem:[#allocation20 + $0x15b8] sm:$0xff]
    %v2607 = vld [vmem:[#allocation20 + $0x15c0] sm:$0xff]
    %v2608 = vld [vmem:[#allocation20 + $0x15c8] sm:$0xff]
    %v2609 = vld [vmem:[#allocation20 + $0x15d0] sm:$0xff]
    %v2610 = vld [vmem:[#allocation20 + $0x15d8] sm:$0xff]
    %v2611 = vld [vmem:[#allocation20 + $0x15e0] sm:$0xff]
    %v2612 = vld [vmem:[#allocation20 + $0x15e8] sm:$0xff]
    %v2613 = vld [vmem:[#allocation20 + $0x15f0] sm:$0xff]
    %v2614 = vld [vmem:[#allocation20 + $0x15f8] sm:$0xff]
    %v2615 = vld [vmem:[#allocation20 + $0x1600] sm:$0xff]
    %v2616 = vld [vmem:[#allocation20 + $0x1608] sm:$0xff]
    %v2617 = vld [vmem:[#allocation20 + $0x1610] sm:$0xff]
    %v2618 = vld [vmem:[#allocation20 + $0x1618] sm:$0xff]
    %v2619 = vld [vmem:[#allocation20 + $0x1620] sm:$0xff]
    %v2620 = vld [vmem:[#allocation20 + $0x1628] sm:$0xff]
    %v2621 = vld [vmem:[#allocation20 + $0x1630] sm:$0xff]
    %v2622 = vld [vmem:[#allocation20 + $0x1638] sm:$0xff]
    %v2623 = vld [vmem:[#allocation20 + $0x1640] sm:$0xff]
    %v2624 = vld [vmem:[#allocation20 + $0x1648] sm:$0xff]
    %v2625 = vld [vmem:[#allocation20 + $0x1650] sm:$0xff]
    %v2626 = vld [vmem:[#allocation20 + $0x1658] sm:$0xff]
    %v2627 = vld [vmem:[#allocation20 + $0x1660] sm:$0xff]
    %v2628 = vld [vmem:[#allocation20 + $0x1668] sm:$0xff]
    %v2629 = vld [vmem:[#allocation20 + $0x1670] sm:$0xff]
    %v2630 = vld [vmem:[#allocation20 + $0x1678] sm:$0xff]
    %v2631 = vld [vmem:[#allocation20 + $0x1680] sm:$0xff]
    %v2632 = vld [vmem:[#allocation20 + $0x1688] sm:$0xff]
    %v2633 = vld [vmem:[#allocation20 + $0x1690] sm:$0xff]
    %v2634 = vld [vmem:[#allocation20 + $0x1698] sm:$0xff]
    %v2635 = vld [vmem:[#allocation20 + $0x16a0] sm:$0xff]
    %v2636 = vld [vmem:[#allocation20 + $0x16a8] sm:$0xff]
    %v2637 = vld [vmem:[#allocation20 + $0x16b0] sm:$0xff]
    %v2638 = vld [vmem:[#allocation20 + $0x16b8] sm:$0xff]
    %v2639 = vld [vmem:[#allocation20 + $0x16c0] sm:$0xff]
    %v2640 = vld [vmem:[#allocation20 + $0x16c8] sm:$0xff]
    %v2641 = vld [vmem:[#allocation20 + $0x16d0] sm:$0xff]
    %v2642 = vld [vmem:[#allocation20 + $0x16d8] sm:$0xff]
    %v2643 = vld [vmem:[#allocation20 + $0x16e0] sm:$0xff]
    %v2644 = vld [vmem:[#allocation20 + $0x16e8] sm:$0xff]
    %v2645 = vld [vmem:[#allocation20 + $0x16f0] sm:$0xff]
    %v2646 = vld [vmem:[#allocation20 + $0x16f8] sm:$0xff]
    %v2647 = vld [vmem:[#allocation20 + $0x1700] sm:$0xff]
    %v2648 = vld [vmem:[#allocation20 + $0x1708] sm:$0xff]
    %v2649 = vld [vmem:[#allocation20 + $0x1710] sm:$0xff]
    %v2650 = vld [vmem:[#allocation20 + $0x1718] sm:$0xff]
    %v2651 = vld [vmem:[#allocation20 + $0x1720] sm:$0xff]
    %v2652 = vld [vmem:[#allocation20 + $0x1728] sm:$0xff]
    %v2653 = vld [vmem:[#allocation20 + $0x1730] sm:$0xff]
    %v2654 = vld [vmem:[#allocation20 + $0x1738] sm:$0xff]
    %v2655 = vld [vmem:[#allocation20 + $0x1740] sm:$0xff]
    %v2656 = vld [vmem:[#allocation20 + $0x1748] sm:$0xff]
    %v2657 = vld [vmem:[#allocation20 + $0x1750] sm:$0xff]
    %v2658 = vld [vmem:[#allocation20 + $0x1758] sm:$0xff]
    %v2659 = vld [vmem:[#allocation20 + $0x1760] sm:$0xff]
    %v2660 = vld [vmem:[#allocation20 + $0x1768] sm:$0xff]
    %v2661 = vld [vmem:[#allocation20 + $0x1770] sm:$0xff]
    %v2662 = vld [vmem:[#allocation20 + $0x1778] sm:$0xff]
    %v2663 = vld [vmem:[#allocation20 + $0x1780] sm:$0xff]
    %v2664 = vld [vmem:[#allocation20 + $0x1788] sm:$0xff]
    %v2665 = vld [vmem:[#allocation20 + $0x1790] sm:$0xff]
    %v2666 = vld [vmem:[#allocation20 + $0x1798] sm:$0xff]
    %v2667 = vld [vmem:[#allocation20 + $0x17a0] sm:$0xff]
    %v2668 = vld [vmem:[#allocation20 + $0x17a8] sm:$0xff]
    %v2669 = vld [vmem:[#allocation20 + $0x17b0] sm:$0xff]
    %v2670 = vld [vmem:[#allocation20 + $0x17b8] sm:$0xff]
    %v2671 = vld [vmem:[#allocation20 + $0x17c0] sm:$0xff]
    %v2672 = vld [vmem:[#allocation20 + $0x17c8] sm:$0xff]
    %v2673 = vld [vmem:[#allocation20 + $0x17d0] sm:$0xff]
    %v2674 = vld [vmem:[#allocation20 + $0x17d8] sm:$0xff]
    %v2675 = vld [vmem:[#allocation20 + $0x17e0] sm:$0xff]
    %v2676 = vld [vmem:[#allocation20 + $0x17e8] sm:$0xff]
    %v2677 = vld [vmem:[#allocation20 + $0x17f0] sm:$0xff]
    %v2678 = vld [vmem:[#allocation20 + $0x17f8] sm:$0xff]
    %v2679 = vld [vmem:[#allocation20 + $0x1800] sm:$0xff]
    %v2680 = vld [vmem:[#allocation20 + $0x1808] sm:$0xff]
    %v2681 = vld [vmem:[#allocation20 + $0x1810] sm:$0xff]
    %v2682 = vld [vmem:[#allocation20 + $0x1818] sm:$0xff]
    %v2683 = vld [vmem:[#allocation20 + $0x1820] sm:$0xff]
    %v2684 = vld [vmem:[#allocation20 + $0x1828] sm:$0xff]
    %v2685 = vld [vmem:[#allocation20 + $0x1830] sm:$0xff]
    %v2686 = vld [vmem:[#allocation20 + $0x1838] sm:$0xff]
    %v2687 = vld [vmem:[#allocation20 + $0x1840] sm:$0xff]
    %v2688 = vld [vmem:[#allocation20 + $0x1848] sm:$0xff]
    %v2689 = vld [vmem:[#allocation20 + $0x1850] sm:$0xff]
    %v2690 = vld [vmem:[#allocation20 + $0x1858] sm:$0xff]
    %v2691 = vld [vmem:[#allocation20 + $0x1860] sm:$0xff]
    %v2692 = vld [vmem:[#allocation20 + $0x1868] sm:$0xff]
    %v2693 = vld [vmem:[#allocation20 + $0x1870] sm:$0xff]
    %v2694 = vld [vmem:[#allocation20 + $0x1878] sm:$0xff]
    %v2695 = vld [vmem:[#allocation20 + $0x1880] sm:$0xff]
    %v2696 = vld [vmem:[#allocation20 + $0x1888] sm:$0xff]
    %v2697 = vld [vmem:[#allocation20 + $0x1890] sm:$0xff]
    %v2698 = vld [vmem:[#allocation20 + $0x1898] sm:$0xff]
    %v2699 = vld [vmem:[#allocation20 + $0x18a0] sm:$0xff]
    %v2700 = vld [vmem:[#allocation20 + $0x18a8] sm:$0xff]
    %v2701 = vld [vmem:[#allocation20 + $0x18b0] sm:$0xff]
    %v2702 = vld [vmem:[#allocation20 + $0x18b8] sm:$0xff]
    %v2703 = vld [vmem:[#allocation20 + $0x18c0] sm:$0xff]
    %v2704 = vld [vmem:[#allocation20 + $0x18c8] sm:$0xff]
    %v2705 = vld [vmem:[#allocation20 + $0x18d0] sm:$0xff]
    %v2706 = vld [vmem:[#allocation20 + $0x18d8] sm:$0xff]
    %v2707 = vld [vmem:[#allocation20 + $0x18e0] sm:$0xff]
    %v2708 = vld [vmem:[#allocation20 + $0x18e8] sm:$0xff]
    %v2709 = vld [vmem:[#allocation20 + $0x18f0] sm:$0xff]
    %v2710 = vld [vmem:[#allocation20 + $0x18f8] sm:$0xff]
    %v2711 = vld [vmem:[#allocation20 + $0x1900] sm:$0xff]
    %v2712 = vld [vmem:[#allocation20 + $0x1908] sm:$0xff]
    %v2713 = vld [vmem:[#allocation20 + $0x1910] sm:$0xff]
    %v2714 = vld [vmem:[#allocation20 + $0x1918] sm:$0xff]
    %v2715 = vld [vmem:[#allocation20 + $0x1920] sm:$0xff]
    %v2716 = vld [vmem:[#allocation20 + $0x1928] sm:$0xff]
    %v2717 = vld [vmem:[#allocation20 + $0x1930] sm:$0xff]
    %v2718 = vld [vmem:[#allocation20 + $0x1938] sm:$0xff]
    %v2719 = vld [vmem:[#allocation20 + $0x1940] sm:$0xff]
    %v2720 = vld [vmem:[#allocation20 + $0x1948] sm:$0xff]
    %v2721 = vld [vmem:[#allocation20 + $0x1950] sm:$0xff]
    %v2722 = vld [vmem:[#allocation20 + $0x1958] sm:$0xff]
    %v2723 = vld [vmem:[#allocation20 + $0x1960] sm:$0xff]
    %v2724 = vld [vmem:[#allocation20 + $0x1968] sm:$0xff]
    %v2725 = vld [vmem:[#allocation20 + $0x1970] sm:$0xff]
    %v2726 = vld [vmem:[#allocation20 + $0x1978] sm:$0xff]
    %v2727 = vld [vmem:[#allocation20 + $0x1980] sm:$0xff]
    %v2728 = vld [vmem:[#allocation20 + $0x1988] sm:$0xff]
    %v2729 = vld [vmem:[#allocation20 + $0x1990] sm:$0xff]
    %v2730 = vld [vmem:[#allocation20 + $0x1998] sm:$0xff]
    %v2731 = vld [vmem:[#allocation20 + $0x19a0] sm:$0xff]
    %v2732 = vld [vmem:[#allocation20 + $0x19a8] sm:$0xff]
    %v2733 = vld [vmem:[#allocation20 + $0x19b0] sm:$0xff]
    %v2734 = vld [vmem:[#allocation20 + $0x19b8] sm:$0xff]
    %v2735 = vld [vmem:[#allocation20 + $0x19c0] sm:$0xff]
    %v2736 = vld [vmem:[#allocation20 + $0x19c8] sm:$0xff]
    %v2737 = vld [vmem:[#allocation20 + $0x19d0] sm:$0xff]
    %v2738 = vld [vmem:[#allocation20 + $0x19d8] sm:$0xff]
    %v2739 = vld [vmem:[#allocation20 + $0x19e0] sm:$0xff]
    %v2740 = vld [vmem:[#allocation20 + $0x19e8] sm:$0xff]
    %v2741 = vld [vmem:[#allocation20 + $0x19f0] sm:$0xff]
    %v2742 = vld [vmem:[#allocation20 + $0x19f8] sm:$0xff]
    %v2743 = vld [vmem:[#allocation20 + $0x1a00] sm:$0xff]
    %v2744 = vld [vmem:[#allocation20 + $0x1a08] sm:$0xff]
    %v2745 = vld [vmem:[#allocation20 + $0x1a10] sm:$0xff]
    %v2746 = vld [vmem:[#allocation20 + $0x1a18] sm:$0xff]
    %v2747 = vld [vmem:[#allocation20 + $0x1a20] sm:$0xff]
    %v2748 = vld [vmem:[#allocation20 + $0x1a28] sm:$0xff]
    %v2749 = vld [vmem:[#allocation20 + $0x1a30] sm:$0xff]
    %v2750 = vld [vmem:[#allocation20 + $0x1a38] sm:$0xff]
    %v2751 = vld [vmem:[#allocation20 + $0x1a40] sm:$0xff]
    %v2752 = vld [vmem:[#allocation20 + $0x1a48] sm:$0xff]
    %v2753 = vld [vmem:[#allocation20 + $0x1a50] sm:$0xff]
    %v2754 = vld [vmem:[#allocation20 + $0x1a58] sm:$0xff]
    %v2755 = vld [vmem:[#allocation20 + $0x1a60] sm:$0xff]
    %v2756 = vld [vmem:[#allocation20 + $0x1a68] sm:$0xff]
    %v2757 = vld [vmem:[#allocation20 + $0x1a70] sm:$0xff]
    %v2758 = vld [vmem:[#allocation20 + $0x1a78] sm:$0xff]
    %v2759 = vld [vmem:[#allocation20 + $0x1a80] sm:$0xff]
    %v2760 = vld [vmem:[#allocation20 + $0x1a88] sm:$0xff]
    %v2761 = vld [vmem:[#allocation20 + $0x1a90] sm:$0xff]
    %v2762 = vld [vmem:[#allocation20 + $0x1a98] sm:$0xff]
    %v2763 = vld [vmem:[#allocation20 + $0x1aa0] sm:$0xff]
    %v2764 = vld [vmem:[#allocation20 + $0x1aa8] sm:$0xff]
    %v2765 = vld [vmem:[#allocation20 + $0x1ab0] sm:$0xff]
    %v2766 = vld [vmem:[#allocation20 + $0x1ab8] sm:$0xff]
    %v2767 = vld [vmem:[#allocation20 + $0x1ac0] sm:$0xff]
    %v2768 = vld [vmem:[#allocation20 + $0x1ac8] sm:$0xff]
    %v2769 = vld [vmem:[#allocation20 + $0x1ad0] sm:$0xff]
    %v2770 = vld [vmem:[#allocation20 + $0x1ad8] sm:$0xff]
    %v2771 = vld [vmem:[#allocation20 + $0x1ae0] sm:$0xff]
    %v2772 = vld [vmem:[#allocation20 + $0x1ae8] sm:$0xff]
    %v2773 = vld [vmem:[#allocation20 + $0x1af0] sm:$0xff]
    %v2774 = vld [vmem:[#allocation20 + $0x1af8] sm:$0xff]
    %v2775 = vld [vmem:[#allocation20 + $0x1b00] sm:$0xff]
    %v2776 = vld [vmem:[#allocation20 + $0x1b08] sm:$0xff]
    %v2777 = vld [vmem:[#allocation20 + $0x1b10] sm:$0xff]
    %v2778 = vld [vmem:[#allocation20 + $0x1b18] sm:$0xff]
    %v2779 = vld [vmem:[#allocation20 + $0x1b20] sm:$0xff]
    %v2780 = vld [vmem:[#allocation20 + $0x1b28] sm:$0xff]
    %v2781 = vld [vmem:[#allocation20 + $0x1b30] sm:$0xff]
    %v2782 = vld [vmem:[#allocation20 + $0x1b38] sm:$0xff]
    %v2783 = vld [vmem:[#allocation20 + $0x1b40] sm:$0xff]
    %v2784 = vld [vmem:[#allocation20 + $0x1b48] sm:$0xff]
    %v2785 = vld [vmem:[#allocation20 + $0x1b50] sm:$0xff]
    %v2786 = vld [vmem:[#allocation20 + $0x1b58] sm:$0xff]
    %v2787 = vld [vmem:[#allocation20 + $0x1b60] sm:$0xff]
    %v2788 = vld [vmem:[#allocation20 + $0x1b68] sm:$0xff]
    %v2789 = vld [vmem:[#allocation20 + $0x1b70] sm:$0xff]
    %v2790 = vld [vmem:[#allocation20 + $0x1b78] sm:$0xff]
    %v2791 = vld [vmem:[#allocation20 + $0x1b80] sm:$0xff]
    %v2792 = vld [vmem:[#allocation20 + $0x1b88] sm:$0xff]
    %v2793 = vld [vmem:[#allocation20 + $0x1b90] sm:$0xff]
    %v2794 = vld [vmem:[#allocation20 + $0x1b98] sm:$0xff]
    %v2795 = vld [vmem:[#allocation20 + $0x1ba0] sm:$0xff]
    %v2796 = vld [vmem:[#allocation20 + $0x1ba8] sm:$0xff]
    %v2797 = vld [vmem:[#allocation20 + $0x1bb0] sm:$0xff]
    %v2798 = vld [vmem:[#allocation20 + $0x1bb8] sm:$0xff]
    %v2799 = vld [vmem:[#allocation20 + $0x1bc0] sm:$0xff]
    %v2800 = vld [vmem:[#allocation20 + $0x1bc8] sm:$0xff]
    %v2801 = vld [vmem:[#allocation20 + $0x1bd0] sm:$0xff]
    %v2802 = vld [vmem:[#allocation20 + $0x1bd8] sm:$0xff]
    %v2803 = vld [vmem:[#allocation20 + $0x1be0] sm:$0xff]
    %v2804 = vld [vmem:[#allocation20 + $0x1be8] sm:$0xff]
    %v2805 = vld [vmem:[#allocation20 + $0x1bf0] sm:$0xff]
    %v2806 = vld [vmem:[#allocation20 + $0x1bf8] sm:$0xff]
    %v2807 = vld [vmem:[#allocation20 + $0x1c00] sm:$0xff]
    %v2808 = vld [vmem:[#allocation20 + $0x1c08] sm:$0xff]
    %v2809 = vld [vmem:[#allocation20 + $0x1c10] sm:$0xff]
    %v2810 = vld [vmem:[#allocation20 + $0x1c18] sm:$0xff]
    %v2811 = vld [vmem:[#allocation20 + $0x1c20] sm:$0xff]
    %v2812 = vld [vmem:[#allocation20 + $0x1c28] sm:$0xff]
    %v2813 = vld [vmem:[#allocation20 + $0x1c30] sm:$0xff]
    %v2814 = vld [vmem:[#allocation20 + $0x1c38] sm:$0xff]
    %v2815 = vld [vmem:[#allocation20 + $0x1c40] sm:$0xff]
    %v2816 = vld [vmem:[#allocation20 + $0x1c48] sm:$0xff]
    %v2817 = vld [vmem:[#allocation20 + $0x1c50] sm:$0xff]
    %v2818 = vld [vmem:[#allocation20 + $0x1c58] sm:$0xff]
    %v2819 = vld [vmem:[#allocation20 + $0x1c60] sm:$0xff]
    %v2820 = vld [vmem:[#allocation20 + $0x1c68] sm:$0xff]
    %v2821 = vld [vmem:[#allocation20 + $0x1c70] sm:$0xff]
    %v2822 = vld [vmem:[#allocation20 + $0x1c78] sm:$0xff]
    %v2823 = vld [vmem:[#allocation20 + $0x1c80] sm:$0xff]
    %v2824 = vld [vmem:[#allocation20 + $0x1c88] sm:$0xff]
    %v2825 = vld [vmem:[#allocation20 + $0x1c90] sm:$0xff]
    %v2826 = vld [vmem:[#allocation20 + $0x1c98] sm:$0xff]
    %v2827 = vld [vmem:[#allocation20 + $0x1ca0] sm:$0xff]
    %v2828 = vld [vmem:[#allocation20 + $0x1ca8] sm:$0xff]
    %v2829 = vld [vmem:[#allocation20 + $0x1cb0] sm:$0xff]
    %v2830 = vld [vmem:[#allocation20 + $0x1cb8] sm:$0xff]
    %v2831 = vld [vmem:[#allocation20 + $0x1cc0] sm:$0xff]
    %v2832 = vld [vmem:[#allocation20 + $0x1cc8] sm:$0xff]
    %v2833 = vld [vmem:[#allocation20 + $0x1cd0] sm:$0xff]
    %v2834 = vld [vmem:[#allocation20 + $0x1cd8] sm:$0xff]
    %v2835 = vld [vmem:[#allocation20 + $0x1ce0] sm:$0xff]
    %v2836 = vld [vmem:[#allocation20 + $0x1ce8] sm:$0xff]
    %v2837 = vld [vmem:[#allocation20 + $0x1cf0] sm:$0xff]
    %v2838 = vld [vmem:[#allocation20 + $0x1cf8] sm:$0xff]
    %v2839 = vld [vmem:[#allocation20 + $0x1d00] sm:$0xff]
    %v2840 = vld [vmem:[#allocation20 + $0x1d08] sm:$0xff]
    %v2841 = vld [vmem:[#allocation20 + $0x1d10] sm:$0xff]
    %v2842 = vld [vmem:[#allocation20 + $0x1d18] sm:$0xff]
    %v2843 = vld [vmem:[#allocation20 + $0x1d20] sm:$0xff]
    %v2844 = vld [vmem:[#allocation20 + $0x1d28] sm:$0xff]
    %v2845 = vld [vmem:[#allocation20 + $0x1d30] sm:$0xff]
    %v2846 = vld [vmem:[#allocation20 + $0x1d38] sm:$0xff]
    %v2847 = vld [vmem:[#allocation20 + $0x1d40] sm:$0xff]
    %v2848 = vld [vmem:[#allocation20 + $0x1d48] sm:$0xff]
    %v2849 = vld [vmem:[#allocation20 + $0x1d50] sm:$0xff]
    %v2850 = vld [vmem:[#allocation20 + $0x1d58] sm:$0xff]
    %v2851 = vld [vmem:[#allocation20 + $0x1d60] sm:$0xff]
    %v2852 = vld [vmem:[#allocation20 + $0x1d68] sm:$0xff]
    %v2853 = vld [vmem:[#allocation20 + $0x1d70] sm:$0xff]
    %v2854 = vld [vmem:[#allocation20 + $0x1d78] sm:$0xff]
    %v2855 = vld [vmem:[#allocation20 + $0x1d80] sm:$0xff]
    %v2856 = vld [vmem:[#allocation20 + $0x1d88] sm:$0xff]
    %v2857 = vld [vmem:[#allocation20 + $0x1d90] sm:$0xff]
    %v2858 = vld [vmem:[#allocation20 + $0x1d98] sm:$0xff]
    %v2859 = vld [vmem:[#allocation20 + $0x1da0] sm:$0xff]
    %v2860 = vld [vmem:[#allocation20 + $0x1da8] sm:$0xff]
    %v2861 = vld [vmem:[#allocation20 + $0x1db0] sm:$0xff]
    %v2862 = vld [vmem:[#allocation20 + $0x1db8] sm:$0xff]
    %v2863 = vld [vmem:[#allocation20 + $0x1dc0] sm:$0xff]
    %v2864 = vld [vmem:[#allocation20 + $0x1dc8] sm:$0xff]
    %v2865 = vld [vmem:[#allocation20 + $0x1dd0] sm:$0xff]
    %v2866 = vld [vmem:[#allocation20 + $0x1dd8] sm:$0xff]
    %v2867 = vld [vmem:[#allocation20 + $0x1de0] sm:$0xff]
    %v2868 = vld [vmem:[#allocation20 + $0x1de8] sm:$0xff]
    %v2869 = vld [vmem:[#allocation20 + $0x1df0] sm:$0xff]
    %v2870 = vld [vmem:[#allocation20 + $0x1df8] sm:$0xff]
    %v2871 = vld [vmem:[#allocation20 + $0x1e00] sm:$0xff]
    %v2872 = vld [vmem:[#allocation20 + $0x1e08] sm:$0xff]
    %v2873 = vld [vmem:[#allocation20 + $0x1e10] sm:$0xff]
    %v2874 = vld [vmem:[#allocation20 + $0x1e18] sm:$0xff]
    %v2875 = vld [vmem:[#allocation20 + $0x1e20] sm:$0xff]
    %v2876 = vld [vmem:[#allocation20 + $0x1e28] sm:$0xff]
    %v2877 = vld [vmem:[#allocation20 + $0x1e30] sm:$0xff]
    %v2878 = vld [vmem:[#allocation20 + $0x1e38] sm:$0xff]
    %v2879 = vld [vmem:[#allocation20 + $0x1e40] sm:$0xff]
    %v2880 = vld [vmem:[#allocation20 + $0x1e48] sm:$0xff]
    %v2881 = vld [vmem:[#allocation20 + $0x1e50] sm:$0xff]
    %v2882 = vld [vmem:[#allocation20 + $0x1e58] sm:$0xff]
    %v2883 = vld [vmem:[#allocation20 + $0x1e60] sm:$0xff]
    %v2884 = vld [vmem:[#allocation20 + $0x1e68] sm:$0xff]
    %v2885 = vld [vmem:[#allocation20 + $0x1e70] sm:$0xff]
    %v2886 = vld [vmem:[#allocation20 + $0x1e78] sm:$0xff]
    %v2887 = vld [vmem:[#allocation20 + $0x1e80] sm:$0xff]
    %v2888 = vld [vmem:[#allocation20 + $0x1e88] sm:$0xff]
    %v2889 = vld [vmem:[#allocation20 + $0x1e90] sm:$0xff]
    %v2890 = vld [vmem:[#allocation20 + $0x1e98] sm:$0xff]
    %v2891 = vld [vmem:[#allocation20 + $0x1ea0] sm:$0xff]
    %v2892 = vld [vmem:[#allocation20 + $0x1ea8] sm:$0xff]
    %v2893 = vld [vmem:[#allocation20 + $0x1eb0] sm:$0xff]
    %v2894 = vld [vmem:[#allocation20 + $0x1eb8] sm:$0xff]
    %v2895 = vld [vmem:[#allocation20 + $0x1ec0] sm:$0xff]
    %v2896 = vld [vmem:[#allocation20 + $0x1ec8] sm:$0xff]
    %v2897 = vld [vmem:[#allocation20 + $0x1ed0] sm:$0xff]
    %v2898 = vld [vmem:[#allocation20 + $0x1ed8] sm:$0xff]
    %v2899 = vld [vmem:[#allocation20 + $0x1ee0] sm:$0xff]
    %v2900 = vld [vmem:[#allocation20 + $0x1ee8] sm:$0xff]
    %v2901 = vld [vmem:[#allocation20 + $0x1ef0] sm:$0xff]
    %v2902 = vld [vmem:[#allocation20 + $0x1ef8] sm:$0xff]
    %v2903 = vld [vmem:[#allocation20 + $0x1f00] sm:$0xff]
    %v2904 = vld [vmem:[#allocation20 + $0x1f08] sm:$0xff]
    %v2905 = vld [vmem:[#allocation20 + $0x1f10] sm:$0xff]
    %v2906 = vld [vmem:[#allocation20 + $0x1f18] sm:$0xff]
    %v2907 = vld [vmem:[#allocation20 + $0x1f20] sm:$0xff]
    %v2908 = vld [vmem:[#allocation20 + $0x1f28] sm:$0xff]
    %v2909 = vld [vmem:[#allocation20 + $0x1f30] sm:$0xff]
    %v2910 = vld [vmem:[#allocation20 + $0x1f38] sm:$0xff]
    %v2911 = vld [vmem:[#allocation20 + $0x1f40] sm:$0xff]
    %v2912 = vld [vmem:[#allocation20 + $0x1f48] sm:$0xff]
    %v2913 = vld [vmem:[#allocation20 + $0x1f50] sm:$0xff]
    %v2914 = vld [vmem:[#allocation20 + $0x1f58] sm:$0xff]
    %v2915 = vld [vmem:[#allocation20 + $0x1f60] sm:$0xff]
    %v2916 = vld [vmem:[#allocation20 + $0x1f68] sm:$0xff]
    %v2917 = vld [vmem:[#allocation20 + $0x1f70] sm:$0xff]
    %v2918 = vld [vmem:[#allocation20 + $0x1f78] sm:$0xff]
    %v2919 = vld [vmem:[#allocation20 + $0x1f80] sm:$0xff]
    %v2920 = vld [vmem:[#allocation20 + $0x1f88] sm:$0xff]
    %v2921 = vld [vmem:[#allocation20 + $0x1f90] sm:$0xff]
    %v2922 = vld [vmem:[#allocation20 + $0x1f98] sm:$0xff]
    %v2923 = vld [vmem:[#allocation20 + $0x1fa0] sm:$0xff]
    %v2924 = vld [vmem:[#allocation20 + $0x1fa8] sm:$0xff]
    %v2925 = vld [vmem:[#allocation20 + $0x1fb0] sm:$0xff]
    %v2926 = vld [vmem:[#allocation20 + $0x1fb8] sm:$0xff]
    %v2927 = vld [vmem:[#allocation20 + $0x1fc0] sm:$0xff]
    %v2928 = vld [vmem:[#allocation20 + $0x1fc8] sm:$0xff]
    %v2929 = vld [vmem:[#allocation20 + $0x1fd0] sm:$0xff]
    %v2930 = vld [vmem:[#allocation20 + $0x1fd8] sm:$0xff]
    %v2931 = vld [vmem:[#allocation20 + $0x1fe0] sm:$0xff]
    %v2932 = vld [vmem:[#allocation20 + $0x1fe8] sm:$0xff]
    %v2933 = vld [vmem:[#allocation20 + $0x1ff0] sm:$0xff]
    %v2934 = vld [vmem:[#allocation20 + $0x1ff8] sm:$0xff]
    %v2935 = vld [vmem:[#allocation22] sm:$0xff]
    %v2937 = vperm.slane %v2935, 0
    %v2938 = vperm.slane %v2935, 1
    %v2939 = vperm.slane %v2935, 2
    %v2940 = vperm.slane %v2935, 3
    %v2941 = vperm.slane %v2935, 4
    %v2942 = vperm.slane %v2935, 5
    %v2943 = vperm.slane %v2935, 6
    %v2944 = vperm.slane %v2935, 7
    %2953 = vmatpush.msra.mxu0 %v2031
    %2954 = vmatpush.msra.mxu0 %v2023
    %2955 = vmatpush.msra.mxu0 %v2015
    %2956 = vmatpush.msra.mxu0 %v2007
    %2957 = vmatpush.msra.mxu0 %v1999
    %2958 = vmatpush.msra.mxu0 %v1991
    %2959 = vmatpush.msra.mxu0 %v1983
    %2960 = vmatpush.msra.mxu0 %v1975
    %2961 = vmatpush.msra.mxu0 %v1967
    %2962 = vmatpush.msra.mxu0 %v1959
    %2963 = vmatpush.msra.mxu0 %v1951
    %2964 = vmatpush.msra.mxu0 %v1943
    %2965 = vmatpush.msra.mxu0 %v1935
    %2966 = vmatpush.msra.mxu0 %v1927
    %2967 = vmatpush.msra.mxu0 %v1919
    %2968 = vmatpush.msra.mxu0 %v1911
    %2969 = vmatmul.f32.gmra.mxu0 %v1903
    %v2970 = vpop.f32.mrf.mxu0
    %v2971 = vadd.f32 %v2937, %v2970
    %2972 = vdwg.mxu0
    %2973 = vmatpush.msra.mxu0 %v2159
    %2974 = vmatpush.msra.mxu0 %v2151
    %2975 = vmatpush.msra.mxu0 %v2143
    %2976 = vmatpush.msra.mxu0 %v2135
    %2977 = vmatpush.msra.mxu0 %v2127
    %2978 = vmatpush.msra.mxu0 %v2119
    %2979 = vmatpush.msra.mxu0 %v2111
    %2980 = vmatpush.msra.mxu0 %v2103
    %2981 = vmatpush.msra.mxu0 %v2095
    %2982 = vmatpush.msra.mxu0 %v2087
    %2983 = vmatpush.msra.mxu0 %v2079
    %2984 = vmatpush.msra.mxu0 %v2071
    %2985 = vmatpush.msra.mxu0 %v2063
    %2986 = vmatpush.msra.mxu0 %v2055
    %2987 = vmatpush.msra.mxu0 %v2047
    %2988 = vmatpush.msra.mxu0 %v2039
    %2989 = vmatmul.f32.gmra.mxu0 %v1904
    %v2990 = vpop.f32.mrf.mxu0
    %v2991 = vadd.f32 %v2971, %v2990
    %2992 = vdwg.mxu0
    %2993 = vmatpush.msra.mxu0 %v2287
    %2994 = vmatpush.msra.mxu0 %v2279
    %2995 = vmatpush.msra.mxu0 %v2271
    %2996 = vmatpush.msra.mxu0 %v2263
    %2997 = vmatpush.msra.mxu0 %v2255
    %2998 = vmatpush.msra.mxu0 %v2247
    %2999 = vmatpush.msra.mxu0 %v2239
    %3000 = vmatpush.msra.mxu0 %v2231
    %3001 = vmatpush.msra.mxu0 %v2223
    %3002 = vmatpush.msra.mxu0 %v2215
    %3003 = vmatpush.msra.mxu0 %v2207
    %3004 = vmatpush.msra.mxu0 %v2199
    %3005 = vmatpush.msra.mxu0 %v2191
    %3006 = vmatpush.msra.mxu0 %v2183
    %3007 = vmatpush.msra.mxu0 %v2175
    %3008 = vmatpush.msra.mxu0 %v2167
    %3009 = vmatmul.f32.gmra.mxu0 %v1905
    %v3010 = vpop.f32.mrf.mxu0
    %v3011 = vadd.f32 %v2991, %v3010
    %3012 = vdwg.mxu0
    %3013 = vmatpush.msra.mxu0 %v2415
    %3014 = vmatpush.msra.mxu0 %v2407
    %3015 = vmatpush.msra.mxu0 %v2399
    %3016 = vmatpush.msra.mxu0 %v2391
    %3017 = vmatpush.msra.mxu0 %v2383
    %3018 = vmatpush.msra.mxu0 %v2375
    %3019 = vmatpush.msra.mxu0 %v2367
    %3020 = vmatpush.msra.mxu0 %v2359
    %3021 = vmatpush.msra.mxu0 %v2351
    %3022 = vmatpush.msra.mxu0 %v2343
    %3023 = vmatpush.msra.mxu0 %v2335
    %3024 = vmatpush.msra.mxu0 %v2327
    %3025 = vmatpush.msra.mxu0 %v2319
    %3026 = vmatpush.msra.mxu0 %v2311
    %3027 = vmatpush.msra.mxu0 %v2303
    %3028 = vmatpush.msra.mxu0 %v2295
    %3029 = vmatmul.f32.gmra.mxu0 %v1906
    %v3030 = vpop.f32.mrf.mxu0
    %v3031 = vadd.f32 %v3011, %v3030
    %3032 = vdwg.mxu0
    %3033 = vmatpush.msra.mxu0 %v2543
    %3034 = vmatpush.msra.mxu0 %v2535
    %3035 = vmatpush.msra.mxu0 %v2527
    %3036 = vmatpush.msra.mxu0 %v2519
    %3037 = vmatpush.msra.mxu0 %v2511
    %3038 = vmatpush.msra.mxu0 %v2503
    %3039 = vmatpush.msra.mxu0 %v2495
    %3040 = vmatpush.msra.mxu0 %v2487
    %3041 = vmatpush.msra.mxu0 %v2479
    %3042 = vmatpush.msra.mxu0 %v2471
    %3043 = vmatpush.msra.mxu0 %v2463
    %3044 = vmatpush.msra.mxu0 %v2455
    %3045 = vmatpush.msra.mxu0 %v2447
    %3046 = vmatpush.msra.mxu0 %v2439
    %3047 = vmatpush.msra.mxu0 %v2431
    %3048 = vmatpush.msra.mxu0 %v2423
    %3049 = vmatmul.f32.gmra.mxu0 %v1907
    %v3050 = vpop.f32.mrf.mxu0
    %v3051 = vadd.f32 %v3031, %v3050
    %3052 = vdwg.mxu0
    %3053 = vmatpush.msra.mxu0 %v2671
    %3054 = vmatpush.msra.mxu0 %v2663
    %3055 = vmatpush.msra.mxu0 %v2655
    %3056 = vmatpush.msra.mxu0 %v2647
    %3057 = vmatpush.msra.mxu0 %v2639
    %3058 = vmatpush.msra.mxu0 %v2631
    %3059 = vmatpush.msra.mxu0 %v2623
    %3060 = vmatpush.msra.mxu0 %v2615
    %3061 = vmatpush.msra.mxu0 %v2607
    %3062 = vmatpush.msra.mxu0 %v2599
    %3063 = vmatpush.msra.mxu0 %v2591
    %3064 = vmatpush.msra.mxu0 %v2583
    %3065 = vmatpush.msra.mxu0 %v2575
    %3066 = vmatpush.msra.mxu0 %v2567
    %3067 = vmatpush.msra.mxu0 %v2559
    %3068 = vmatpush.msra.mxu0 %v2551
    %3069 = vmatmul.f32.gmra.mxu0 %v1908
    %v3070 = vpop.f32.mrf.mxu0
    %v3071 = vadd.f32 %v3051, %v3070
    %3072 = vdwg.mxu0
    %3073 = vmatpush.msra.mxu0 %v2799
    %3074 = vmatpush.msra.mxu0 %v2791
    %3075 = vmatpush.msra.mxu0 %v2783
    %3076 = vmatpush.msra.mxu0 %v2775
    %3077 = vmatpush.msra.mxu0 %v2767
    %3078 = vmatpush.msra.mxu0 %v2759
    %3079 = vmatpush.msra.mxu0 %v2751
    %3080 = vmatpush.msra.mxu0 %v2743
    %3081 = vmatpush.msra.mxu0 %v2735
    %3082 = vmatpush.msra.mxu0 %v2727
    %3083 = vmatpush.msra.mxu0 %v2719
    %3084 = vmatpush.msra.mxu0 %v2711
    %3085 = vmatpush.msra.mxu0 %v2703
    %3086 = vmatpush.msra.mxu0 %v2695
    %3087 = vmatpush.msra.mxu0 %v2687
    %3088 = vmatpush.msra.mxu0 %v2679
    %3089 = vmatmul.f32.gmra.mxu0 %v1909
    %v3090 = vpop.f32.mrf.mxu0
    %v3091 = vadd.f32 %v3071, %v3090
    %3092 = vdwg.mxu0
    %3093 = vmatpush.msra.mxu0 %v2927
    %3094 = vmatpush.msra.mxu0 %v2919
    %3095 = vmatpush.msra.mxu0 %v2911
    %3096 = vmatpush.msra.mxu0 %v2903
    %3097 = vmatpush.msra.mxu0 %v2895
    %3098 = vmatpush.msra.mxu0 %v2887
    %3099 = vmatpush.msra.mxu0 %v2879
    %3100 = vmatpush.msra.mxu0 %v2871
    %3101 = vmatpush.msra.mxu0 %v2863
    %3102 = vmatpush.msra.mxu0 %v2855
    %3103 = vmatpush.msra.mxu0 %v2847
    %3104 = vmatpush.msra.mxu0 %v2839
    %3105 = vmatpush.msra.mxu0 %v2831
    %3106 = vmatpush.msra.mxu0 %v2823
    %3107 = vmatpush.msra.mxu0 %v2815
    %3108 = vmatpush.msra.mxu0 %v2807
    %3109 = vmatmul.f32.gmra.mxu0 %v1910
    %v3110 = vpop.f32.mrf.mxu0
    %v3111 = vadd.f32 %v3091, %v3110
    %3112 = vdwg.mxu0
    %3113 = vmatpush.msra.mxu0 %v2032
    %3114 = vmatpush.msra.mxu0 %v2024
    %3115 = vmatpush.msra.mxu0 %v2016
    %3116 = vmatpush.msra.mxu0 %v2008
    %3117 = vmatpush.msra.mxu0 %v2000
    %3118 = vmatpush.msra.mxu0 %v1992
    %3119 = vmatpush.msra.mxu0 %v1984
    %3120 = vmatpush.msra.mxu0 %v1976
    %3121 = vmatpush.msra.mxu0 %v1968
    %3122 = vmatpush.msra.mxu0 %v1960
    %3123 = vmatpush.msra.mxu0 %v1952
    %3124 = vmatpush.msra.mxu0 %v1944
    %3125 = vmatpush.msra.mxu0 %v1936
    %3126 = vmatpush.msra.mxu0 %v1928
    %3127 = vmatpush.msra.mxu0 %v1920
    %3128 = vmatpush.msra.mxu0 %v1912
    %3129 = vmatmul.f32.gmra.mxu0 %v1903
    %v3130 = vpop.f32.mrf.mxu0
    %v3131 = vadd.f32 %v2938, %v3130
    %3132 = vdwg.mxu0
    %3133 = vmatpush.msra.mxu0 %v2160
    %3134 = vmatpush.msra.mxu0 %v2152
    %3135 = vmatpush.msra.mxu0 %v2144
    %3136 = vmatpush.msra.mxu0 %v2136
    %3137 = vmatpush.msra.mxu0 %v2128
    %3138 = vmatpush.msra.mxu0 %v2120
    %3139 = vmatpush.msra.mxu0 %v2112
    %3140 = vmatpush.msra.mxu0 %v2104
    %3141 = vmatpush.msra.mxu0 %v2096
    %3142 = vmatpush.msra.mxu0 %v2088
    %3143 = vmatpush.msra.mxu0 %v2080
    %3144 = vmatpush.msra.mxu0 %v2072
    %3145 = vmatpush.msra.mxu0 %v2064
    %3146 = vmatpush.msra.mxu0 %v2056
    %3147 = vmatpush.msra.mxu0 %v2048
    %3148 = vmatpush.msra.mxu0 %v2040
    %3149 = vmatmul.f32.gmra.mxu0 %v1904
    %v3150 = vpop.f32.mrf.mxu0
    %v3151 = vadd.f32 %v3131, %v3150
    %3152 = vdwg.mxu0
    %3153 = vmatpush.msra.mxu0 %v2288
    %3154 = vmatpush.msra.mxu0 %v2280
    %3155 = vmatpush.msra.mxu0 %v2272
    %3156 = vmatpush.msra.mxu0 %v2264
    %3157 = vmatpush.msra.mxu0 %v2256
    %3158 = vmatpush.msra.mxu0 %v2248
    %3159 = vmatpush.msra.mxu0 %v2240
    %3160 = vmatpush.msra.mxu0 %v2232
    %3161 = vmatpush.msra.mxu0 %v2224
    %3162 = vmatpush.msra.mxu0 %v2216
    %3163 = vmatpush.msra.mxu0 %v2208
    %3164 = vmatpush.msra.mxu0 %v2200
    %3165 = vmatpush.msra.mxu0 %v2192
    %3166 = vmatpush.msra.mxu0 %v2184
    %3167 = vmatpush.msra.mxu0 %v2176
    %3168 = vmatpush.msra.mxu0 %v2168
    %3169 = vmatmul.f32.gmra.mxu0 %v1905
    %v3170 = vpop.f32.mrf.mxu0
    %v3171 = vadd.f32 %v3151, %v3170
    %3172 = vdwg.mxu0
    %3173 = vmatpush.msra.mxu0 %v2416
    %3174 = vmatpush.msra.mxu0 %v2408
    %3175 = vmatpush.msra.mxu0 %v2400
    %3176 = vmatpush.msra.mxu0 %v2392
    %3177 = vmatpush.msra.mxu0 %v2384
    %3178 = vmatpush.msra.mxu0 %v2376
    %3179 = vmatpush.msra.mxu0 %v2368
    %3180 = vmatpush.msra.mxu0 %v2360
    %3181 = vmatpush.msra.mxu0 %v2352
    %3182 = vmatpush.msra.mxu0 %v2344
    %3183 = vmatpush.msra.mxu0 %v2336
    %3184 = vmatpush.msra.mxu0 %v2328
    %3185 = vmatpush.msra.mxu0 %v2320
    %3186 = vmatpush.msra.mxu0 %v2312
    %3187 = vmatpush.msra.mxu0 %v2304
    %3188 = vmatpush.msra.mxu0 %v2296
    %3189 = vmatmul.f32.gmra.mxu0 %v1906
    %v3190 = vpop.f32.mrf.mxu0
    %v3191 = vadd.f32 %v3171, %v3190
    %3192 = vdwg.mxu0
    %3193 = vmatpush.msra.mxu0 %v2544
    %3194 = vmatpush.msra.mxu0 %v2536
    %3195 = vmatpush.msra.mxu0 %v2528
    %3196 = vmatpush.msra.mxu0 %v2520
    %3197 = vmatpush.msra.mxu0 %v2512
    %3198 = vmatpush.msra.mxu0 %v2504
    %3199 = vmatpush.msra.mxu0 %v2496
    %3200 = vmatpush.msra.mxu0 %v2488
    %3201 = vmatpush.msra.mxu0 %v2480
    %3202 = vmatpush.msra.mxu0 %v2472
    %3203 = vmatpush.msra.mxu0 %v2464
    %3204 = vmatpush.msra.mxu0 %v2456
    %3205 = vmatpush.msra.mxu0 %v2448
    %3206 = vmatpush.msra.mxu0 %v2440
    %3207 = vmatpush.msra.mxu0 %v2432
    %3208 = vmatpush.msra.mxu0 %v2424
    %3209 = vmatmul.f32.gmra.mxu0 %v1907
    %v3210 = vpop.f32.mrf.mxu0
    %v3211 = vadd.f32 %v3191, %v3210
    %3212 = vdwg.mxu0
    %3213 = vmatpush.msra.mxu0 %v2672
    %3214 = vmatpush.msra.mxu0 %v2664
    %3215 = vmatpush.msra.mxu0 %v2656
    %3216 = vmatpush.msra.mxu0 %v2648
    %3217 = vmatpush.msra.mxu0 %v2640
    %3218 = vmatpush.msra.mxu0 %v2632
    %3219 = vmatpush.msra.mxu0 %v2624
    %3220 = vmatpush.msra.mxu0 %v2616
    %3221 = vmatpush.msra.mxu0 %v2608
    %3222 = vmatpush.msra.mxu0 %v2600
    %3223 = vmatpush.msra.mxu0 %v2592
    %3224 = vmatpush.msra.mxu0 %v2584
    %3225 = vmatpush.msra.mxu0 %v2576
    %3226 = vmatpush.msra.mxu0 %v2568
    %3227 = vmatpush.msra.mxu0 %v2560
    %3228 = vmatpush.msra.mxu0 %v2552
    %3229 = vmatmul.f32.gmra.mxu0 %v1908
    %v3230 = vpop.f32.mrf.mxu0
    %v3231 = vadd.f32 %v3211, %v3230
    %3232 = vdwg.mxu0
    %3233 = vmatpush.msra.mxu0 %v2800
    %3234 = vmatpush.msra.mxu0 %v2792
    %3235 = vmatpush.msra.mxu0 %v2784
    %3236 = vmatpush.msra.mxu0 %v2776
    %3237 = vmatpush.msra.mxu0 %v2768
    %3238 = vmatpush.msra.mxu0 %v2760
    %3239 = vmatpush.msra.mxu0 %v2752
    %3240 = vmatpush.msra.mxu0 %v2744
    %3241 = vmatpush.msra.mxu0 %v2736
    %3242 = vmatpush.msra.mxu0 %v2728
    %3243 = vmatpush.msra.mxu0 %v2720
    %3244 = vmatpush.msra.mxu0 %v2712
    %3245 = vmatpush.msra.mxu0 %v2704
    %3246 = vmatpush.msra.mxu0 %v2696
    %3247 = vmatpush.msra.mxu0 %v2688
    %3248 = vmatpush.msra.mxu0 %v2680
    %3249 = vmatmul.f32.gmra.mxu0 %v1909
    %v3250 = vpop.f32.mrf.mxu0
    %v3251 = vadd.f32 %v3231, %v3250
    %3252 = vdwg.mxu0
    %3253 = vmatpush.msra.mxu0 %v2928
    %3254 = vmatpush.msra.mxu0 %v2920
    %3255 = vmatpush.msra.mxu0 %v2912
    %3256 = vmatpush.msra.mxu0 %v2904
    %3257 = vmatpush.msra.mxu0 %v2896
    %3258 = vmatpush.msra.mxu0 %v2888
    %3259 = vmatpush.msra.mxu0 %v2880
    %3260 = vmatpush.msra.mxu0 %v2872
    %3261 = vmatpush.msra.mxu0 %v2864
    %3262 = vmatpush.msra.mxu0 %v2856
    %3263 = vmatpush.msra.mxu0 %v2848
    %3264 = vmatpush.msra.mxu0 %v2840
    %3265 = vmatpush.msra.mxu0 %v2832
    %3266 = vmatpush.msra.mxu0 %v2824
    %3267 = vmatpush.msra.mxu0 %v2816
    %3268 = vmatpush.msra.mxu0 %v2808
    %3269 = vmatmul.f32.gmra.mxu0 %v1910
    %v3270 = vpop.f32.mrf.mxu0
    %v3271 = vadd.f32 %v3251, %v3270
    %3272 = vdwg.mxu0
    %3273 = vmatpush.msra.mxu0 %v2033
    %3274 = vmatpush.msra.mxu0 %v2025
    %3275 = vmatpush.msra.mxu0 %v2017
    %3276 = vmatpush.msra.mxu0 %v2009
    %3277 = vmatpush.msra.mxu0 %v2001
    %3278 = vmatpush.msra.mxu0 %v1993
    %3279 = vmatpush.msra.mxu0 %v1985
    %3280 = vmatpush.msra.mxu0 %v1977
    %3281 = vmatpush.msra.mxu0 %v1969
    %3282 = vmatpush.msra.mxu0 %v1961
    %3283 = vmatpush.msra.mxu0 %v1953
    %3284 = vmatpush.msra.mxu0 %v1945
    %3285 = vmatpush.msra.mxu0 %v1937
    %3286 = vmatpush.msra.mxu0 %v1929
    %3287 = vmatpush.msra.mxu0 %v1921
    %3288 = vmatpush.msra.mxu0 %v1913
    %3289 = vmatmul.f32.gmra.mxu0 %v1903
    %v3290 = vpop.f32.mrf.mxu0
    %v3291 = vadd.f32 %v2939, %v3290
    %3292 = vdwg.mxu0
    %3293 = vmatpush.msra.mxu0 %v2161
    %3294 = vmatpush.msra.mxu0 %v2153
    %3295 = vmatpush.msra.mxu0 %v2145
    %3296 = vmatpush.msra.mxu0 %v2137
    %3297 = vmatpush.msra.mxu0 %v2129
    %3298 = vmatpush.msra.mxu0 %v2121
    %3299 = vmatpush.msra.mxu0 %v2113
    %3300 = vmatpush.msra.mxu0 %v2105
    %3301 = vmatpush.msra.mxu0 %v2097
    %3302 = vmatpush.msra.mxu0 %v2089
    %3303 = vmatpush.msra.mxu0 %v2081
    %3304 = vmatpush.msra.mxu0 %v2073
    %3305 = vmatpush.msra.mxu0 %v2065
    %3306 = vmatpush.msra.mxu0 %v2057
    %3307 = vmatpush.msra.mxu0 %v2049
    %3308 = vmatpush.msra.mxu0 %v2041
    %3309 = vmatmul.f32.gmra.mxu0 %v1904
    %v3310 = vpop.f32.mrf.mxu0
    %v3311 = vadd.f32 %v3291, %v3310
    %3312 = vdwg.mxu0
    %3313 = vmatpush.msra.mxu0 %v2289
    %3314 = vmatpush.msra.mxu0 %v2281
    %3315 = vmatpush.msra.mxu0 %v2273
    %3316 = vmatpush.msra.mxu0 %v2265
    %3317 = vmatpush.msra.mxu0 %v2257
    %3318 = vmatpush.msra.mxu0 %v2249
    %3319 = vmatpush.msra.mxu0 %v2241
    %3320 = vmatpush.msra.mxu0 %v2233
    %3321 = vmatpush.msra.mxu0 %v2225
    %3322 = vmatpush.msra.mxu0 %v2217
    %3323 = vmatpush.msra.mxu0 %v2209
    %3324 = vmatpush.msra.mxu0 %v2201
    %3325 = vmatpush.msra.mxu0 %v2193
    %3326 = vmatpush.msra.mxu0 %v2185
    %3327 = vmatpush.msra.mxu0 %v2177
    %3328 = vmatpush.msra.mxu0 %v2169
    %3329 = vmatmul.f32.gmra.mxu0 %v1905
    %v3330 = vpop.f32.mrf.mxu0
    %v3331 = vadd.f32 %v3311, %v3330
    %3332 = vdwg.mxu0
    %3333 = vmatpush.msra.mxu0 %v2417
    %3334 = vmatpush.msra.mxu0 %v2409
    %3335 = vmatpush.msra.mxu0 %v2401
    %3336 = vmatpush.msra.mxu0 %v2393
    %3337 = vmatpush.msra.mxu0 %v2385
    %3338 = vmatpush.msra.mxu0 %v2377
    %3339 = vmatpush.msra.mxu0 %v2369
    %3340 = vmatpush.msra.mxu0 %v2361
    %3341 = vmatpush.msra.mxu0 %v2353
    %3342 = vmatpush.msra.mxu0 %v2345
    %3343 = vmatpush.msra.mxu0 %v2337
    %3344 = vmatpush.msra.mxu0 %v2329
    %3345 = vmatpush.msra.mxu0 %v2321
    %3346 = vmatpush.msra.mxu0 %v2313
    %3347 = vmatpush.msra.mxu0 %v2305
    %3348 = vmatpush.msra.mxu0 %v2297
    %3349 = vmatmul.f32.gmra.mxu0 %v1906
    %v3350 = vpop.f32.mrf.mxu0
    %v3351 = vadd.f32 %v3331, %v3350
    %3352 = vdwg.mxu0
    %3353 = vmatpush.msra.mxu0 %v2545
    %3354 = vmatpush.msra.mxu0 %v2537
    %3355 = vmatpush.msra.mxu0 %v2529
    %3356 = vmatpush.msra.mxu0 %v2521
    %3357 = vmatpush.msra.mxu0 %v2513
    %3358 = vmatpush.msra.mxu0 %v2505
    %3359 = vmatpush.msra.mxu0 %v2497
    %3360 = vmatpush.msra.mxu0 %v2489
    %3361 = vmatpush.msra.mxu0 %v2481
    %3362 = vmatpush.msra.mxu0 %v2473
    %3363 = vmatpush.msra.mxu0 %v2465
    %3364 = vmatpush.msra.mxu0 %v2457
    %3365 = vmatpush.msra.mxu0 %v2449
    %3366 = vmatpush.msra.mxu0 %v2441
    %3367 = vmatpush.msra.mxu0 %v2433
    %3368 = vmatpush.msra.mxu0 %v2425
    %3369 = vmatmul.f32.gmra.mxu0 %v1907
    %v3370 = vpop.f32.mrf.mxu0
    %v3371 = vadd.f32 %v3351, %v3370
    %3372 = vdwg.mxu0
    %3373 = vmatpush.msra.mxu0 %v2673
    %3374 = vmatpush.msra.mxu0 %v2665
    %3375 = vmatpush.msra.mxu0 %v2657
    %3376 = vmatpush.msra.mxu0 %v2649
    %3377 = vmatpush.msra.mxu0 %v2641
    %3378 = vmatpush.msra.mxu0 %v2633
    %3379 = vmatpush.msra.mxu0 %v2625
    %3380 = vmatpush.msra.mxu0 %v2617
    %3381 = vmatpush.msra.mxu0 %v2609
    %3382 = vmatpush.msra.mxu0 %v2601
    %3383 = vmatpush.msra.mxu0 %v2593
    %3384 = vmatpush.msra.mxu0 %v2585
    %3385 = vmatpush.msra.mxu0 %v2577
    %3386 = vmatpush.msra.mxu0 %v2569
    %3387 = vmatpush.msra.mxu0 %v2561
    %3388 = vmatpush.msra.mxu0 %v2553
    %3389 = vmatmul.f32.gmra.mxu0 %v1908
    %v3390 = vpop.f32.mrf.mxu0
    %v3391 = vadd.f32 %v3371, %v3390
    %3392 = vdwg.mxu0
    %3393 = vmatpush.msra.mxu0 %v2801
    %3394 = vmatpush.msra.mxu0 %v2793
    %3395 = vmatpush.msra.mxu0 %v2785
    %3396 = vmatpush.msra.mxu0 %v2777
    %3397 = vmatpush.msra.mxu0 %v2769
    %3398 = vmatpush.msra.mxu0 %v2761
    %3399 = vmatpush.msra.mxu0 %v2753
    %3400 = vmatpush.msra.mxu0 %v2745
    %3401 = vmatpush.msra.mxu0 %v2737
    %3402 = vmatpush.msra.mxu0 %v2729
    %3403 = vmatpush.msra.mxu0 %v2721
    %3404 = vmatpush.msra.mxu0 %v2713
    %3405 = vmatpush.msra.mxu0 %v2705
    %3406 = vmatpush.msra.mxu0 %v2697
    %3407 = vmatpush.msra.mxu0 %v2689
    %3408 = vmatpush.msra.mxu0 %v2681
    %3409 = vmatmul.f32.gmra.mxu0 %v1909
    %v3410 = vpop.f32.mrf.mxu0
    %v3411 = vadd.f32 %v3391, %v3410
    %3412 = vdwg.mxu0
    %3413 = vmatpush.msra.mxu0 %v2929
    %3414 = vmatpush.msra.mxu0 %v2921
    %3415 = vmatpush.msra.mxu0 %v2913
    %3416 = vmatpush.msra.mxu0 %v2905
    %3417 = vmatpush.msra.mxu0 %v2897
    %3418 = vmatpush.msra.mxu0 %v2889
    %3419 = vmatpush.msra.mxu0 %v2881
    %3420 = vmatpush.msra.mxu0 %v2873
    %3421 = vmatpush.msra.mxu0 %v2865
    %3422 = vmatpush.msra.mxu0 %v2857
    %3423 = vmatpush.msra.mxu0 %v2849
    %3424 = vmatpush.msra.mxu0 %v2841
    %3425 = vmatpush.msra.mxu0 %v2833
    %3426 = vmatpush.msra.mxu0 %v2825
    %3427 = vmatpush.msra.mxu0 %v2817
    %3428 = vmatpush.msra.mxu0 %v2809
    %3429 = vmatmul.f32.gmra.mxu0 %v1910
    %v3430 = vpop.f32.mrf.mxu0
    %v3431 = vadd.f32 %v3411, %v3430
    %3432 = vdwg.mxu0
    %3433 = vmatpush.msra.mxu0 %v2034
    %3434 = vmatpush.msra.mxu0 %v2026
    %3435 = vmatpush.msra.mxu0 %v2018
    %3436 = vmatpush.msra.mxu0 %v2010
    %3437 = vmatpush.msra.mxu0 %v2002
    %3438 = vmatpush.msra.mxu0 %v1994
    %3439 = vmatpush.msra.mxu0 %v1986
    %3440 = vmatpush.msra.mxu0 %v1978
    %3441 = vmatpush.msra.mxu0 %v1970
    %3442 = vmatpush.msra.mxu0 %v1962
    %3443 = vmatpush.msra.mxu0 %v1954
    %3444 = vmatpush.msra.mxu0 %v1946
    %3445 = vmatpush.msra.mxu0 %v1938
    %3446 = vmatpush.msra.mxu0 %v1930
    %3447 = vmatpush.msra.mxu0 %v1922
    %3448 = vmatpush.msra.mxu0 %v1914
    %3449 = vmatmul.f32.gmra.mxu0 %v1903
    %v3450 = vpop.f32.mrf.mxu0
    %v3451 = vadd.f32 %v2940, %v3450
    %3452 = vdwg.mxu0
    %3453 = vmatpush.msra.mxu0 %v2162
    %3454 = vmatpush.msra.mxu0 %v2154
    %3455 = vmatpush.msra.mxu0 %v2146
    %3456 = vmatpush.msra.mxu0 %v2138
    %3457 = vmatpush.msra.mxu0 %v2130
    %3458 = vmatpush.msra.mxu0 %v2122
    %3459 = vmatpush.msra.mxu0 %v2114
    %3460 = vmatpush.msra.mxu0 %v2106
    %3461 = vmatpush.msra.mxu0 %v2098
    %3462 = vmatpush.msra.mxu0 %v2090
    %3463 = vmatpush.msra.mxu0 %v2082
    %3464 = vmatpush.msra.mxu0 %v2074
    %3465 = vmatpush.msra.mxu0 %v2066
    %3466 = vmatpush.msra.mxu0 %v2058
    %3467 = vmatpush.msra.mxu0 %v2050
    %3468 = vmatpush.msra.mxu0 %v2042
    %3469 = vmatmul.f32.gmra.mxu0 %v1904
    %v3470 = vpop.f32.mrf.mxu0
    %v3471 = vadd.f32 %v3451, %v3470
    %3472 = vdwg.mxu0
    %3473 = vmatpush.msra.mxu0 %v2290
    %3474 = vmatpush.msra.mxu0 %v2282
    %3475 = vmatpush.msra.mxu0 %v2274
    %3476 = vmatpush.msra.mxu0 %v2266
    %3477 = vmatpush.msra.mxu0 %v2258
    %3478 = vmatpush.msra.mxu0 %v2250
    %3479 = vmatpush.msra.mxu0 %v2242
    %3480 = vmatpush.msra.mxu0 %v2234
    %3481 = vmatpush.msra.mxu0 %v2226
    %3482 = vmatpush.msra.mxu0 %v2218
    %3483 = vmatpush.msra.mxu0 %v2210
    %3484 = vmatpush.msra.mxu0 %v2202
    %3485 = vmatpush.msra.mxu0 %v2194
    %3486 = vmatpush.msra.mxu0 %v2186
    %3487 = vmatpush.msra.mxu0 %v2178
    %3488 = vmatpush.msra.mxu0 %v2170
    %3489 = vmatmul.f32.gmra.mxu0 %v1905
    %v3490 = vpop.f32.mrf.mxu0
    %v3491 = vadd.f32 %v3471, %v3490
    %3492 = vdwg.mxu0
    %3493 = vmatpush.msra.mxu0 %v2418
    %3494 = vmatpush.msra.mxu0 %v2410
    %3495 = vmatpush.msra.mxu0 %v2402
    %3496 = vmatpush.msra.mxu0 %v2394
    %3497 = vmatpush.msra.mxu0 %v2386
    %3498 = vmatpush.msra.mxu0 %v2378
    %3499 = vmatpush.msra.mxu0 %v2370
    %3500 = vmatpush.msra.mxu0 %v2362
    %3501 = vmatpush.msra.mxu0 %v2354
    %3502 = vmatpush.msra.mxu0 %v2346
    %3503 = vmatpush.msra.mxu0 %v2338
    %3504 = vmatpush.msra.mxu0 %v2330
    %3505 = vmatpush.msra.mxu0 %v2322
    %3506 = vmatpush.msra.mxu0 %v2314
    %3507 = vmatpush.msra.mxu0 %v2306
    %3508 = vmatpush.msra.mxu0 %v2298
    %3509 = vmatmul.f32.gmra.mxu0 %v1906
    %v3510 = vpop.f32.mrf.mxu0
    %v3511 = vadd.f32 %v3491, %v3510
    %3512 = vdwg.mxu0
    %3513 = vmatpush.msra.mxu0 %v2546
    %3514 = vmatpush.msra.mxu0 %v2538
    %3515 = vmatpush.msra.mxu0 %v2530
    %3516 = vmatpush.msra.mxu0 %v2522
    %3517 = vmatpush.msra.mxu0 %v2514
    %3518 = vmatpush.msra.mxu0 %v2506
    %3519 = vmatpush.msra.mxu0 %v2498
    %3520 = vmatpush.msra.mxu0 %v2490
    %3521 = vmatpush.msra.mxu0 %v2482
    %3522 = vmatpush.msra.mxu0 %v2474
    %3523 = vmatpush.msra.mxu0 %v2466
    %3524 = vmatpush.msra.mxu0 %v2458
    %3525 = vmatpush.msra.mxu0 %v2450
    %3526 = vmatpush.msra.mxu0 %v2442
    %3527 = vmatpush.msra.mxu0 %v2434
    %3528 = vmatpush.msra.mxu0 %v2426
    %3529 = vmatmul.f32.gmra.mxu0 %v1907
    %v3530 = vpop.f32.mrf.mxu0
    %v3531 = vadd.f32 %v3511, %v3530
    %3532 = vdwg.mxu0
    %3533 = vmatpush.msra.mxu0 %v2674
    %3534 = vmatpush.msra.mxu0 %v2666
    %3535 = vmatpush.msra.mxu0 %v2658
    %3536 = vmatpush.msra.mxu0 %v2650
    %3537 = vmatpush.msra.mxu0 %v2642
    %3538 = vmatpush.msra.mxu0 %v2634
    %3539 = vmatpush.msra.mxu0 %v2626
    %3540 = vmatpush.msra.mxu0 %v2618
    %3541 = vmatpush.msra.mxu0 %v2610
    %3542 = vmatpush.msra.mxu0 %v2602
    %3543 = vmatpush.msra.mxu0 %v2594
    %3544 = vmatpush.msra.mxu0 %v2586
    %3545 = vmatpush.msra.mxu0 %v2578
    %3546 = vmatpush.msra.mxu0 %v2570
    %3547 = vmatpush.msra.mxu0 %v2562
    %3548 = vmatpush.msra.mxu0 %v2554
    %3549 = vmatmul.f32.gmra.mxu0 %v1908
    %v3550 = vpop.f32.mrf.mxu0
    %v3551 = vadd.f32 %v3531, %v3550
    %3552 = vdwg.mxu0
    %3553 = vmatpush.msra.mxu0 %v2802
    %3554 = vmatpush.msra.mxu0 %v2794
    %3555 = vmatpush.msra.mxu0 %v2786
    %3556 = vmatpush.msra.mxu0 %v2778
    %3557 = vmatpush.msra.mxu0 %v2770
    %3558 = vmatpush.msra.mxu0 %v2762
    %3559 = vmatpush.msra.mxu0 %v2754
    %3560 = vmatpush.msra.mxu0 %v2746
    %3561 = vmatpush.msra.mxu0 %v2738
    %3562 = vmatpush.msra.mxu0 %v2730
    %3563 = vmatpush.msra.mxu0 %v2722
    %3564 = vmatpush.msra.mxu0 %v2714
    %3565 = vmatpush.msra.mxu0 %v2706
    %3566 = vmatpush.msra.mxu0 %v2698
    %3567 = vmatpush.msra.mxu0 %v2690
    %3568 = vmatpush.msra.mxu0 %v2682
    %3569 = vmatmul.f32.gmra.mxu0 %v1909
    %v3570 = vpop.f32.mrf.mxu0
    %v3571 = vadd.f32 %v3551, %v3570
    %3572 = vdwg.mxu0
    %3573 = vmatpush.msra.mxu0 %v2930
    %3574 = vmatpush.msra.mxu0 %v2922
    %3575 = vmatpush.msra.mxu0 %v2914
    %3576 = vmatpush.msra.mxu0 %v2906
    %3577 = vmatpush.msra.mxu0 %v2898
    %3578 = vmatpush.msra.mxu0 %v2890
    %3579 = vmatpush.msra.mxu0 %v2882
    %3580 = vmatpush.msra.mxu0 %v2874
    %3581 = vmatpush.msra.mxu0 %v2866
    %3582 = vmatpush.msra.mxu0 %v2858
    %3583 = vmatpush.msra.mxu0 %v2850
    %3584 = vmatpush.msra.mxu0 %v2842
    %3585 = vmatpush.msra.mxu0 %v2834
    %3586 = vmatpush.msra.mxu0 %v2826
    %3587 = vmatpush.msra.mxu0 %v2818
    %3588 = vmatpush.msra.mxu0 %v2810
    %3589 = vmatmul.f32.gmra.mxu0 %v1910
    %v3590 = vpop.f32.mrf.mxu0
    %v3591 = vadd.f32 %v3571, %v3590
    %3592 = vdwg.mxu0
    %3593 = vmatpush.msra.mxu0 %v2035
    %3594 = vmatpush.msra.mxu0 %v2027
    %3595 = vmatpush.msra.mxu0 %v2019
    %3596 = vmatpush.msra.mxu0 %v2011
    %3597 = vmatpush.msra.mxu0 %v2003
    %3598 = vmatpush.msra.mxu0 %v1995
    %3599 = vmatpush.msra.mxu0 %v1987
    %3600 = vmatpush.msra.mxu0 %v1979
    %3601 = vmatpush.msra.mxu0 %v1971
    %3602 = vmatpush.msra.mxu0 %v1963
    %3603 = vmatpush.msra.mxu0 %v1955
    %3604 = vmatpush.msra.mxu0 %v1947
    %3605 = vmatpush.msra.mxu0 %v1939
    %3606 = vmatpush.msra.mxu0 %v1931
    %3607 = vmatpush.msra.mxu0 %v1923
    %3608 = vmatpush.msra.mxu0 %v1915
    %3609 = vmatmul.f32.gmra.mxu0 %v1903
    %v3610 = vpop.f32.mrf.mxu0
    %v3611 = vadd.f32 %v2941, %v3610
    %3612 = vdwg.mxu0
    %3613 = vmatpush.msra.mxu0 %v2163
    %3614 = vmatpush.msra.mxu0 %v2155
    %3615 = vmatpush.msra.mxu0 %v2147
    %3616 = vmatpush.msra.mxu0 %v2139
    %3617 = vmatpush.msra.mxu0 %v2131
    %3618 = vmatpush.msra.mxu0 %v2123
    %3619 = vmatpush.msra.mxu0 %v2115
    %3620 = vmatpush.msra.mxu0 %v2107
    %3621 = vmatpush.msra.mxu0 %v2099
    %3622 = vmatpush.msra.mxu0 %v2091
    %3623 = vmatpush.msra.mxu0 %v2083
    %3624 = vmatpush.msra.mxu0 %v2075
    %3625 = vmatpush.msra.mxu0 %v2067
    %3626 = vmatpush.msra.mxu0 %v2059
    %3627 = vmatpush.msra.mxu0 %v2051
    %3628 = vmatpush.msra.mxu0 %v2043
    %3629 = vmatmul.f32.gmra.mxu0 %v1904
    %v3630 = vpop.f32.mrf.mxu0
    %v3631 = vadd.f32 %v3611, %v3630
    %3632 = vdwg.mxu0
    %3633 = vmatpush.msra.mxu0 %v2291
    %3634 = vmatpush.msra.mxu0 %v2283
    %3635 = vmatpush.msra.mxu0 %v2275
    %3636 = vmatpush.msra.mxu0 %v2267
    %3637 = vmatpush.msra.mxu0 %v2259
    %3638 = vmatpush.msra.mxu0 %v2251
    %3639 = vmatpush.msra.mxu0 %v2243
    %3640 = vmatpush.msra.mxu0 %v2235
    %3641 = vmatpush.msra.mxu0 %v2227
    %3642 = vmatpush.msra.mxu0 %v2219
    %3643 = vmatpush.msra.mxu0 %v2211
    %3644 = vmatpush.msra.mxu0 %v2203
    %3645 = vmatpush.msra.mxu0 %v2195
    %3646 = vmatpush.msra.mxu0 %v2187
    %3647 = vmatpush.msra.mxu0 %v2179
    %3648 = vmatpush.msra.mxu0 %v2171
    %3649 = vmatmul.f32.gmra.mxu0 %v1905
    %v3650 = vpop.f32.mrf.mxu0
    %v3651 = vadd.f32 %v3631, %v3650
    %3652 = vdwg.mxu0
    %3653 = vmatpush.msra.mxu0 %v2419
    %3654 = vmatpush.msra.mxu0 %v2411
    %3655 = vmatpush.msra.mxu0 %v2403
    %3656 = vmatpush.msra.mxu0 %v2395
    %3657 = vmatpush.msra.mxu0 %v2387
    %3658 = vmatpush.msra.mxu0 %v2379
    %3659 = vmatpush.msra.mxu0 %v2371
    %3660 = vmatpush.msra.mxu0 %v2363
    %3661 = vmatpush.msra.mxu0 %v2355
    %3662 = vmatpush.msra.mxu0 %v2347
    %3663 = vmatpush.msra.mxu0 %v2339
    %3664 = vmatpush.msra.mxu0 %v2331
    %3665 = vmatpush.msra.mxu0 %v2323
    %3666 = vmatpush.msra.mxu0 %v2315
    %3667 = vmatpush.msra.mxu0 %v2307
    %3668 = vmatpush.msra.mxu0 %v2299
    %3669 = vmatmul.f32.gmra.mxu0 %v1906
    %v3670 = vpop.f32.mrf.mxu0
    %v3671 = vadd.f32 %v3651, %v3670
    %3672 = vdwg.mxu0
    %3673 = vmatpush.msra.mxu0 %v2547
    %3674 = vmatpush.msra.mxu0 %v2539
    %3675 = vmatpush.msra.mxu0 %v2531
    %3676 = vmatpush.msra.mxu0 %v2523
    %3677 = vmatpush.msra.mxu0 %v2515
    %3678 = vmatpush.msra.mxu0 %v2507
    %3679 = vmatpush.msra.mxu0 %v2499
    %3680 = vmatpush.msra.mxu0 %v2491
    %3681 = vmatpush.msra.mxu0 %v2483
    %3682 = vmatpush.msra.mxu0 %v2475
    %3683 = vmatpush.msra.mxu0 %v2467
    %3684 = vmatpush.msra.mxu0 %v2459
    %3685 = vmatpush.msra.mxu0 %v2451
    %3686 = vmatpush.msra.mxu0 %v2443
    %3687 = vmatpush.msra.mxu0 %v2435
    %3688 = vmatpush.msra.mxu0 %v2427
    %3689 = vmatmul.f32.gmra.mxu0 %v1907
    %v3690 = vpop.f32.mrf.mxu0
    %v3691 = vadd.f32 %v3671, %v3690
    %3692 = vdwg.mxu0
    %3693 = vmatpush.msra.mxu0 %v2675
    %3694 = vmatpush.msra.mxu0 %v2667
    %3695 = vmatpush.msra.mxu0 %v2659
    %3696 = vmatpush.msra.mxu0 %v2651
    %3697 = vmatpush.msra.mxu0 %v2643
    %3698 = vmatpush.msra.mxu0 %v2635
    %3699 = vmatpush.msra.mxu0 %v2627
    %3700 = vmatpush.msra.mxu0 %v2619
    %3701 = vmatpush.msra.mxu0 %v2611
    %3702 = vmatpush.msra.mxu0 %v2603
    %3703 = vmatpush.msra.mxu0 %v2595
    %3704 = vmatpush.msra.mxu0 %v2587
    %3705 = vmatpush.msra.mxu0 %v2579
    %3706 = vmatpush.msra.mxu0 %v2571
    %3707 = vmatpush.msra.mxu0 %v2563
    %3708 = vmatpush.msra.mxu0 %v2555
    %3709 = vmatmul.f32.gmra.mxu0 %v1908
    %v3710 = vpop.f32.mrf.mxu0
    %v3711 = vadd.f32 %v3691, %v3710
    %3712 = vdwg.mxu0
    %3713 = vmatpush.msra.mxu0 %v2803
    %3714 = vmatpush.msra.mxu0 %v2795
    %3715 = vmatpush.msra.mxu0 %v2787
    %3716 = vmatpush.msra.mxu0 %v2779
    %3717 = vmatpush.msra.mxu0 %v2771
    %3718 = vmatpush.msra.mxu0 %v2763
    %3719 = vmatpush.msra.mxu0 %v2755
    %3720 = vmatpush.msra.mxu0 %v2747
    %3721 = vmatpush.msra.mxu0 %v2739
    %3722 = vmatpush.msra.mxu0 %v2731
    %3723 = vmatpush.msra.mxu0 %v2723
    %3724 = vmatpush.msra.mxu0 %v2715
    %3725 = vmatpush.msra.mxu0 %v2707
    %3726 = vmatpush.msra.mxu0 %v2699
    %3727 = vmatpush.msra.mxu0 %v2691
    %3728 = vmatpush.msra.mxu0 %v2683
    %3729 = vmatmul.f32.gmra.mxu0 %v1909
    %v3730 = vpop.f32.mrf.mxu0
    %v3731 = vadd.f32 %v3711, %v3730
    %3732 = vdwg.mxu0
    %3733 = vmatpush.msra.mxu0 %v2931
    %3734 = vmatpush.msra.mxu0 %v2923
    %3735 = vmatpush.msra.mxu0 %v2915
    %3736 = vmatpush.msra.mxu0 %v2907
    %3737 = vmatpush.msra.mxu0 %v2899
    %3738 = vmatpush.msra.mxu0 %v2891
    %3739 = vmatpush.msra.mxu0 %v2883
    %3740 = vmatpush.msra.mxu0 %v2875
    %3741 = vmatpush.msra.mxu0 %v2867
    %3742 = vmatpush.msra.mxu0 %v2859
    %3743 = vmatpush.msra.mxu0 %v2851
    %3744 = vmatpush.msra.mxu0 %v2843
    %3745 = vmatpush.msra.mxu0 %v2835
    %3746 = vmatpush.msra.mxu0 %v2827
    %3747 = vmatpush.msra.mxu0 %v2819
    %3748 = vmatpush.msra.mxu0 %v2811
    %3749 = vmatmul.f32.gmra.mxu0 %v1910
    %v3750 = vpop.f32.mrf.mxu0
    %v3751 = vadd.f32 %v3731, %v3750
    %3752 = vdwg.mxu0
    %3753 = vmatpush.msra.mxu0 %v2036
    %3754 = vmatpush.msra.mxu0 %v2028
    %3755 = vmatpush.msra.mxu0 %v2020
    %3756 = vmatpush.msra.mxu0 %v2012
    %3757 = vmatpush.msra.mxu0 %v2004
    %3758 = vmatpush.msra.mxu0 %v1996
    %3759 = vmatpush.msra.mxu0 %v1988
    %3760 = vmatpush.msra.mxu0 %v1980
    %3761 = vmatpush.msra.mxu0 %v1972
    %3762 = vmatpush.msra.mxu0 %v1964
    %3763 = vmatpush.msra.mxu0 %v1956
    %3764 = vmatpush.msra.mxu0 %v1948
    %3765 = vmatpush.msra.mxu0 %v1940
    %3766 = vmatpush.msra.mxu0 %v1932
    %3767 = vmatpush.msra.mxu0 %v1924
    %3768 = vmatpush.msra.mxu0 %v1916
    %3769 = vmatmul.f32.gmra.mxu0 %v1903
    %v3770 = vpop.f32.mrf.mxu0
    %v3771 = vadd.f32 %v2942, %v3770
    %3772 = vdwg.mxu0
    %3773 = vmatpush.msra.mxu0 %v2164
    %3774 = vmatpush.msra.mxu0 %v2156
    %3775 = vmatpush.msra.mxu0 %v2148
    %3776 = vmatpush.msra.mxu0 %v2140
    %3777 = vmatpush.msra.mxu0 %v2132
    %3778 = vmatpush.msra.mxu0 %v2124
    %3779 = vmatpush.msra.mxu0 %v2116
    %3780 = vmatpush.msra.mxu0 %v2108
    %3781 = vmatpush.msra.mxu0 %v2100
    %3782 = vmatpush.msra.mxu0 %v2092
    %3783 = vmatpush.msra.mxu0 %v2084
    %3784 = vmatpush.msra.mxu0 %v2076
    %3785 = vmatpush.msra.mxu0 %v2068
    %3786 = vmatpush.msra.mxu0 %v2060
    %3787 = vmatpush.msra.mxu0 %v2052
    %3788 = vmatpush.msra.mxu0 %v2044
    %3789 = vmatmul.f32.gmra.mxu0 %v1904
    %v3790 = vpop.f32.mrf.mxu0
    %v3791 = vadd.f32 %v3771, %v3790
    %3792 = vdwg.mxu0
    %3793 = vmatpush.msra.mxu0 %v2292
    %3794 = vmatpush.msra.mxu0 %v2284
    %3795 = vmatpush.msra.mxu0 %v2276
    %3796 = vmatpush.msra.mxu0 %v2268
    %3797 = vmatpush.msra.mxu0 %v2260
    %3798 = vmatpush.msra.mxu0 %v2252
    %3799 = vmatpush.msra.mxu0 %v2244
    %3800 = vmatpush.msra.mxu0 %v2236
    %3801 = vmatpush.msra.mxu0 %v2228
    %3802 = vmatpush.msra.mxu0 %v2220
    %3803 = vmatpush.msra.mxu0 %v2212
    %3804 = vmatpush.msra.mxu0 %v2204
    %3805 = vmatpush.msra.mxu0 %v2196
    %3806 = vmatpush.msra.mxu0 %v2188
    %3807 = vmatpush.msra.mxu0 %v2180
    %3808 = vmatpush.msra.mxu0 %v2172
    %3809 = vmatmul.f32.gmra.mxu0 %v1905
    %v3810 = vpop.f32.mrf.mxu0
    %v3811 = vadd.f32 %v3791, %v3810
    %3812 = vdwg.mxu0
    %3813 = vmatpush.msra.mxu0 %v2420
    %3814 = vmatpush.msra.mxu0 %v2412
    %3815 = vmatpush.msra.mxu0 %v2404
    %3816 = vmatpush.msra.mxu0 %v2396
    %3817 = vmatpush.msra.mxu0 %v2388
    %3818 = vmatpush.msra.mxu0 %v2380
    %3819 = vmatpush.msra.mxu0 %v2372
    %3820 = vmatpush.msra.mxu0 %v2364
    %3821 = vmatpush.msra.mxu0 %v2356
    %3822 = vmatpush.msra.mxu0 %v2348
    %3823 = vmatpush.msra.mxu0 %v2340
    %3824 = vmatpush.msra.mxu0 %v2332
    %3825 = vmatpush.msra.mxu0 %v2324
    %3826 = vmatpush.msra.mxu0 %v2316
    %3827 = vmatpush.msra.mxu0 %v2308
    %3828 = vmatpush.msra.mxu0 %v2300
    %3829 = vmatmul.f32.gmra.mxu0 %v1906
    %v3830 = vpop.f32.mrf.mxu0
    %v3831 = vadd.f32 %v3811, %v3830
    %3832 = vdwg.mxu0
    %3833 = vmatpush.msra.mxu0 %v2548
    %3834 = vmatpush.msra.mxu0 %v2540
    %3835 = vmatpush.msra.mxu0 %v2532
    %3836 = vmatpush.msra.mxu0 %v2524
    %3837 = vmatpush.msra.mxu0 %v2516
    %3838 = vmatpush.msra.mxu0 %v2508
    %3839 = vmatpush.msra.mxu0 %v2500
    %3840 = vmatpush.msra.mxu0 %v2492
    %3841 = vmatpush.msra.mxu0 %v2484
    %3842 = vmatpush.msra.mxu0 %v2476
    %3843 = vmatpush.msra.mxu0 %v2468
    %3844 = vmatpush.msra.mxu0 %v2460
    %3845 = vmatpush.msra.mxu0 %v2452
    %3846 = vmatpush.msra.mxu0 %v2444
    %3847 = vmatpush.msra.mxu0 %v2436
    %3848 = vmatpush.msra.mxu0 %v2428
    %3849 = vmatmul.f32.gmra.mxu0 %v1907
    %v3850 = vpop.f32.mrf.mxu0
    %v3851 = vadd.f32 %v3831, %v3850
    %3852 = vdwg.mxu0
    %3853 = vmatpush.msra.mxu0 %v2676
    %3854 = vmatpush.msra.mxu0 %v2668
    %3855 = vmatpush.msra.mxu0 %v2660
    %3856 = vmatpush.msra.mxu0 %v2652
    %3857 = vmatpush.msra.mxu0 %v2644
    %3858 = vmatpush.msra.mxu0 %v2636
    %3859 = vmatpush.msra.mxu0 %v2628
    %3860 = vmatpush.msra.mxu0 %v2620
    %3861 = vmatpush.msra.mxu0 %v2612
    %3862 = vmatpush.msra.mxu0 %v2604
    %3863 = vmatpush.msra.mxu0 %v2596
    %3864 = vmatpush.msra.mxu0 %v2588
    %3865 = vmatpush.msra.mxu0 %v2580
    %3866 = vmatpush.msra.mxu0 %v2572
    %3867 = vmatpush.msra.mxu0 %v2564
    %3868 = vmatpush.msra.mxu0 %v2556
    %3869 = vmatmul.f32.gmra.mxu0 %v1908
    %v3870 = vpop.f32.mrf.mxu0
    %v3871 = vadd.f32 %v3851, %v3870
    %3872 = vdwg.mxu0
    %3873 = vmatpush.msra.mxu0 %v2804
    %3874 = vmatpush.msra.mxu0 %v2796
    %3875 = vmatpush.msra.mxu0 %v2788
    %3876 = vmatpush.msra.mxu0 %v2780
    %3877 = vmatpush.msra.mxu0 %v2772
    %3878 = vmatpush.msra.mxu0 %v2764
    %3879 = vmatpush.msra.mxu0 %v2756
    %3880 = vmatpush.msra.mxu0 %v2748
    %3881 = vmatpush.msra.mxu0 %v2740
    %3882 = vmatpush.msra.mxu0 %v2732
    %3883 = vmatpush.msra.mxu0 %v2724
    %3884 = vmatpush.msra.mxu0 %v2716
    %3885 = vmatpush.msra.mxu0 %v2708
    %3886 = vmatpush.msra.mxu0 %v2700
    %3887 = vmatpush.msra.mxu0 %v2692
    %3888 = vmatpush.msra.mxu0 %v2684
    %3889 = vmatmul.f32.gmra.mxu0 %v1909
    %v3890 = vpop.f32.mrf.mxu0
    %v3891 = vadd.f32 %v3871, %v3890
    %3892 = vdwg.mxu0
    %3893 = vmatpush.msra.mxu0 %v2932
    %3894 = vmatpush.msra.mxu0 %v2924
    %3895 = vmatpush.msra.mxu0 %v2916
    %3896 = vmatpush.msra.mxu0 %v2908
    %3897 = vmatpush.msra.mxu0 %v2900
    %3898 = vmatpush.msra.mxu0 %v2892
    %3899 = vmatpush.msra.mxu0 %v2884
    %3900 = vmatpush.msra.mxu0 %v2876
    %3901 = vmatpush.msra.mxu0 %v2868
    %3902 = vmatpush.msra.mxu0 %v2860
    %3903 = vmatpush.msra.mxu0 %v2852
    %3904 = vmatpush.msra.mxu0 %v2844
    %3905 = vmatpush.msra.mxu0 %v2836
    %3906 = vmatpush.msra.mxu0 %v2828
    %3907 = vmatpush.msra.mxu0 %v2820
    %3908 = vmatpush.msra.mxu0 %v2812
    %3909 = vmatmul.f32.gmra.mxu0 %v1910
    %v3910 = vpop.f32.mrf.mxu0
    %v3911 = vadd.f32 %v3891, %v3910
    %3912 = vdwg.mxu0
    %3913 = vmatpush.msra.mxu0 %v2037
    %3914 = vmatpush.msra.mxu0 %v2029
    %3915 = vmatpush.msra.mxu0 %v2021
    %3916 = vmatpush.msra.mxu0 %v2013
    %3917 = vmatpush.msra.mxu0 %v2005
    %3918 = vmatpush.msra.mxu0 %v1997
    %3919 = vmatpush.msra.mxu0 %v1989
    %3920 = vmatpush.msra.mxu0 %v1981
    %3921 = vmatpush.msra.mxu0 %v1973
    %3922 = vmatpush.msra.mxu0 %v1965
    %3923 = vmatpush.msra.mxu0 %v1957
    %3924 = vmatpush.msra.mxu0 %v1949
    %3925 = vmatpush.msra.mxu0 %v1941
    %3926 = vmatpush.msra.mxu0 %v1933
    %3927 = vmatpush.msra.mxu0 %v1925
    %3928 = vmatpush.msra.mxu0 %v1917
    %3929 = vmatmul.f32.gmra.mxu0 %v1903
    %v3930 = vpop.f32.mrf.mxu0
    %v3931 = vadd.f32 %v2943, %v3930
    %3932 = vdwg.mxu0
    %3933 = vmatpush.msra.mxu0 %v2165
    %3934 = vmatpush.msra.mxu0 %v2157
    %3935 = vmatpush.msra.mxu0 %v2149
    %3936 = vmatpush.msra.mxu0 %v2141
    %3937 = vmatpush.msra.mxu0 %v2133
    %3938 = vmatpush.msra.mxu0 %v2125
    %3939 = vmatpush.msra.mxu0 %v2117
    %3940 = vmatpush.msra.mxu0 %v2109
    %3941 = vmatpush.msra.mxu0 %v2101
    %3942 = vmatpush.msra.mxu0 %v2093
    %3943 = vmatpush.msra.mxu0 %v2085
    %3944 = vmatpush.msra.mxu0 %v2077
    %3945 = vmatpush.msra.mxu0 %v2069
    %3946 = vmatpush.msra.mxu0 %v2061
    %3947 = vmatpush.msra.mxu0 %v2053
    %3948 = vmatpush.msra.mxu0 %v2045
    %3949 = vmatmul.f32.gmra.mxu0 %v1904
    %v3950 = vpop.f32.mrf.mxu0
    %v3951 = vadd.f32 %v3931, %v3950
    %3952 = vdwg.mxu0
    %3953 = vmatpush.msra.mxu0 %v2293
    %3954 = vmatpush.msra.mxu0 %v2285
    %3955 = vmatpush.msra.mxu0 %v2277
    %3956 = vmatpush.msra.mxu0 %v2269
    %3957 = vmatpush.msra.mxu0 %v2261
    %3958 = vmatpush.msra.mxu0 %v2253
    %3959 = vmatpush.msra.mxu0 %v2245
    %3960 = vmatpush.msra.mxu0 %v2237
    %3961 = vmatpush.msra.mxu0 %v2229
    %3962 = vmatpush.msra.mxu0 %v2221
    %3963 = vmatpush.msra.mxu0 %v2213
    %3964 = vmatpush.msra.mxu0 %v2205
    %3965 = vmatpush.msra.mxu0 %v2197
    %3966 = vmatpush.msra.mxu0 %v2189
    %3967 = vmatpush.msra.mxu0 %v2181
    %3968 = vmatpush.msra.mxu0 %v2173
    %3969 = vmatmul.f32.gmra.mxu0 %v1905
    %v3970 = vpop.f32.mrf.mxu0
    %v3971 = vadd.f32 %v3951, %v3970
    %3972 = vdwg.mxu0
    %3973 = vmatpush.msra.mxu0 %v2421
    %3974 = vmatpush.msra.mxu0 %v2413
    %3975 = vmatpush.msra.mxu0 %v2405
    %3976 = vmatpush.msra.mxu0 %v2397
    %3977 = vmatpush.msra.mxu0 %v2389
    %3978 = vmatpush.msra.mxu0 %v2381
    %3979 = vmatpush.msra.mxu0 %v2373
    %3980 = vmatpush.msra.mxu0 %v2365
    %3981 = vmatpush.msra.mxu0 %v2357
    %3982 = vmatpush.msra.mxu0 %v2349
    %3983 = vmatpush.msra.mxu0 %v2341
    %3984 = vmatpush.msra.mxu0 %v2333
    %3985 = vmatpush.msra.mxu0 %v2325
    %3986 = vmatpush.msra.mxu0 %v2317
    %3987 = vmatpush.msra.mxu0 %v2309
    %3988 = vmatpush.msra.mxu0 %v2301
    %3989 = vmatmul.f32.gmra.mxu0 %v1906
    %v3990 = vpop.f32.mrf.mxu0
    %v3991 = vadd.f32 %v3971, %v3990
    %3992 = vdwg.mxu0
    %3993 = vmatpush.msra.mxu0 %v2549
    %3994 = vmatpush.msra.mxu0 %v2541
    %3995 = vmatpush.msra.mxu0 %v2533
    %3996 = vmatpush.msra.mxu0 %v2525
    %3997 = vmatpush.msra.mxu0 %v2517
    %3998 = vmatpush.msra.mxu0 %v2509
    %3999 = vmatpush.msra.mxu0 %v2501
    %4000 = vmatpush.msra.mxu0 %v2493
    %4001 = vmatpush.msra.mxu0 %v2485
    %4002 = vmatpush.msra.mxu0 %v2477
    %4003 = vmatpush.msra.mxu0 %v2469
    %4004 = vmatpush.msra.mxu0 %v2461
    %4005 = vmatpush.msra.mxu0 %v2453
    %4006 = vmatpush.msra.mxu0 %v2445
    %4007 = vmatpush.msra.mxu0 %v2437
    %4008 = vmatpush.msra.mxu0 %v2429
    %4009 = vmatmul.f32.gmra.mxu0 %v1907
    %v4010 = vpop.f32.mrf.mxu0
    %v4011 = vadd.f32 %v3991, %v4010
    %4012 = vdwg.mxu0
    %4013 = vmatpush.msra.mxu0 %v2677
    %4014 = vmatpush.msra.mxu0 %v2669
    %4015 = vmatpush.msra.mxu0 %v2661
    %4016 = vmatpush.msra.mxu0 %v2653
    %4017 = vmatpush.msra.mxu0 %v2645
    %4018 = vmatpush.msra.mxu0 %v2637
    %4019 = vmatpush.msra.mxu0 %v2629
    %4020 = vmatpush.msra.mxu0 %v2621
    %4021 = vmatpush.msra.mxu0 %v2613
    %4022 = vmatpush.msra.mxu0 %v2605
    %4023 = vmatpush.msra.mxu0 %v2597
    %4024 = vmatpush.msra.mxu0 %v2589
    %4025 = vmatpush.msra.mxu0 %v2581
    %4026 = vmatpush.msra.mxu0 %v2573
    %4027 = vmatpush.msra.mxu0 %v2565
    %4028 = vmatpush.msra.mxu0 %v2557
    %4029 = vmatmul.f32.gmra.mxu0 %v1908
    %v4030 = vpop.f32.mrf.mxu0
    %v4031 = vadd.f32 %v4011, %v4030
    %4032 = vdwg.mxu0
    %4033 = vmatpush.msra.mxu0 %v2805
    %4034 = vmatpush.msra.mxu0 %v2797
    %4035 = vmatpush.msra.mxu0 %v2789
    %4036 = vmatpush.msra.mxu0 %v2781
    %4037 = vmatpush.msra.mxu0 %v2773
    %4038 = vmatpush.msra.mxu0 %v2765
    %4039 = vmatpush.msra.mxu0 %v2757
    %4040 = vmatpush.msra.mxu0 %v2749
    %4041 = vmatpush.msra.mxu0 %v2741
    %4042 = vmatpush.msra.mxu0 %v2733
    %4043 = vmatpush.msra.mxu0 %v2725
    %4044 = vmatpush.msra.mxu0 %v2717
    %4045 = vmatpush.msra.mxu0 %v2709
    %4046 = vmatpush.msra.mxu0 %v2701
    %4047 = vmatpush.msra.mxu0 %v2693
    %4048 = vmatpush.msra.mxu0 %v2685
    %4049 = vmatmul.f32.gmra.mxu0 %v1909
    %v4050 = vpop.f32.mrf.mxu0
    %v4051 = vadd.f32 %v4031, %v4050
    %4052 = vdwg.mxu0
    %4053 = vmatpush.msra.mxu0 %v2933
    %4054 = vmatpush.msra.mxu0 %v2925
    %4055 = vmatpush.msra.mxu0 %v2917
    %4056 = vmatpush.msra.mxu0 %v2909
    %4057 = vmatpush.msra.mxu0 %v2901
    %4058 = vmatpush.msra.mxu0 %v2893
    %4059 = vmatpush.msra.mxu0 %v2885
    %4060 = vmatpush.msra.mxu0 %v2877
    %4061 = vmatpush.msra.mxu0 %v2869
    %4062 = vmatpush.msra.mxu0 %v2861
    %4063 = vmatpush.msra.mxu0 %v2853
    %4064 = vmatpush.msra.mxu0 %v2845
    %4065 = vmatpush.msra.mxu0 %v2837
    %4066 = vmatpush.msra.mxu0 %v2829
    %4067 = vmatpush.msra.mxu0 %v2821
    %4068 = vmatpush.msra.mxu0 %v2813
    %4069 = vmatmul.f32.gmra.mxu0 %v1910
    %v4070 = vpop.f32.mrf.mxu0
    %v4071 = vadd.f32 %v4051, %v4070
    %4072 = vdwg.mxu0
    %4073 = vmatpush.msra.mxu0 %v2038
    %4074 = vmatpush.msra.mxu0 %v2030
    %4075 = vmatpush.msra.mxu0 %v2022
    %4076 = vmatpush.msra.mxu0 %v2014
    %4077 = vmatpush.msra.mxu0 %v2006
    %4078 = vmatpush.msra.mxu0 %v1998
    %4079 = vmatpush.msra.mxu0 %v1990
    %4080 = vmatpush.msra.mxu0 %v1982
    %4081 = vmatpush.msra.mxu0 %v1974
    %4082 = vmatpush.msra.mxu0 %v1966
    %4083 = vmatpush.msra.mxu0 %v1958
    %4084 = vmatpush.msra.mxu0 %v1950
    %4085 = vmatpush.msra.mxu0 %v1942
    %4086 = vmatpush.msra.mxu0 %v1934
    %4087 = vmatpush.msra.mxu0 %v1926
    %4088 = vmatpush.msra.mxu0 %v1918
    %4089 = vmatmul.f32.gmra.mxu0 %v1903
    %v4090 = vpop.f32.mrf.mxu0
    %v4091 = vadd.f32 %v2944, %v4090
    %4092 = vdwg.mxu0
    %4093 = vmatpush.msra.mxu0 %v2166
    %4094 = vmatpush.msra.mxu0 %v2158
    %4095 = vmatpush.msra.mxu0 %v2150
    %4096 = vmatpush.msra.mxu0 %v2142
    %4097 = vmatpush.msra.mxu0 %v2134
    %4098 = vmatpush.msra.mxu0 %v2126
    %4099 = vmatpush.msra.mxu0 %v2118
    %4100 = vmatpush.msra.mxu0 %v2110
    %4101 = vmatpush.msra.mxu0 %v2102
    %4102 = vmatpush.msra.mxu0 %v2094
    %4103 = vmatpush.msra.mxu0 %v2086
    %4104 = vmatpush.msra.mxu0 %v2078
    %4105 = vmatpush.msra.mxu0 %v2070
    %4106 = vmatpush.msra.mxu0 %v2062
    %4107 = vmatpush.msra.mxu0 %v2054
    %4108 = vmatpush.msra.mxu0 %v2046
    %4109 = vmatmul.f32.gmra.mxu0 %v1904
    %v4110 = vpop.f32.mrf.mxu0
    %v4111 = vadd.f32 %v4091, %v4110
    %4112 = vdwg.mxu0
    %4113 = vmatpush.msra.mxu0 %v2294
    %4114 = vmatpush.msra.mxu0 %v2286
    %4115 = vmatpush.msra.mxu0 %v2278
    %4116 = vmatpush.msra.mxu0 %v2270
    %4117 = vmatpush.msra.mxu0 %v2262
    %4118 = vmatpush.msra.mxu0 %v2254
    %4119 = vmatpush.msra.mxu0 %v2246
    %4120 = vmatpush.msra.mxu0 %v2238
    %4121 = vmatpush.msra.mxu0 %v2230
    %4122 = vmatpush.msra.mxu0 %v2222
    %4123 = vmatpush.msra.mxu0 %v2214
    %4124 = vmatpush.msra.mxu0 %v2206
    %4125 = vmatpush.msra.mxu0 %v2198
    %4126 = vmatpush.msra.mxu0 %v2190
    %4127 = vmatpush.msra.mxu0 %v2182
    %4128 = vmatpush.msra.mxu0 %v2174
    %4129 = vmatmul.f32.gmra.mxu0 %v1905
    %v4130 = vpop.f32.mrf.mxu0
    %v4131 = vadd.f32 %v4111, %v4130
    %4132 = vdwg.mxu0
    %4133 = vmatpush.msra.mxu0 %v2422
    %4134 = vmatpush.msra.mxu0 %v2414
    %4135 = vmatpush.msra.mxu0 %v2406
    %4136 = vmatpush.msra.mxu0 %v2398
    %4137 = vmatpush.msra.mxu0 %v2390
    %4138 = vmatpush.msra.mxu0 %v2382
    %4139 = vmatpush.msra.mxu0 %v2374
    %4140 = vmatpush.msra.mxu0 %v2366
    %4141 = vmatpush.msra.mxu0 %v2358
    %4142 = vmatpush.msra.mxu0 %v2350
    %4143 = vmatpush.msra.mxu0 %v2342
    %4144 = vmatpush.msra.mxu0 %v2334
    %4145 = vmatpush.msra.mxu0 %v2326
    %4146 = vmatpush.msra.mxu0 %v2318
    %4147 = vmatpush.msra.mxu0 %v2310
    %4148 = vmatpush.msra.mxu0 %v2302
    %4149 = vmatmul.f32.gmra.mxu0 %v1906
    %v4150 = vpop.f32.mrf.mxu0
    %v4151 = vadd.f32 %v4131, %v4150
    %4152 = vdwg.mxu0
    %4153 = vmatpush.msra.mxu0 %v2550
    %4154 = vmatpush.msra.mxu0 %v2542
    %4155 = vmatpush.msra.mxu0 %v2534
    %4156 = vmatpush.msra.mxu0 %v2526
    %4157 = vmatpush.msra.mxu0 %v2518
    %4158 = vmatpush.msra.mxu0 %v2510
    %4159 = vmatpush.msra.mxu0 %v2502
    %4160 = vmatpush.msra.mxu0 %v2494
    %4161 = vmatpush.msra.mxu0 %v2486
    %4162 = vmatpush.msra.mxu0 %v2478
    %4163 = vmatpush.msra.mxu0 %v2470
    %4164 = vmatpush.msra.mxu0 %v2462
    %4165 = vmatpush.msra.mxu0 %v2454
    %4166 = vmatpush.msra.mxu0 %v2446
    %4167 = vmatpush.msra.mxu0 %v2438
    %4168 = vmatpush.msra.mxu0 %v2430
    %4169 = vmatmul.f32.gmra.mxu0 %v1907
    %v4170 = vpop.f32.mrf.mxu0
    %v4171 = vadd.f32 %v4151, %v4170
    %4172 = vdwg.mxu0
    %4173 = vmatpush.msra.mxu0 %v2678
    %4174 = vmatpush.msra.mxu0 %v2670
    %4175 = vmatpush.msra.mxu0 %v2662
    %4176 = vmatpush.msra.mxu0 %v2654
    %4177 = vmatpush.msra.mxu0 %v2646
    %4178 = vmatpush.msra.mxu0 %v2638
    %4179 = vmatpush.msra.mxu0 %v2630
    %4180 = vmatpush.msra.mxu0 %v2622
    %4181 = vmatpush.msra.mxu0 %v2614
    %4182 = vmatpush.msra.mxu0 %v2606
    %4183 = vmatpush.msra.mxu0 %v2598
    %4184 = vmatpush.msra.mxu0 %v2590
    %4185 = vmatpush.msra.mxu0 %v2582
    %4186 = vmatpush.msra.mxu0 %v2574
    %4187 = vmatpush.msra.mxu0 %v2566
    %4188 = vmatpush.msra.mxu0 %v2558
    %4189 = vmatmul.f32.gmra.mxu0 %v1908
    %v4190 = vpop.f32.mrf.mxu0
    %v4191 = vadd.f32 %v4171, %v4190
    %4192 = vdwg.mxu0
    %4193 = vmatpush.msra.mxu0 %v2806
    %4194 = vmatpush.msra.mxu0 %v2798
    %4195 = vmatpush.msra.mxu0 %v2790
    %4196 = vmatpush.msra.mxu0 %v2782
    %4197 = vmatpush.msra.mxu0 %v2774
    %4198 = vmatpush.msra.mxu0 %v2766
    %4199 = vmatpush.msra.mxu0 %v2758
    %4200 = vmatpush.msra.mxu0 %v2750
    %4201 = vmatpush.msra.mxu0 %v2742
    %4202 = vmatpush.msra.mxu0 %v2734
    %4203 = vmatpush.msra.mxu0 %v2726
    %4204 = vmatpush.msra.mxu0 %v2718
    %4205 = vmatpush.msra.mxu0 %v2710
    %4206 = vmatpush.msra.mxu0 %v2702
    %4207 = vmatpush.msra.mxu0 %v2694
    %4208 = vmatpush.msra.mxu0 %v2686
    %4209 = vmatmul.f32.gmra.mxu0 %v1909
    %v4210 = vpop.f32.mrf.mxu0
    %v4211 = vadd.f32 %v4191, %v4210
    %4212 = vdwg.mxu0
    %4213 = vmatpush.msra.mxu0 %v2934
    %4214 = vmatpush.msra.mxu0 %v2926
    %4215 = vmatpush.msra.mxu0 %v2918
    %4216 = vmatpush.msra.mxu0 %v2910
    %4217 = vmatpush.msra.mxu0 %v2902
    %4218 = vmatpush.msra.mxu0 %v2894
    %4219 = vmatpush.msra.mxu0 %v2886
    %4220 = vmatpush.msra.mxu0 %v2878
    %4221 = vmatpush.msra.mxu0 %v2870
    %4222 = vmatpush.msra.mxu0 %v2862
    %4223 = vmatpush.msra.mxu0 %v2854
    %4224 = vmatpush.msra.mxu0 %v2846
    %4225 = vmatpush.msra.mxu0 %v2838
    %4226 = vmatpush.msra.mxu0 %v2830
    %4227 = vmatpush.msra.mxu0 %v2822
    %4228 = vmatpush.msra.mxu0 %v2814
    %4229 = vmatmul.f32.gmra.mxu0 %v1910
    %v4230 = vpop.f32.mrf.mxu0
    %v4231 = vadd.f32 %v4211, %v4230
    %4232 = vdwg.mxu0
    %v4233 = vmax.f32 %v3111, 0.0
    %v4234 = vmax.f32 %v3271, 0.0
    %v4235 = vmax.f32 %v3431, 0.0
    %v4236 = vmax.f32 %v3591, 0.0
    %v4237 = vmax.f32 %v3751, 0.0
    %v4238 = vmax.f32 %v3911, 0.0
    %v4239 = vmax.f32 %v4071, 0.0
    %v4240 = vmax.f32 %v4231, 0.0
    %v4241 = vld [vmem:[#allocation23] sm:$0xff]
    %v4242 = vld [vmem:[#allocation23 + $0x8] sm:$0xff]
    %v4243 = vld [vmem:[#allocation23 + $0x10] sm:$0xff]
    %v4244 = vld [vmem:[#allocation23 + $0x18] sm:$0xff]
    %v4245 = vld [vmem:[#allocation23 + $0x20] sm:$0xff]
    %v4246 = vld [vmem:[#allocation23 + $0x28] sm:$0xff]
    %v4247 = vld [vmem:[#allocation23 + $0x30] sm:$0xff]
    %v4248 = vld [vmem:[#allocation23 + $0x38] sm:$0xff]
    %v4249 = vld [vmem:[#allocation23 + $0x40] sm:$0xff]
    %v4250 = vld [vmem:[#allocation23 + $0x48] sm:$0xff]
    %v4251 = vld [vmem:[#allocation23 + $0x50] sm:$0xff]
    %v4252 = vld [vmem:[#allocation23 + $0x58] sm:$0xff]
    %v4253 = vld [vmem:[#allocation23 + $0x60] sm:$0xff]
    %v4254 = vld [vmem:[#allocation23 + $0x68] sm:$0xff]
    %v4255 = vld [vmem:[#allocation23 + $0x70] sm:$0xff]
    %v4256 = vld [vmem:[#allocation23 + $0x78] sm:$0xff]
    %v4257 = vld [vmem:[#allocation23 + $0x80] sm:$0xff]
    %v4258 = vld [vmem:[#allocation23 + $0x88] sm:$0xff]
    %v4259 = vld [vmem:[#allocation23 + $0x90] sm:$0xff]
    %v4260 = vld [vmem:[#allocation23 + $0x98] sm:$0xff]
    %v4261 = vld [vmem:[#allocation23 + $0xa0] sm:$0xff]
    %v4262 = vld [vmem:[#allocation23 + $0xa8] sm:$0xff]
    %v4263 = vld [vmem:[#allocation23 + $0xb0] sm:$0xff]
    %v4264 = vld [vmem:[#allocation23 + $0xb8] sm:$0xff]
    %v4265 = vld [vmem:[#allocation23 + $0xc0] sm:$0xff]
    %v4266 = vld [vmem:[#allocation23 + $0xc8] sm:$0xff]
    %v4267 = vld [vmem:[#allocation23 + $0xd0] sm:$0xff]
    %v4268 = vld [vmem:[#allocation23 + $0xd8] sm:$0xff]
    %v4269 = vld [vmem:[#allocation23 + $0xe0] sm:$0xff]
    %v4270 = vld [vmem:[#allocation23 + $0xe8] sm:$0xff]
    %v4271 = vld [vmem:[#allocation23 + $0xf0] sm:$0xff]
    %v4272 = vld [vmem:[#allocation23 + $0xf8] sm:$0xff]
    %v4273 = vld [vmem:[#allocation23 + $0x100] sm:$0xff]
    %v4274 = vld [vmem:[#allocation23 + $0x108] sm:$0xff]
    %v4275 = vld [vmem:[#allocation23 + $0x110] sm:$0xff]
    %v4276 = vld [vmem:[#allocation23 + $0x118] sm:$0xff]
    %v4277 = vld [vmem:[#allocation23 + $0x120] sm:$0xff]
    %v4278 = vld [vmem:[#allocation23 + $0x128] sm:$0xff]
    %v4279 = vld [vmem:[#allocation23 + $0x130] sm:$0xff]
    %v4280 = vld [vmem:[#allocation23 + $0x138] sm:$0xff]
    %v4281 = vld [vmem:[#allocation23 + $0x140] sm:$0xff]
    %v4282 = vld [vmem:[#allocation23 + $0x148] sm:$0xff]
    %v4283 = vld [vmem:[#allocation23 + $0x150] sm:$0xff]
    %v4284 = vld [vmem:[#allocation23 + $0x158] sm:$0xff]
    %v4285 = vld [vmem:[#allocation23 + $0x160] sm:$0xff]
    %v4286 = vld [vmem:[#allocation23 + $0x168] sm:$0xff]
    %v4287 = vld [vmem:[#allocation23 + $0x170] sm:$0xff]
    %v4288 = vld [vmem:[#allocation23 + $0x178] sm:$0xff]
    %v4289 = vld [vmem:[#allocation23 + $0x180] sm:$0xff]
    %v4290 = vld [vmem:[#allocation23 + $0x188] sm:$0xff]
    %v4291 = vld [vmem:[#allocation23 + $0x190] sm:$0xff]
    %v4292 = vld [vmem:[#allocation23 + $0x198] sm:$0xff]
    %v4293 = vld [vmem:[#allocation23 + $0x1a0] sm:$0xff]
    %v4294 = vld [vmem:[#allocation23 + $0x1a8] sm:$0xff]
    %v4295 = vld [vmem:[#allocation23 + $0x1b0] sm:$0xff]
    %v4296 = vld [vmem:[#allocation23 + $0x1b8] sm:$0xff]
    %v4297 = vld [vmem:[#allocation23 + $0x1c0] sm:$0xff]
    %v4298 = vld [vmem:[#allocation23 + $0x1c8] sm:$0xff]
    %v4299 = vld [vmem:[#allocation23 + $0x1d0] sm:$0xff]
    %v4300 = vld [vmem:[#allocation23 + $0x1d8] sm:$0xff]
    %v4301 = vld [vmem:[#allocation23 + $0x1e0] sm:$0xff]
    %v4302 = vld [vmem:[#allocation23 + $0x1e8] sm:$0xff]
    %v4303 = vld [vmem:[#allocation23 + $0x1f0] sm:$0xff]
    %v4304 = vld [vmem:[#allocation23 + $0x1f8] sm:$0xff]
    %v4305 = vld [vmem:[#allocation23 + $0x200] sm:$0xff]
    %v4306 = vld [vmem:[#allocation23 + $0x208] sm:$0xff]
    %v4307 = vld [vmem:[#allocation23 + $0x210] sm:$0xff]
    %v4308 = vld [vmem:[#allocation23 + $0x218] sm:$0xff]
    %v4309 = vld [vmem:[#allocation23 + $0x220] sm:$0xff]
    %v4310 = vld [vmem:[#allocation23 + $0x228] sm:$0xff]
    %v4311 = vld [vmem:[#allocation23 + $0x230] sm:$0xff]
    %v4312 = vld [vmem:[#allocation23 + $0x238] sm:$0xff]
    %v4313 = vld [vmem:[#allocation23 + $0x240] sm:$0xff]
    %v4314 = vld [vmem:[#allocation23 + $0x248] sm:$0xff]
    %v4315 = vld [vmem:[#allocation23 + $0x250] sm:$0xff]
    %v4316 = vld [vmem:[#allocation23 + $0x258] sm:$0xff]
    %v4317 = vld [vmem:[#allocation23 + $0x260] sm:$0xff]
    %v4318 = vld [vmem:[#allocation23 + $0x268] sm:$0xff]
    %v4319 = vld [vmem:[#allocation23 + $0x270] sm:$0xff]
    %v4320 = vld [vmem:[#allocation23 + $0x278] sm:$0xff]
    %v4321 = vld [vmem:[#allocation23 + $0x280] sm:$0xff]
    %v4322 = vld [vmem:[#allocation23 + $0x288] sm:$0xff]
    %v4323 = vld [vmem:[#allocation23 + $0x290] sm:$0xff]
    %v4324 = vld [vmem:[#allocation23 + $0x298] sm:$0xff]
    %v4325 = vld [vmem:[#allocation23 + $0x2a0] sm:$0xff]
    %v4326 = vld [vmem:[#allocation23 + $0x2a8] sm:$0xff]
    %v4327 = vld [vmem:[#allocation23 + $0x2b0] sm:$0xff]
    %v4328 = vld [vmem:[#allocation23 + $0x2b8] sm:$0xff]
    %v4329 = vld [vmem:[#allocation23 + $0x2c0] sm:$0xff]
    %v4330 = vld [vmem:[#allocation23 + $0x2c8] sm:$0xff]
    %v4331 = vld [vmem:[#allocation23 + $0x2d0] sm:$0xff]
    %v4332 = vld [vmem:[#allocation23 + $0x2d8] sm:$0xff]
    %v4333 = vld [vmem:[#allocation23 + $0x2e0] sm:$0xff]
    %v4334 = vld [vmem:[#allocation23 + $0x2e8] sm:$0xff]
    %v4335 = vld [vmem:[#allocation23 + $0x2f0] sm:$0xff]
    %v4336 = vld [vmem:[#allocation23 + $0x2f8] sm:$0xff]
    %v4337 = vld [vmem:[#allocation23 + $0x300] sm:$0xff]
    %v4338 = vld [vmem:[#allocation23 + $0x308] sm:$0xff]
    %v4339 = vld [vmem:[#allocation23 + $0x310] sm:$0xff]
    %v4340 = vld [vmem:[#allocation23 + $0x318] sm:$0xff]
    %v4341 = vld [vmem:[#allocation23 + $0x320] sm:$0xff]
    %v4342 = vld [vmem:[#allocation23 + $0x328] sm:$0xff]
    %v4343 = vld [vmem:[#allocation23 + $0x330] sm:$0xff]
    %v4344 = vld [vmem:[#allocation23 + $0x338] sm:$0xff]
    %v4345 = vld [vmem:[#allocation23 + $0x340] sm:$0xff]
    %v4346 = vld [vmem:[#allocation23 + $0x348] sm:$0xff]
    %v4347 = vld [vmem:[#allocation23 + $0x350] sm:$0xff]
    %v4348 = vld [vmem:[#allocation23 + $0x358] sm:$0xff]
    %v4349 = vld [vmem:[#allocation23 + $0x360] sm:$0xff]
    %v4350 = vld [vmem:[#allocation23 + $0x368] sm:$0xff]
    %v4351 = vld [vmem:[#allocation23 + $0x370] sm:$0xff]
    %v4352 = vld [vmem:[#allocation23 + $0x378] sm:$0xff]
    %v4353 = vld [vmem:[#allocation23 + $0x380] sm:$0xff]
    %v4354 = vld [vmem:[#allocation23 + $0x388] sm:$0xff]
    %v4355 = vld [vmem:[#allocation23 + $0x390] sm:$0xff]
    %v4356 = vld [vmem:[#allocation23 + $0x398] sm:$0xff]
    %v4357 = vld [vmem:[#allocation23 + $0x3a0] sm:$0xff]
    %v4358 = vld [vmem:[#allocation23 + $0x3a8] sm:$0xff]
    %v4359 = vld [vmem:[#allocation23 + $0x3b0] sm:$0xff]
    %v4360 = vld [vmem:[#allocation23 + $0x3b8] sm:$0xff]
    %v4361 = vld [vmem:[#allocation23 + $0x3c0] sm:$0xff]
    %v4362 = vld [vmem:[#allocation23 + $0x3c8] sm:$0xff]
    %v4363 = vld [vmem:[#allocation23 + $0x3d0] sm:$0xff]
    %v4364 = vld [vmem:[#allocation23 + $0x3d8] sm:$0xff]
    %v4365 = vld [vmem:[#allocation23 + $0x3e0] sm:$0xff]
    %v4366 = vld [vmem:[#allocation23 + $0x3e8] sm:$0xff]
    %v4367 = vld [vmem:[#allocation23 + $0x3f0] sm:$0xff]
    %v4368 = vld [vmem:[#allocation23 + $0x3f8] sm:$0xff]
    %v4369 = vld [vmem:[#allocation23 + $0x400] sm:$0xff]
    %v4370 = vld [vmem:[#allocation23 + $0x408] sm:$0xff]
    %v4371 = vld [vmem:[#allocation23 + $0x410] sm:$0xff]
    %v4372 = vld [vmem:[#allocation23 + $0x418] sm:$0xff]
    %v4373 = vld [vmem:[#allocation23 + $0x420] sm:$0xff]
    %v4374 = vld [vmem:[#allocation23 + $0x428] sm:$0xff]
    %v4375 = vld [vmem:[#allocation23 + $0x430] sm:$0xff]
    %v4376 = vld [vmem:[#allocation23 + $0x438] sm:$0xff]
    %v4377 = vld [vmem:[#allocation23 + $0x440] sm:$0xff]
    %v4378 = vld [vmem:[#allocation23 + $0x448] sm:$0xff]
    %v4379 = vld [vmem:[#allocation23 + $0x450] sm:$0xff]
    %v4380 = vld [vmem:[#allocation23 + $0x458] sm:$0xff]
    %v4381 = vld [vmem:[#allocation23 + $0x460] sm:$0xff]
    %v4382 = vld [vmem:[#allocation23 + $0x468] sm:$0xff]
    %v4383 = vld [vmem:[#allocation23 + $0x470] sm:$0xff]
    %v4384 = vld [vmem:[#allocation23 + $0x478] sm:$0xff]
    %v4385 = vld [vmem:[#allocation23 + $0x480] sm:$0xff]
    %v4386 = vld [vmem:[#allocation23 + $0x488] sm:$0xff]
    %v4387 = vld [vmem:[#allocation23 + $0x490] sm:$0xff]
    %v4388 = vld [vmem:[#allocation23 + $0x498] sm:$0xff]
    %v4389 = vld [vmem:[#allocation23 + $0x4a0] sm:$0xff]
    %v4390 = vld [vmem:[#allocation23 + $0x4a8] sm:$0xff]
    %v4391 = vld [vmem:[#allocation23 + $0x4b0] sm:$0xff]
    %v4392 = vld [vmem:[#allocation23 + $0x4b8] sm:$0xff]
    %v4393 = vld [vmem:[#allocation23 + $0x4c0] sm:$0xff]
    %v4394 = vld [vmem:[#allocation23 + $0x4c8] sm:$0xff]
    %v4395 = vld [vmem:[#allocation23 + $0x4d0] sm:$0xff]
    %v4396 = vld [vmem:[#allocation23 + $0x4d8] sm:$0xff]
    %v4397 = vld [vmem:[#allocation23 + $0x4e0] sm:$0xff]
    %v4398 = vld [vmem:[#allocation23 + $0x4e8] sm:$0xff]
    %v4399 = vld [vmem:[#allocation23 + $0x4f0] sm:$0xff]
    %v4400 = vld [vmem:[#allocation23 + $0x4f8] sm:$0xff]
    %v4401 = vld [vmem:[#allocation23 + $0x500] sm:$0xff]
    %v4402 = vld [vmem:[#allocation23 + $0x508] sm:$0xff]
    %v4403 = vld [vmem:[#allocation23 + $0x510] sm:$0xff]
    %v4404 = vld [vmem:[#allocation23 + $0x518] sm:$0xff]
    %v4405 = vld [vmem:[#allocation23 + $0x520] sm:$0xff]
    %v4406 = vld [vmem:[#allocation23 + $0x528] sm:$0xff]
    %v4407 = vld [vmem:[#allocation23 + $0x530] sm:$0xff]
    %v4408 = vld [vmem:[#allocation23 + $0x538] sm:$0xff]
    %v4409 = vld [vmem:[#allocation23 + $0x540] sm:$0xff]
    %v4410 = vld [vmem:[#allocation23 + $0x548] sm:$0xff]
    %v4411 = vld [vmem:[#allocation23 + $0x550] sm:$0xff]
    %v4412 = vld [vmem:[#allocation23 + $0x558] sm:$0xff]
    %v4413 = vld [vmem:[#allocation23 + $0x560] sm:$0xff]
    %v4414 = vld [vmem:[#allocation23 + $0x568] sm:$0xff]
    %v4415 = vld [vmem:[#allocation23 + $0x570] sm:$0xff]
    %v4416 = vld [vmem:[#allocation23 + $0x578] sm:$0xff]
    %v4417 = vld [vmem:[#allocation23 + $0x580] sm:$0xff]
    %v4418 = vld [vmem:[#allocation23 + $0x588] sm:$0xff]
    %v4419 = vld [vmem:[#allocation23 + $0x590] sm:$0xff]
    %v4420 = vld [vmem:[#allocation23 + $0x598] sm:$0xff]
    %v4421 = vld [vmem:[#allocation23 + $0x5a0] sm:$0xff]
    %v4422 = vld [vmem:[#allocation23 + $0x5a8] sm:$0xff]
    %v4423 = vld [vmem:[#allocation23 + $0x5b0] sm:$0xff]
    %v4424 = vld [vmem:[#allocation23 + $0x5b8] sm:$0xff]
    %v4425 = vld [vmem:[#allocation23 + $0x5c0] sm:$0xff]
    %v4426 = vld [vmem:[#allocation23 + $0x5c8] sm:$0xff]
    %v4427 = vld [vmem:[#allocation23 + $0x5d0] sm:$0xff]
    %v4428 = vld [vmem:[#allocation23 + $0x5d8] sm:$0xff]
    %v4429 = vld [vmem:[#allocation23 + $0x5e0] sm:$0xff]
    %v4430 = vld [vmem:[#allocation23 + $0x5e8] sm:$0xff]
    %v4431 = vld [vmem:[#allocation23 + $0x5f0] sm:$0xff]
    %v4432 = vld [vmem:[#allocation23 + $0x5f8] sm:$0xff]
    %v4433 = vld [vmem:[#allocation23 + $0x600] sm:$0xff]
    %v4434 = vld [vmem:[#allocation23 + $0x608] sm:$0xff]
    %v4435 = vld [vmem:[#allocation23 + $0x610] sm:$0xff]
    %v4436 = vld [vmem:[#allocation23 + $0x618] sm:$0xff]
    %v4437 = vld [vmem:[#allocation23 + $0x620] sm:$0xff]
    %v4438 = vld [vmem:[#allocation23 + $0x628] sm:$0xff]
    %v4439 = vld [vmem:[#allocation23 + $0x630] sm:$0xff]
    %v4440 = vld [vmem:[#allocation23 + $0x638] sm:$0xff]
    %v4441 = vld [vmem:[#allocation23 + $0x640] sm:$0xff]
    %v4442 = vld [vmem:[#allocation23 + $0x648] sm:$0xff]
    %v4443 = vld [vmem:[#allocation23 + $0x650] sm:$0xff]
    %v4444 = vld [vmem:[#allocation23 + $0x658] sm:$0xff]
    %v4445 = vld [vmem:[#allocation23 + $0x660] sm:$0xff]
    %v4446 = vld [vmem:[#allocation23 + $0x668] sm:$0xff]
    %v4447 = vld [vmem:[#allocation23 + $0x670] sm:$0xff]
    %v4448 = vld [vmem:[#allocation23 + $0x678] sm:$0xff]
    %v4449 = vld [vmem:[#allocation23 + $0x680] sm:$0xff]
    %v4450 = vld [vmem:[#allocation23 + $0x688] sm:$0xff]
    %v4451 = vld [vmem:[#allocation23 + $0x690] sm:$0xff]
    %v4452 = vld [vmem:[#allocation23 + $0x698] sm:$0xff]
    %v4453 = vld [vmem:[#allocation23 + $0x6a0] sm:$0xff]
    %v4454 = vld [vmem:[#allocation23 + $0x6a8] sm:$0xff]
    %v4455 = vld [vmem:[#allocation23 + $0x6b0] sm:$0xff]
    %v4456 = vld [vmem:[#allocation23 + $0x6b8] sm:$0xff]
    %v4457 = vld [vmem:[#allocation23 + $0x6c0] sm:$0xff]
    %v4458 = vld [vmem:[#allocation23 + $0x6c8] sm:$0xff]
    %v4459 = vld [vmem:[#allocation23 + $0x6d0] sm:$0xff]
    %v4460 = vld [vmem:[#allocation23 + $0x6d8] sm:$0xff]
    %v4461 = vld [vmem:[#allocation23 + $0x6e0] sm:$0xff]
    %v4462 = vld [vmem:[#allocation23 + $0x6e8] sm:$0xff]
    %v4463 = vld [vmem:[#allocation23 + $0x6f0] sm:$0xff]
    %v4464 = vld [vmem:[#allocation23 + $0x6f8] sm:$0xff]
    %v4465 = vld [vmem:[#allocation23 + $0x700] sm:$0xff]
    %v4466 = vld [vmem:[#allocation23 + $0x708] sm:$0xff]
    %v4467 = vld [vmem:[#allocation23 + $0x710] sm:$0xff]
    %v4468 = vld [vmem:[#allocation23 + $0x718] sm:$0xff]
    %v4469 = vld [vmem:[#allocation23 + $0x720] sm:$0xff]
    %v4470 = vld [vmem:[#allocation23 + $0x728] sm:$0xff]
    %v4471 = vld [vmem:[#allocation23 + $0x730] sm:$0xff]
    %v4472 = vld [vmem:[#allocation23 + $0x738] sm:$0xff]
    %v4473 = vld [vmem:[#allocation23 + $0x740] sm:$0xff]
    %v4474 = vld [vmem:[#allocation23 + $0x748] sm:$0xff]
    %v4475 = vld [vmem:[#allocation23 + $0x750] sm:$0xff]
    %v4476 = vld [vmem:[#allocation23 + $0x758] sm:$0xff]
    %v4477 = vld [vmem:[#allocation23 + $0x760] sm:$0xff]
    %v4478 = vld [vmem:[#allocation23 + $0x768] sm:$0xff]
    %v4479 = vld [vmem:[#allocation23 + $0x770] sm:$0xff]
    %v4480 = vld [vmem:[#allocation23 + $0x778] sm:$0xff]
    %v4481 = vld [vmem:[#allocation23 + $0x780] sm:$0xff]
    %v4482 = vld [vmem:[#allocation23 + $0x788] sm:$0xff]
    %v4483 = vld [vmem:[#allocation23 + $0x790] sm:$0xff]
    %v4484 = vld [vmem:[#allocation23 + $0x798] sm:$0xff]
    %v4485 = vld [vmem:[#allocation23 + $0x7a0] sm:$0xff]
    %v4486 = vld [vmem:[#allocation23 + $0x7a8] sm:$0xff]
    %v4487 = vld [vmem:[#allocation23 + $0x7b0] sm:$0xff]
    %v4488 = vld [vmem:[#allocation23 + $0x7b8] sm:$0xff]
    %v4489 = vld [vmem:[#allocation23 + $0x7c0] sm:$0xff]
    %v4490 = vld [vmem:[#allocation23 + $0x7c8] sm:$0xff]
    %v4491 = vld [vmem:[#allocation23 + $0x7d0] sm:$0xff]
    %v4492 = vld [vmem:[#allocation23 + $0x7d8] sm:$0xff]
    %v4493 = vld [vmem:[#allocation23 + $0x7e0] sm:$0xff]
    %v4494 = vld [vmem:[#allocation23 + $0x7e8] sm:$0xff]
    %v4495 = vld [vmem:[#allocation23 + $0x7f0] sm:$0xff]
    %v4496 = vld [vmem:[#allocation23 + $0x7f8] sm:$0xff]
    %v4497 = vld [vmem:[#allocation25] sm:$0x3]
    %v4499 = vperm.slane %v4497, 0
    %v4500 = vperm.slane %v4497, 1
    %4503 = vmatpush.msra.mxu0 %v4271
    %4504 = vmatpush.msra.mxu0 %v4269
    %4505 = vmatpush.msra.mxu0 %v4267
    %4506 = vmatpush.msra.mxu0 %v4265
    %4507 = vmatpush.msra.mxu0 %v4263
    %4508 = vmatpush.msra.mxu0 %v4261
    %4509 = vmatpush.msra.mxu0 %v4259
    %4510 = vmatpush.msra.mxu0 %v4257
    %4511 = vmatpush.msra.mxu0 %v4255
    %4512 = vmatpush.msra.mxu0 %v4253
    %4513 = vmatpush.msra.mxu0 %v4251
    %4514 = vmatpush.msra.mxu0 %v4249
    %4515 = vmatpush.msra.mxu0 %v4247
    %4516 = vmatpush.msra.mxu0 %v4245
    %4517 = vmatpush.msra.mxu0 %v4243
    %4518 = vmatpush.msra.mxu0 %v4241
    %4519 = vmatmul.f32.gmra.mxu0 %v4233
    %v4520 = vpop.f32.mrf.mxu0
    %v4521 = vadd.f32 %v4499, %v4520
    %4522 = vdwg.mxu0
    %4523 = vmatpush.msra.mxu0 %v4303
    %4524 = vmatpush.msra.mxu0 %v4301
    %4525 = vmatpush.msra.mxu0 %v4299
    %4526 = vmatpush.msra.mxu0 %v4297
    %4527 = vmatpush.msra.mxu0 %v4295
    %4528 = vmatpush.msra.mxu0 %v4293
    %4529 = vmatpush.msra.mxu0 %v4291
    %4530 = vmatpush.msra.mxu0 %v4289
    %4531 = vmatpush.msra.mxu0 %v4287
    %4532 = vmatpush.msra.mxu0 %v4285
    %4533 = vmatpush.msra.mxu0 %v4283
    %4534 = vmatpush.msra.mxu0 %v4281
    %4535 = vmatpush.msra.mxu0 %v4279
    %4536 = vmatpush.msra.mxu0 %v4277
    %4537 = vmatpush.msra.mxu0 %v4275
    %4538 = vmatpush.msra.mxu0 %v4273
    %4539 = vmatmul.f32.gmra.mxu0 %v4234
    %v4540 = vpop.f32.mrf.mxu0
    %v4541 = vadd.f32 %v4521, %v4540
    %4542 = vdwg.mxu0
    %4543 = vmatpush.msra.mxu0 %v4335
    %4544 = vmatpush.msra.mxu0 %v4333
    %4545 = vmatpush.msra.mxu0 %v4331
    %4546 = vmatpush.msra.mxu0 %v4329
    %4547 = vmatpush.msra.mxu0 %v4327
    %4548 = vmatpush.msra.mxu0 %v4325
    %4549 = vmatpush.msra.mxu0 %v4323
    %4550 = vmatpush.msra.mxu0 %v4321
    %4551 = vmatpush.msra.mxu0 %v4319
    %4552 = vmatpush.msra.mxu0 %v4317
    %4553 = vmatpush.msra.mxu0 %v4315
    %4554 = vmatpush.msra.mxu0 %v4313
    %4555 = vmatpush.msra.mxu0 %v4311
    %4556 = vmatpush.msra.mxu0 %v4309
    %4557 = vmatpush.msra.mxu0 %v4307
    %4558 = vmatpush.msra.mxu0 %v4305
    %4559 = vmatmul.f32.gmra.mxu0 %v4235
    %v4560 = vpop.f32.mrf.mxu0
    %v4561 = vadd.f32 %v4541, %v4560
    %4562 = vdwg.mxu0
    %4563 = vmatpush.msra.mxu0 %v4367
    %4564 = vmatpush.msra.mxu0 %v4365
    %4565 = vmatpush.msra.mxu0 %v4363
    %4566 = vmatpush.msra.mxu0 %v4361
    %4567 = vmatpush.msra.mxu0 %v4359
    %4568 = vmatpush.msra.mxu0 %v4357
    %4569 = vmatpush.msra.mxu0 %v4355
    %4570 = vmatpush.msra.mxu0 %v4353
    %4571 = vmatpush.msra.mxu0 %v4351
    %4572 = vmatpush.msra.mxu0 %v4349
    %4573 = vmatpush.msra.mxu0 %v4347
    %4574 = vmatpush.msra.mxu0 %v4345
    %4575 = vmatpush.msra.mxu0 %v4343
    %4576 = vmatpush.msra.mxu0 %v4341
    %4577 = vmatpush.msra.mxu0 %v4339
    %4578 = vmatpush.msra.mxu0 %v4337
    %4579 = vmatmul.f32.gmra.mxu0 %v4236
    %v4580 = vpop.f32.mrf.mxu0
    %v4581 = vadd.f32 %v4561, %v4580
    %4582 = vdwg.mxu0
    %4583 = vmatpush.msra.mxu0 %v4399
    %4584 = vmatpush.msra.mxu0 %v4397
    %4585 = vmatpush.msra.mxu0 %v4395
    %4586 = vmatpush.msra.mxu0 %v4393
    %4587 = vmatpush.msra.mxu0 %v4391
    %4588 = vmatpush.msra.mxu0 %v4389
    %4589 = vmatpush.msra.mxu0 %v4387
    %4590 = vmatpush.msra.mxu0 %v4385
    %4591 = vmatpush.msra.mxu0 %v4383
    %4592 = vmatpush.msra.mxu0 %v4381
    %4593 = vmatpush.msra.mxu0 %v4379
    %4594 = vmatpush.msra.mxu0 %v4377
    %4595 = vmatpush.msra.mxu0 %v4375
    %4596 = vmatpush.msra.mxu0 %v4373
    %4597 = vmatpush.msra.mxu0 %v4371
    %4598 = vmatpush.msra.mxu0 %v4369
    %4599 = vmatmul.f32.gmra.mxu0 %v4237
    %v4600 = vpop.f32.mrf.mxu0
    %v4601 = vadd.f32 %v4581, %v4600
    %4602 = vdwg.mxu0
    %4603 = vmatpush.msra.mxu0 %v4431
    %4604 = vmatpush.msra.mxu0 %v4429
    %4605 = vmatpush.msra.mxu0 %v4427
    %4606 = vmatpush.msra.mxu0 %v4425
    %4607 = vmatpush.msra.mxu0 %v4423
    %4608 = vmatpush.msra.mxu0 %v4421
    %4609 = vmatpush.msra.mxu0 %v4419
    %4610 = vmatpush.msra.mxu0 %v4417
    %4611 = vmatpush.msra.mxu0 %v4415
    %4612 = vmatpush.msra.mxu0 %v4413
    %4613 = vmatpush.msra.mxu0 %v4411
    %4614 = vmatpush.msra.mxu0 %v4409
    %4615 = vmatpush.msra.mxu0 %v4407
    %4616 = vmatpush.msra.mxu0 %v4405
    %4617 = vmatpush.msra.mxu0 %v4403
    %4618 = vmatpush.msra.mxu0 %v4401
    %4619 = vmatmul.f32.gmra.mxu0 %v4238
    %v4620 = vpop.f32.mrf.mxu0
    %v4621 = vadd.f32 %v4601, %v4620
    %4622 = vdwg.mxu0
    %4623 = vmatpush.msra.mxu0 %v4463
    %4624 = vmatpush.msra.mxu0 %v4461
    %4625 = vmatpush.msra.mxu0 %v4459
    %4626 = vmatpush.msra.mxu0 %v4457
    %4627 = vmatpush.msra.mxu0 %v4455
    %4628 = vmatpush.msra.mxu0 %v4453
    %4629 = vmatpush.msra.mxu0 %v4451
    %4630 = vmatpush.msra.mxu0 %v4449
    %4631 = vmatpush.msra.mxu0 %v4447
    %4632 = vmatpush.msra.mxu0 %v4445
    %4633 = vmatpush.msra.mxu0 %v4443
    %4634 = vmatpush.msra.mxu0 %v4441
    %4635 = vmatpush.msra.mxu0 %v4439
    %4636 = vmatpush.msra.mxu0 %v4437
    %4637 = vmatpush.msra.mxu0 %v4435
    %4638 = vmatpush.msra.mxu0 %v4433
    %4639 = vmatmul.f32.gmra.mxu0 %v4239
    %v4640 = vpop.f32.mrf.mxu0
    %v4641 = vadd.f32 %v4621, %v4640
    %4642 = vdwg.mxu0
    %4643 = vmatpush.msra.mxu0 %v4495
    %4644 = vmatpush.msra.mxu0 %v4493
    %4645 = vmatpush.msra.mxu0 %v4491
    %4646 = vmatpush.msra.mxu0 %v4489
    %4647 = vmatpush.msra.mxu0 %v4487
    %4648 = vmatpush.msra.mxu0 %v4485
    %4649 = vmatpush.msra.mxu0 %v4483
    %4650 = vmatpush.msra.mxu0 %v4481
    %4651 = vmatpush.msra.mxu0 %v4479
    %4652 = vmatpush.msra.mxu0 %v4477
    %4653 = vmatpush.msra.mxu0 %v4475
    %4654 = vmatpush.msra.mxu0 %v4473
    %4655 = vmatpush.msra.mxu0 %v4471
    %4656 = vmatpush.msra.mxu0 %v4469
    %4657 = vmatpush.msra.mxu0 %v4467
    %4658 = vmatpush.msra.mxu0 %v4465
    %4659 = vmatmul.f32.gmra.mxu0 %v4240
    %v4660 = vpop.f32.mrf.mxu0
    %v4661 = vadd.f32 %v4641, %v4660
    %4662 = vdwg.mxu0
    %4663 = vmatpush.msra.mxu0 %v4272
    %4664 = vmatpush.msra.mxu0 %v4270
    %4665 = vmatpush.msra.mxu0 %v4268
    %4666 = vmatpush.msra.mxu0 %v4266
    %4667 = vmatpush.msra.mxu0 %v4264
    %4668 = vmatpush.msra.mxu0 %v4262
    %4669 = vmatpush.msra.mxu0 %v4260
    %4670 = vmatpush.msra.mxu0 %v4258
    %4671 = vmatpush.msra.mxu0 %v4256
    %4672 = vmatpush.msra.mxu0 %v4254
    %4673 = vmatpush.msra.mxu0 %v4252
    %4674 = vmatpush.msra.mxu0 %v4250
    %4675 = vmatpush.msra.mxu0 %v4248
    %4676 = vmatpush.msra.mxu0 %v4246
    %4677 = vmatpush.msra.mxu0 %v4244
    %4678 = vmatpush.msra.mxu0 %v4242
    %4679 = vmatmul.f32.gmra.mxu0 %v4233
    %v4680 = vpop.f32.mrf.mxu0
    %v4681 = vadd.f32 %v4500, %v4680
    %4682 = vdwg.mxu0
    %4683 = vmatpush.msra.mxu0 %v4304
    %4684 = vmatpush.msra.mxu0 %v4302
    %4685 = vmatpush.msra.mxu0 %v4300
    %4686 = vmatpush.msra.mxu0 %v4298
    %4687 = vmatpush.msra.mxu0 %v4296
    %4688 = vmatpush.msra.mxu0 %v4294
    %4689 = vmatpush.msra.mxu0 %v4292
    %4690 = vmatpush.msra.mxu0 %v4290
    %4691 = vmatpush.msra.mxu0 %v4288
    %4692 = vmatpush.msra.mxu0 %v4286
    %4693 = vmatpush.msra.mxu0 %v4284
    %4694 = vmatpush.msra.mxu0 %v4282
    %4695 = vmatpush.msra.mxu0 %v4280
    %4696 = vmatpush.msra.mxu0 %v4278
    %4697 = vmatpush.msra.mxu0 %v4276
    %4698 = vmatpush.msra.mxu0 %v4274
    %4699 = vmatmul.f32.gmra.mxu0 %v4234
    %v4700 = vpop.f32.mrf.mxu0
    %v4701 = vadd.f32 %v4681, %v4700
    %4702 = vdwg.mxu0
    %4703 = vmatpush.msra.mxu0 %v4336
    %4704 = vmatpush.msra.mxu0 %v4334
    %4705 = vmatpush.msra.mxu0 %v4332
    %4706 = vmatpush.msra.mxu0 %v4330
    %4707 = vmatpush.msra.mxu0 %v4328
    %4708 = vmatpush.msra.mxu0 %v4326
    %4709 = vmatpush.msra.mxu0 %v4324
    %4710 = vmatpush.msra.mxu0 %v4322
    %4711 = vmatpush.msra.mxu0 %v4320
    %4712 = vmatpush.msra.mxu0 %v4318
    %4713 = vmatpush.msra.mxu0 %v4316
    %4714 = vmatpush.msra.mxu0 %v4314
    %4715 = vmatpush.msra.mxu0 %v4312
    %4716 = vmatpush.msra.mxu0 %v4310
    %4717 = vmatpush.msra.mxu0 %v4308
    %4718 = vmatpush.msra.mxu0 %v4306
    %4719 = vmatmul.f32.gmra.mxu0 %v4235
    %v4720 = vpop.f32.mrf.mxu0
    %v4721 = vadd.f32 %v4701, %v4720
    %4722 = vdwg.mxu0
    %4723 = vmatpush.msra.mxu0 %v4368
    %4724 = vmatpush.msra.mxu0 %v4366
    %4725 = vmatpush.msra.mxu0 %v4364
    %4726 = vmatpush.msra.mxu0 %v4362
    %4727 = vmatpush.msra.mxu0 %v4360
    %4728 = vmatpush.msra.mxu0 %v4358
    %4729 = vmatpush.msra.mxu0 %v4356
    %4730 = vmatpush.msra.mxu0 %v4354
    %4731 = vmatpush.msra.mxu0 %v4352
    %4732 = vmatpush.msra.mxu0 %v4350
    %4733 = vmatpush.msra.mxu0 %v4348
    %4734 = vmatpush.msra.mxu0 %v4346
    %4735 = vmatpush.msra.mxu0 %v4344
    %4736 = vmatpush.msra.mxu0 %v4342
    %4737 = vmatpush.msra.mxu0 %v4340
    %4738 = vmatpush.msra.mxu0 %v4338
    %4739 = vmatmul.f32.gmra.mxu0 %v4236
    %v4740 = vpop.f32.mrf.mxu0
    %v4741 = vadd.f32 %v4721, %v4740
    %4742 = vdwg.mxu0
    %4743 = vmatpush.msra.mxu0 %v4400
    %4744 = vmatpush.msra.mxu0 %v4398
    %4745 = vmatpush.msra.mxu0 %v4396
    %4746 = vmatpush.msra.mxu0 %v4394
    %4747 = vmatpush.msra.mxu0 %v4392
    %4748 = vmatpush.msra.mxu0 %v4390
    %4749 = vmatpush.msra.mxu0 %v4388
    %4750 = vmatpush.msra.mxu0 %v4386
    %4751 = vmatpush.msra.mxu0 %v4384
    %4752 = vmatpush.msra.mxu0 %v4382
    %4753 = vmatpush.msra.mxu0 %v4380
    %4754 = vmatpush.msra.mxu0 %v4378
    %4755 = vmatpush.msra.mxu0 %v4376
    %4756 = vmatpush.msra.mxu0 %v4374
    %4757 = vmatpush.msra.mxu0 %v4372
    %4758 = vmatpush.msra.mxu0 %v4370
    %4759 = vmatmul.f32.gmra.mxu0 %v4237
    %v4760 = vpop.f32.mrf.mxu0
    %v4761 = vadd.f32 %v4741, %v4760
    %4762 = vdwg.mxu0
    %4763 = vmatpush.msra.mxu0 %v4432
    %4764 = vmatpush.msra.mxu0 %v4430
    %4765 = vmatpush.msra.mxu0 %v4428
    %4766 = vmatpush.msra.mxu0 %v4426
    %4767 = vmatpush.msra.mxu0 %v4424
    %4768 = vmatpush.msra.mxu0 %v4422
    %4769 = vmatpush.msra.mxu0 %v4420
    %4770 = vmatpush.msra.mxu0 %v4418
    %4771 = vmatpush.msra.mxu0 %v4416
    %4772 = vmatpush.msra.mxu0 %v4414
    %4773 = vmatpush.msra.mxu0 %v4412
    %4774 = vmatpush.msra.mxu0 %v4410
    %4775 = vmatpush.msra.mxu0 %v4408
    %4776 = vmatpush.msra.mxu0 %v4406
    %4777 = vmatpush.msra.mxu0 %v4404
    %4778 = vmatpush.msra.mxu0 %v4402
    %4779 = vmatmul.f32.gmra.mxu0 %v4238
    %v4780 = vpop.f32.mrf.mxu0
    %v4781 = vadd.f32 %v4761, %v4780
    %4782 = vdwg.mxu0
    %4783 = vmatpush.msra.mxu0 %v4464
    %4784 = vmatpush.msra.mxu0 %v4462
    %4785 = vmatpush.msra.mxu0 %v4460
    %4786 = vmatpush.msra.mxu0 %v4458
    %4787 = vmatpush.msra.mxu0 %v4456
    %4788 = vmatpush.msra.mxu0 %v4454
    %4789 = vmatpush.msra.mxu0 %v4452
    %4790 = vmatpush.msra.mxu0 %v4450
    %4791 = vmatpush.msra.mxu0 %v4448
    %4792 = vmatpush.msra.mxu0 %v4446
    %4793 = vmatpush.msra.mxu0 %v4444
    %4794 = vmatpush.msra.mxu0 %v4442
    %4795 = vmatpush.msra.mxu0 %v4440
    %4796 = vmatpush.msra.mxu0 %v4438
    %4797 = vmatpush.msra.mxu0 %v4436
    %4798 = vmatpush.msra.mxu0 %v4434
    %4799 = vmatmul.f32.gmra.mxu0 %v4239
    %v4800 = vpop.f32.mrf.mxu0
    %v4801 = vadd.f32 %v4781, %v4800
    %4802 = vdwg.mxu0
    %4803 = vmatpush.msra.mxu0 %v4496
    %4804 = vmatpush.msra.mxu0 %v4494
    %4805 = vmatpush.msra.mxu0 %v4492
    %4806 = vmatpush.msra.mxu0 %v4490
    %4807 = vmatpush.msra.mxu0 %v4488
    %4808 = vmatpush.msra.mxu0 %v4486
    %4809 = vmatpush.msra.mxu0 %v4484
    %4810 = vmatpush.msra.mxu0 %v4482
    %4811 = vmatpush.msra.mxu0 %v4480
    %4812 = vmatpush.msra.mxu0 %v4478
    %4813 = vmatpush.msra.mxu0 %v4476
    %4814 = vmatpush.msra.mxu0 %v4474
    %4815 = vmatpush.msra.mxu0 %v4472
    %4816 = vmatpush.msra.mxu0 %v4470
    %4817 = vmatpush.msra.mxu0 %v4468
    %4818 = vmatpush.msra.mxu0 %v4466
    %4819 = vmatmul.f32.gmra.mxu0 %v4240
    %v4820 = vpop.f32.mrf.mxu0
    %v4821 = vadd.f32 %v4801, %v4820
    %4822 = vdwg.mxu0
    %4823 = vst [vmem:[#allocation26] sm:$0xff] %v4661
    %4824 = vst [vmem:[#allocation26 + $0x8] sm:$0xff] %v4821
    // Predicated region
    $region122: #{tpu_custom_call.1} parent=1 // pred_check
      _
    $region123: #{tpu_custom_call.1} parent=1 // pred_check_branch
      %4826 = sbr.rel (0) target = $region125
    $region124: #{tpu_custom_call.1} parent=1 // pred_region
      %4828 = vsyncadd [#allocation4], 0
      %s4830 = sshll.u32 [#allocation26], 4
      %s4831 = int_to_ptr.vmem [resolvable:$true] %s4830
      %s4832 = sshll.u32 %s15, 4
      %s4833 = int_to_ptr.hbm [resolvable:$true] %s4832
      %4835 = dma.vmem_to_hbm [thread:$0]  %s4831, 256, %s4833, [#allocation4]
    $region125: #{tpu_custom_call.1} parent=1 // pred_fallthru
      _
    // Predicated region
    $region126: #{tpu_custom_call.1} parent=1 // pred_check
      _
    $region127: #{tpu_custom_call.1} parent=1 // pred_check_branch
      %4837 = sbr.rel (0) target = $region129
    $region128: #{tpu_custom_call.1} parent=1 // pred_region
      %4839 = dma.done [#allocation4], 256
    $region129: #{tpu_custom_call.1} parent=1 // pred_fallthru
      _
    %4840 = vsyncpa [#allocation3], 1
    %4841 = vsyncpa [#allocation6], 1
    %4842 = vsyncpa [#allocation9], 1
    %4843 = vsyncpa [#allocation12], 1
    %4844 = vsyncpa [#allocation15], 1
    %4845 = vsyncpa [#allocation18], 1
    %4846 = vsyncpa [#allocation21], 1
    %4847 = vsyncpa [#allocation24], 1
    %4848 = vsyncpa [#allocation4], 1

</llo_original>
